<compile_context>
chip_gen: v5e
topology: v5e:2x2
jax: 0.10.0
libtpu: 0.0.40
codegen_flags: <defaults>
</compile_context>

<pallas_src>
import functools

import numpy as np
import jax
import jax.numpy as jnp
from jax.experimental import pallas as pl
from jax.experimental.pallas import tpu as pltpu

K = 5      # ConvTranspose2d kernel size for every conv layer of the module.
HP1 = 256  # per-h lane width of the fused Linear output (7*32 = 224 padded to 2 vregs)


# ---------------------------------------------------------------------------
# Init-time weight repacking (hoisted out of the jitted forward)
# ---------------------------------------------------------------------------
def _convT_lane_matrices(w_pt, *, stride, pad, w_in, w_out):
    """Per-H-tap lane-mixing matrices for one ConvTranspose2d layer.

    w_pt: (Cin, Cout, K, K) PyTorch-layout weight.
    Returns (K, w_in*Cin, w_out*Cout) float32.  For H-tap ki the kernel does
        out[row=(oh,b), (ow,co)] += slab[row=(oh+ki,b), (w,ci)] @ M[ki]
    where M folds the W kernel taps, the W zero-dilation (stride) and W padding.
    """
    w_pt = np.asarray(w_pt, np.float32)
    cin, cout, k, _ = w_pt.shape
    lo = k - 1 - pad
    # flipped direct-conv weights wf[ki, kj, ci, co] = W[ci, co, K-1-ki, K-1-kj]
    wf = np.transpose(w_pt[:, :, ::-1, ::-1], (2, 3, 0, 1))
    m = np.zeros((k, w_in * cin, w_out * cout), np.float32)
    for ki in range(k):
        for wi in range(w_in):
            for ow in range(w_out):
                kj = lo + stride * wi - ow
                if 0 <= kj < k:
                    m[ki, wi * cin:(wi + 1) * cin, ow * cout:(ow + 1) * cout] = wf[ki, kj]
    return m


def _channel_sum_matrix(w_out, cout):
    # (w_out*cout, cout) one-hot matrix: gathers per-channel sums out of the
    # (ow, co) lane layout with a single small matmul (used for BN2d stats).
    return np.tile(np.eye(cout, dtype=np.float32), (w_out, 1))


def init_raw_params(key, nc=1, ngf=8, nz=100):
    """Random parameters in the PyTorch module's native layouts."""
    k0, k1, k2, k3 = jax.random.split(key, 4)
    c1, c2, c3 = 4 * ngf, 2 * ngf, ngf
    f1 = 7 * 7 * c1
    return {
        # nn.Linear(100, f1, bias=False): stored as (nz, f1) so y = x @ W
        "lin_w": jax.random.normal(k0, (nz, f1), jnp.float32) * 0.05,
        "bn1_g": jnp.ones((f1,), jnp.float32),
        "bn1_b": jnp.zeros((f1,), jnp.float32),
        # ConvTranspose2d weights in PyTorch layout (Cin, Cout, K, K)
        "ct1_w": jax.random.normal(k1, (c1, c2, K, K), jnp.float32) * 0.05,
        "bn2_g": jnp.ones((c2,), jnp.float32),
        "bn2_b": jnp.zeros((c2,), jnp.float32),
        "ct2_w": jax.random.normal(k2, (c2, c3, K, K), jnp.float32) * 0.05,
        "bn3_g": jnp.ones((c3,), jnp.float32),
        "bn3_b": jnp.zeros((c3,), jnp.float32),
        "ct3_w": jax.random.normal(k3, (c3, nc, K, K), jnp.float32) * 0.05,
    }


def prepare_params(raw, nc=1, ngf=8, nz=100):
    """One-time repack of the PyTorch-layout weights into kernel layouts."""
    c1, c2, c3 = 4 * ngf, 2 * ngf, ngf

    # Linear feature index after Unflatten(1, (C1, 7, 7)) is f = c*49 + h*7 + w.
    # Fuse all 7 image rows into one matmul: lanes are (h, w, c) with each
    # h-block padded from 7*C1=224 to HP1=256 lanes (keeps lane slices aligned).
    lin = np.asarray(raw["lin_w"], np.float32)
    lin_hwc = lin.reshape(nz, c1, 7, 7).transpose(0, 2, 3, 1).reshape(nz, 7, 7 * c1)
    w_lin = np.zeros((nz, 7, HP1), np.float32)
    w_lin[:, :, :7 * c1] = lin_hwc
    w_lin = w_lin.reshape(nz, 7 * HP1)

    def pack_bn1(v, fill):
        a = np.full((7, HP1), fill, np.float32)
        a[:, :7 * c1] = (np.asarray(v, np.float32).reshape(c1, 7, 7)
                         .transpose(1, 2, 0).reshape(7, 7 * c1))
        return a.reshape(1, 7 * HP1)

    g1 = pack_bn1(raw["bn1_g"], 1.0)
    b1 = pack_bn1(raw["bn1_b"], 0.0)

    m1 = _convT_lane_matrices(raw["ct1_w"], stride=1, pad=2, w_in=7, w_out=7)   # (K,224,112)
    m1p = np.zeros((K, HP1, 7 * c2), np.float32)
    m1p[:, :7 * c1, :] = m1                                                     # pad K rows 224->256
    m2 = _convT_lane_matrices(raw["ct2_w"], stride=2, pad=2, w_in=7, w_out=14)  # (K,112,112)
    m3 = _convT_lane_matrices(raw["ct3_w"], stride=2, pad=2, w_in=14, w_out=28) # (K,112,28)

    s1 = _channel_sum_matrix(7, c2)
    s2 = _channel_sum_matrix(14, c3)

    return {
        "w_lin": jnp.asarray(w_lin, jnp.bfloat16),
        "bn1_g": jnp.asarray(g1), "bn1_b": jnp.asarray(b1),
        "m1": jnp.asarray(m1p, jnp.bfloat16),
        "s1": jnp.asarray(s1), "s1t": jnp.asarray(s1.T),
        "bn2_g": jnp.asarray(raw["bn2_g"], jnp.float32).reshape(1, c2),
        "bn2_b": jnp.asarray(raw["bn2_b"], jnp.float32).reshape(1, c2),
        "m2": jnp.asarray(m2, jnp.bfloat16),
        "s2": jnp.asarray(s2), "s2t": jnp.asarray(s2.T),
        "bn3_g": jnp.asarray(raw["bn3_g"], jnp.float32).reshape(1, c3),
        "bn3_b": jnp.asarray(raw["bn3_b"], jnp.float32).reshape(1, c3),
        "m3": jnp.asarray(m3, jnp.bfloat16),
    }


# ---------------------------------------------------------------------------
# The fused Pallas kernel: Linear -> BN1d -> LReLU -> 3x (ConvT [+BN2d+LReLU])
# ---------------------------------------------------------------------------
def _dcgan_generator_kernel(x_ref, wlin_ref, g1_ref, b1_ref,
                            m1_ref, s1_ref, s1t_ref, g2_ref, b2_ref,
                            m2_hbm_ref, s2_ref, s2t_ref, g3_ref, b3_ref, m3_hbm_ref,
                            out_ref,
                            p1_ref, p2_ref, p3_ref, m2_ref, m3_ref, ostage_ref, dma_sem,
                            *, batch, nc, ngf, eps, slope):
    f32 = jnp.float32
    bf16 = jnp.bfloat16
    B = batch
    c2, c3 = 2 * ngf, ngf

    def leaky(v):
        return jnp.where(v >= 0.0, v, slope * v)

    # Kick off the ConvT2/ConvT3 weight DMAs immediately so they overlap the
    # Linear + ConvT1 stage (single grid step -> no BlockSpec pipelining).
    cp_m2 = pltpu.make_async_copy(m2_hbm_ref, m2_ref, dma_sem.at[0])
    cp_m3 = pltpu.make_async_copy(m3_hbm_ref, m3_ref, dma_sem.at[1])
    cp_m2.start()
    cp_m3.start()

    # Zero only what is never overwritten for p1 (its H-padding rows).  p2/p3
    # interleave dilation zeros with written rows, so a whole-slab zero (a
    # handful of unmasked bf16 vreg stores) is cheaper than 11/16 masked
    # sub-block zeroes.
    p1_ref[pl.ds(0, 2 * B), :] = jnp.zeros((2 * B, HP1), bf16)
    p1_ref[pl.ds(9 * B, 2 * B), :] = jnp.zeros((2 * B, HP1), bf16)
    p2_ref[...] = jnp.zeros_like(p2_ref)
    p3_ref[...] = jnp.zeros_like(p3_ref)

    # ---- Linear(100 -> 7*7*C1, bias=False) + BatchNorm1d + LeakyReLU --------
    # One fused matmul; lanes are (h, w, c) with 256 lanes per h-block.
    xb = x_ref[...].astype(bf16)                                       # (B, nz)
    y = jnp.dot(xb, wlin_ref[...], preferred_element_type=f32)         # (B, 7*256)
    mu = jnp.mean(y, axis=0, keepdims=True)                            # BN1d over batch
    var = jnp.mean((y - mu) * (y - mu), axis=0, keepdims=True)
    y = (y - mu) * jax.lax.rsqrt(var + eps)
    y = leaky(y * g1_ref[...] + b1_ref[...])
    for h in range(7):                                                 # H pad lo = 2
        p1_ref[pl.ds((2 + h) * B, B), :] = y[:, h * HP1:(h + 1) * HP1].astype(bf16)

    # ---- ConvT1: C1->C2, k5, s1, p2 (+ BN2d + LeakyReLU), 7x7 -> 7x7 --------
    # Pure `acc + dot` tap chain (keeps the accumulator in the MRB on v7x).
    acc = jnp.zeros((7 * B, 7 * c2), f32)
    for ki in range(K):
        acc = acc + jnp.dot(p1_ref[pl.ds(ki * B, 7 * B), :], m1_ref[ki],
                            preferred_element_type=f32)
    n1 = float(B * 7 * 7)
    stats = jnp.dot(jnp.concatenate([jnp.sum(acc, axis=0, keepdims=True),
                                     jnp.sum(acc * acc, axis=0, keepdims=True)], axis=0),
                    s1_ref[...], preferred_element_type=f32)           # (2, C2)
    mean = stats[0:1] / n1
    var = jnp.maximum(stats[1:2] / n1 - mean * mean, 0.0)
    scale = g2_ref[...] * jax.lax.rsqrt(var + eps)
    shift = b2_ref[...] - mean * scale
    ss = jnp.dot(jnp.concatenate([scale, shift], axis=0), s1t_ref[...],
                 preferred_element_type=f32)                           # (2, 7*C2)
    act = leaky(acc * ss[0:1, :] + ss[1:2, :])                         # (7B, 7*C2)
    for h in range(7):                                                 # stride-2 H dilation + pad lo 2
        p2_ref[pl.ds((2 + 2 * h) * B, B), :] = act[h * B:(h + 1) * B, :].astype(bf16)

    # ---- ConvT2: C2->C3, k5, s2, p2, op1 (+ BN2d + LeakyReLU), 7x7 -> 14x14 -
    cp_m2.wait()
    acc = jnp.zeros((14 * B, 14 * c3), f32)
    for ki in range(K):
        acc = acc + jnp.dot(p2_ref[pl.ds(ki * B, 14 * B), :], m2_ref[ki],
                            preferred_element_type=f32)
    n2 = float(B * 14 * 14)
    stats = jnp.dot(jnp.concatenate([jnp.sum(acc, axis=0, keepdims=True),
                                     jnp.sum(acc * acc, axis=0, keepdims=True)], axis=0),
                    s2_ref[...], preferred_element_type=f32)           # (2, C3)
    mean = stats[0:1] / n2
    var = jnp.maximum(stats[1:2] / n2 - mean * mean, 0.0)
    scale = g3_ref[...] * jax.lax.rsqrt(var + eps)
    shift = b3_ref[...] - mean * scale
    ss = jnp.dot(jnp.concatenate([scale, shift], axis=0), s2t_ref[...],
                 preferred_element_type=f32)                           # (2, 14*C3)
    act = leaky(acc * ss[0:1, :] + ss[1:2, :])                         # (14B, 14*C3)
    for h in range(14):
        p3_ref[pl.ds((2 + 2 * h) * B, B), :] = act[h * B:(h + 1) * B, :].astype(bf16)

    # ---- ConvT3: C3->nc, k5, s2, p2, op1 + Tanh, 14x14 -> 28x28 -------------
    cp_m3.wait()
    acc = jnp.zeros((28 * B, 28 * nc), f32)
    for ki in range(K):
        acc = acc + jnp.dot(p3_ref[pl.ds(ki * B, 28 * B), :], m3_ref[ki],
                            preferred_element_type=f32)

    # Fold the NCHW transpose into the kernel: rows of `acc` are (oh, b); stage
    # the tanh'd slab and emit per-image (28, 28) blocks with stride-B sublane
    # reads, so the wrapper needs no XLA transpose at all.
    ostage_ref[...] = jnp.tanh(acc)
    for b in range(B):
        out_ref[b] = ostage_ref[pl.ds(b, 28, stride=B), :]


# ---------------------------------------------------------------------------
# Wrapper
# ---------------------------------------------------------------------------
def generator_forward(params, x, *, nc=1, ngf=8):
    # nn.Unflatten(self.nc, ...) in the reference module only makes sense for nc == 1.
    assert nc == 1
    B = x.shape[0]
    c2, c3 = 2 * ngf, ngf

    kern = functools.partial(_dcgan_generator_kernel,
                             batch=B, nc=nc, ngf=ngf, eps=1e-5, slope=0.3)
    vmem = pl.BlockSpec(memory_space=pltpu.MemorySpace.VMEM)
    hbm = pl.BlockSpec(memory_space=pl.ANY)

    out = pl.pallas_call(
        kern,
        out_shape=jax.ShapeDtypeStruct((B, 28, 28 * nc), jnp.float32),
        in_specs=[
            vmem,          # x
            vmem,          # w_lin (fused Linear weights)
            vmem, vmem,    # bn1 gamma / beta
            vmem,          # m1
            vmem, vmem,    # s1, s1t
            vmem, vmem,    # bn2 gamma / beta
            hbm,           # m2 (manually DMA'd, overlapped with Linear+ConvT1)
            vmem, vmem,    # s2, s2t
            vmem, vmem,    # bn3 gamma / beta
            hbm,           # m3 (manually DMA'd, overlapped with ConvT2)
        ],
        out_specs=vmem,
        scratch_shapes=[
            pltpu.VMEM((11 * B, HP1), jnp.bfloat16),          # p1: H-padded linear output
            pltpu.VMEM((18 * B, 7 * c2), jnp.bfloat16),       # p2: H-dilated/padded act1
            pltpu.VMEM((32 * B, 14 * c3), jnp.bfloat16),      # p3: H-dilated/padded act2
            pltpu.VMEM((K, 7 * c2, 14 * c3), jnp.bfloat16),   # m2 VMEM landing buffer
            pltpu.VMEM((K, 14 * c3, 28 * nc), jnp.bfloat16),  # m3 VMEM landing buffer
            pltpu.VMEM((28 * B, 28 * nc), jnp.float32),       # tanh output staging (oh,b)
            pltpu.SemaphoreType.DMA((2,)),                    # m2/m3 DMA semaphores
        ],
    )(x, params["w_lin"], params["bn1_g"], params["bn1_b"],
      params["m1"], params["s1"], params["s1t"], params["bn2_g"], params["bn2_b"],
      params["m2"], params["s2"], params["s2t"], params["bn3_g"], params["bn3_b"],
      params["m3"])

    # (B, 28, 28) -> (B, nc=1, 28, 28): pure metadata reshape, no transpose op.
    return out.reshape(B, nc, 28, 28)


# ---------------------------------------------------------------------------
# Pure-JAX f32 reference (validates the Toeplitz repack / padding conventions)
# ---------------------------------------------------------------------------
def reference_forward(raw, x, *, nc=1, ngf=8, eps=1e-5, slope=0.3):
    c1 = 4 * ngf

    def lrelu(v):
        return jnp.where(v >= 0.0, v, slope * v)

    def convT(h, w_pt, stride, pad, opad):
        # ConvTranspose2d == cross-correlation of the stride-dilated, padded
        # input with the spatially-flipped, channel-swapped kernel.
        wf = jnp.transpose(w_pt[:, :, ::-1, ::-1], (1, 0, 2, 3))   # (Cout,Cin,K,K)
        lo = K - 1 - pad
        hi = K - 1 - pad + opad
        return jax.lax.conv_general_dilated(
            h, wf, window_strides=(1, 1), padding=[(lo, hi), (lo, hi)],
            lhs_dilation=(stride, stride),
            dimension_numbers=("NCHW", "OIHW", "NCHW"))

    def bn2d_lrelu(h, g, b):
        mu = jnp.mean(h, axis=(0, 2, 3), keepdims=True)
        var = jnp.mean((h - mu) ** 2, axis=(0, 2, 3), keepdims=True)
        h = (h - mu) * jax.lax.rsqrt(var + eps)
        h = h * g.reshape(1, -1, 1, 1) + b.reshape(1, -1, 1, 1)
        return lrelu(h)

    y = x @ raw["lin_w"]
    mu = jnp.mean(y, axis=0, keepdims=True)
    var = jnp.mean((y - mu) ** 2, axis=0, keepdims=True)
    y = lrelu((y - mu) * jax.lax.rsqrt(var + eps) * raw["bn1_g"] + raw["bn1_b"])
    y = y.reshape(-1, c1, 7, 7)
    y = bn2d_lrelu(convT(y, raw["ct1_w"], 1, 2, 0), raw["bn2_g"], raw["bn2_b"])
    y = bn2d_lrelu(convT(y, raw["ct2_w"], 2, 2, 1), raw["bn3_g"], raw["bn3_b"])
    return jnp.tanh(convT(y, raw["ct3_w"], 2, 2, 1))


if __name__ == "__main__":
    nc, ngf, nz = 1, 8, 100
    B = 4

    key = jax.random.PRNGKey(0)
    k_param, k_x = jax.random.split(key)
    raw = init_raw_params(k_param, nc=nc, ngf=ngf, nz=nz)
    params = prepare_params(raw, nc=nc, ngf=ngf, nz=nz)   # one-time repack (init)
    x = jax.random.normal(k_x, (B, nz), jnp.float32)      # latent vectors

    fwd = jax.jit(functools.partial(generator_forward, nc=nc, ngf=ngf))
    out = jax.block_until_ready(fwd(params, x))

    assert out.shape == (B, nc, 28, 28), out.shape
    assert out.dtype == jnp.float32
    assert bool(jnp.all(jnp.isfinite(out)))
    assert bool(jnp.all(jnp.abs(out) <= 1.0))             # tanh range

    # Numerical validation against a pure-JAX f32 reference (kernel uses bf16
    # MXU operands with f32 accumulation, so allow a small absolute tolerance).
    ref = jax.block_until_ready(reference_forward(raw, x, nc=nc, ngf=ngf))
    err = float(jnp.max(jnp.abs(out - ref)))
    assert err < 0.1, f"max |kernel - reference| = {err}"

    print("KERNEL_OK")
</pallas_src>

<mosaic_0001>
module attributes {stable_mosaic.version = 11 : i64} {
  func.func @_dcgan_generator_kernel(%arg0: memref<4x100xf32, #tpu.memory_space<vmem>>, %arg1: memref<100x1792xbf16, #tpu.memory_space<vmem>>, %arg2: memref<1x1792xf32, #tpu.memory_space<vmem>>, %arg3: memref<1x1792xf32, #tpu.memory_space<vmem>>, %arg4: memref<5x256x112xbf16, #tpu.memory_space<vmem>>, %arg5: memref<112x16xf32, #tpu.memory_space<vmem>>, %arg6: memref<16x112xf32, #tpu.memory_space<vmem>>, %arg7: memref<1x16xf32, #tpu.memory_space<vmem>>, %arg8: memref<1x16xf32, #tpu.memory_space<vmem>>, %arg9: memref<5x112x112xbf16, #tpu.memory_space<any>>, %arg10: memref<112x8xf32, #tpu.memory_space<vmem>>, %arg11: memref<8x112xf32, #tpu.memory_space<vmem>>, %arg12: memref<1x8xf32, #tpu.memory_space<vmem>>, %arg13: memref<1x8xf32, #tpu.memory_space<vmem>>, %arg14: memref<5x112x28xbf16, #tpu.memory_space<any>>, %arg15: memref<4x28x28xf32, #tpu.memory_space<vmem>>, %arg16: memref<44x256xbf16, #tpu.memory_space<vmem>>, %arg17: memref<72x112xbf16, #tpu.memory_space<vmem>>, %arg18: memref<128x112xbf16, #tpu.memory_space<vmem>>, %arg19: memref<5x112x112xbf16, #tpu.memory_space<vmem>>, %arg20: memref<5x112x28xbf16, #tpu.memory_space<vmem>>, %arg21: memref<112x28xf32, #tpu.memory_space<vmem>>, %arg22: memref<2x!tpu.dma_semaphore, #tpu.memory_space<semaphore_mem>>) attributes {dimension_semantics = [], scalar_prefetch = 0 : i64, scratch_operands = 7 : i64, tpu.core_type = #tpu.core_type<tc>} {
    %c0_i32 = arith.constant 0 : i32
    %0 = tpu.memref_slice %arg22[%c0_i32] : memref<2x!tpu.dma_semaphore, #tpu.memory_space<semaphore_mem>> -> memref<1x!tpu.dma_semaphore, #tpu.memory_space<semaphore_mem>>
    %1 = tpu.memref_squeeze %0 : memref<1x!tpu.dma_semaphore, #tpu.memory_space<semaphore_mem>> -> memref<!tpu.dma_semaphore, #tpu.memory_space<semaphore_mem>>
    tpu.enqueue_dma source(%arg9 : memref<5x112x112xbf16, #tpu.memory_space<any>>) target(%arg19 : memref<5x112x112xbf16, #tpu.memory_space<vmem>>) target_semaphore(%1 : memref<!tpu.dma_semaphore, #tpu.memory_space<semaphore_mem>>)
    %c1_i32 = arith.constant 1 : i32
    %2 = tpu.memref_slice %arg22[%c1_i32] : memref<2x!tpu.dma_semaphore, #tpu.memory_space<semaphore_mem>> -> memref<1x!tpu.dma_semaphore, #tpu.memory_space<semaphore_mem>>
    %3 = tpu.memref_squeeze %2 : memref<1x!tpu.dma_semaphore, #tpu.memory_space<semaphore_mem>> -> memref<!tpu.dma_semaphore, #tpu.memory_space<semaphore_mem>>
    tpu.enqueue_dma source(%arg14 : memref<5x112x28xbf16, #tpu.memory_space<any>>) target(%arg20 : memref<5x112x28xbf16, #tpu.memory_space<vmem>>) target_semaphore(%3 : memref<!tpu.dma_semaphore, #tpu.memory_space<semaphore_mem>>)
    %cst = arith.constant 0.000000e+00 : bf16
    %4 = vector.broadcast %cst : bf16 to vector<8x256xbf16>
    %c0 = arith.constant 0 : index
    %c0_0 = arith.constant 0 : index
    %5 = vector.load %arg16[%c0, %c0_0] : memref<44x256xbf16, #tpu.memory_space<vmem>>, vector<8x256xbf16>
    tpu.vector_store %arg16[%c0, %c0_0], %4 {strides = array<i32>} : memref<44x256xbf16, #tpu.memory_space<vmem>>, vector<8x256xbf16>,
    %cst_1 = arith.constant 0.000000e+00 : bf16
    %6 = vector.broadcast %cst_1 : bf16 to vector<8x256xbf16>
    %c36 = arith.constant 36 : index
    %c0_2 = arith.constant 0 : index
    %7 = vector.load %arg16[%c36, %c0_2] : memref<44x256xbf16, #tpu.memory_space<vmem>>, vector<8x256xbf16>
    tpu.vector_store %arg16[%c36, %c0_2], %6 {strides = array<i32>} : memref<44x256xbf16, #tpu.memory_space<vmem>>, vector<8x256xbf16>,
    %cst_3 = arith.constant 0.000000e+00 : bf16
    %8 = vector.broadcast %cst_3 : bf16 to vector<72x112xbf16>
    %c0_4 = arith.constant 0 : index
    %c0_5 = arith.constant 0 : index
    %9 = vector.load %arg17[%c0_4, %c0_5] : memref<72x112xbf16, #tpu.memory_space<vmem>>, vector<72x112xbf16>
    tpu.vector_store %arg17[%c0_4, %c0_5], %8 {strides = array<i32>} : memref<72x112xbf16, #tpu.memory_space<vmem>>, vector<72x112xbf16>,
    %cst_6 = arith.constant 0.000000e+00 : bf16
    %10 = vector.broadcast %cst_6 : bf16 to vector<128x112xbf16>
    %c0_7 = arith.constant 0 : index
    %c0_8 = arith.constant 0 : index
    %11 = vector.load %arg18[%c0_7, %c0_8] : memref<128x112xbf16, #tpu.memory_space<vmem>>, vector<128x112xbf16>
    tpu.vector_store %arg18[%c0_7, %c0_8], %10 {strides = array<i32>} : memref<128x112xbf16, #tpu.memory_space<vmem>>, vector<128x112xbf16>,
    %c0_9 = arith.constant 0 : index
    %c0_10 = arith.constant 0 : index
    %12 = vector.load %arg0[%c0_9, %c0_10] : memref<4x100xf32, #tpu.memory_space<vmem>>, vector<4x100xf32>
    %13 = arith.truncf %12 : vector<4x100xf32> to vector<4x100xbf16>
    %c0_11 = arith.constant 0 : index
    %c0_12 = arith.constant 0 : index
    %14 = vector.load %arg1[%c0_11, %c0_12] : memref<100x1792xbf16, #tpu.memory_space<vmem>>, vector<100x1792xbf16>
    %cst_13 = arith.constant dense<0.000000e+00> : vector<4x1792xf32>
    %15 = tpu.matmul %13, %14, %cst_13 {dimension_numbers = #tpu.dot_dimension_numbers<[1], [0], [0], [1], [0, 0, 1, 1], [], []>} : vector<4x100xbf16>, vector<100x1792xbf16>, vector<4x1792xf32> -> vector<4x1792xf32>
    %cst_14 = arith.constant dense<0.000000e+00> : vector<1792xf32>
    %16 = vector.multi_reduction <add>, %15, %cst_14 [0] : vector<4x1792xf32> to vector<1792xf32>
    %17 = vector.shape_cast %16 : vector<1792xf32> to vector<1x1792xf32>
    %cst_15 = arith.constant 4.000000e+00 : f32
    %18 = vector.broadcast %cst_15 : f32 to vector<1x1792xf32>
    %19 = arith.divf %17, %18 : vector<1x1792xf32>
    %20 = vector.broadcast %19 : vector<1x1792xf32> to vector<4x1792xf32>
    %21 = arith.subf %15, %20 : vector<4x1792xf32>
    %22 = vector.broadcast %19 : vector<1x1792xf32> to vector<4x1792xf32>
    %23 = arith.subf %15, %22 : vector<4x1792xf32>
    %24 = arith.mulf %21, %23 : vector<4x1792xf32>
    %cst_16 = arith.constant dense<0.000000e+00> : vector<1792xf32>
    %25 = vector.multi_reduction <add>, %24, %cst_16 [0] : vector<4x1792xf32> to vector<1792xf32>
    %26 = vector.shape_cast %25 : vector<1792xf32> to vector<1x1792xf32>
    %cst_17 = arith.constant 4.000000e+00 : f32
    %27 = vector.broadcast %cst_17 : f32 to vector<1x1792xf32>
    %28 = arith.divf %26, %27 : vector<1x1792xf32>
    %29 = vector.broadcast %19 : vector<1x1792xf32> to vector<4x1792xf32>
    %30 = arith.subf %15, %29 : vector<4x1792xf32>
    %cst_18 = arith.constant 9.99999974E-6 : f32
    %31 = vector.broadcast %cst_18 : f32 to vector<1x1792xf32>
    %32 = arith.addf %28, %31 : vector<1x1792xf32>
    %33 = math.rsqrt %32 : vector<1x1792xf32>
    %34 = vector.broadcast %33 : vector<1x1792xf32> to vector<4x1792xf32>
    %35 = arith.mulf %30, %34 : vector<4x1792xf32>
    %c0_19 = arith.constant 0 : index
    %c0_20 = arith.constant 0 : index
    %36 = vector.load %arg2[%c0_19, %c0_20] : memref<1x1792xf32, #tpu.memory_space<vmem>>, vector<1x1792xf32>
    %37 = vector.broadcast %36 : vector<1x1792xf32> to vector<4x1792xf32>
    %38 = arith.mulf %35, %37 : vector<4x1792xf32>
    %c0_21 = arith.constant 0 : index
    %c0_22 = arith.constant 0 : index
    %39 = vector.load %arg3[%c0_21, %c0_22] : memref<1x1792xf32, #tpu.memory_space<vmem>>, vector<1x1792xf32>
    %40 = vector.broadcast %39 : vector<1x1792xf32> to vector<4x1792xf32>
    %41 = arith.addf %38, %40 : vector<4x1792xf32>
    %cst_23 = arith.constant 0.000000e+00 : f32
    %42 = vector.broadcast %cst_23 : f32 to vector<4x1792xf32>
    %43 = arith.cmpf oge, %41, %42 : vector<4x1792xf32>
    %cst_24 = arith.constant 3.000000e-01 : f32
    %44 = vector.broadcast %cst_24 : f32 to vector<4x1792xf32>
    %45 = arith.mulf %44, %41 : vector<4x1792xf32>
    %46 = arith.select %43, %41, %45 : vector<4x1792xi1>, vector<4x1792xf32>
    %47 = vector.extract_strided_slice %46 {offsets = [0, 0], sizes = [4, 256], strides = [1, 1]} : vector<4x1792xf32> to vector<4x256xf32>
    %48 = arith.truncf %47 : vector<4x256xf32> to vector<4x256xbf16>
    %c8 = arith.constant 8 : index
    %c0_25 = arith.constant 0 : index
    %49 = vector.load %arg16[%c8, %c0_25] : memref<44x256xbf16, #tpu.memory_space<vmem>>, vector<4x256xbf16>
    tpu.vector_store %arg16[%c8, %c0_25], %48 {strides = array<i32>} : memref<44x256xbf16, #tpu.memory_space<vmem>>, vector<4x256xbf16>,
    %50 = vector.extract_strided_slice %46 {offsets = [0, 256], sizes = [4, 256], strides = [1, 1]} : vector<4x1792xf32> to vector<4x256xf32>
    %51 = arith.truncf %50 : vector<4x256xf32> to vector<4x256xbf16>
    %c12 = arith.constant 12 : index
    %c0_26 = arith.constant 0 : index
    %52 = vector.load %arg16[%c12, %c0_26] : memref<44x256xbf16, #tpu.memory_space<vmem>>, vector<4x256xbf16>
    tpu.vector_store %arg16[%c12, %c0_26], %51 {strides = array<i32>} : memref<44x256xbf16, #tpu.memory_space<vmem>>, vector<4x256xbf16>,
    %53 = vector.extract_strided_slice %46 {offsets = [0, 512], sizes = [4, 256], strides = [1, 1]} : vector<4x1792xf32> to vector<4x256xf32>
    %54 = arith.truncf %53 : vector<4x256xf32> to vector<4x256xbf16>
    %c16 = arith.constant 16 : index
    %c0_27 = arith.constant 0 : index
    %55 = vector.load %arg16[%c16, %c0_27] : memref<44x256xbf16, #tpu.memory_space<vmem>>, vector<4x256xbf16>
    tpu.vector_store %arg16[%c16, %c0_27], %54 {strides = array<i32>} : memref<44x256xbf16, #tpu.memory_space<vmem>>, vector<4x256xbf16>,
    %56 = vector.extract_strided_slice %46 {offsets = [0, 768], sizes = [4, 256], strides = [1, 1]} : vector<4x1792xf32> to vector<4x256xf32>
    %57 = arith.truncf %56 : vector<4x256xf32> to vector<4x256xbf16>
    %c20 = arith.constant 20 : index
    %c0_28 = arith.constant 0 : index
    %58 = vector.load %arg16[%c20, %c0_28] : memref<44x256xbf16, #tpu.memory_space<vmem>>, vector<4x256xbf16>
    tpu.vector_store %arg16[%c20, %c0_28], %57 {strides = array<i32>} : memref<44x256xbf16, #tpu.memory_space<vmem>>, vector<4x256xbf16>,
    %59 = vector.extract_strided_slice %46 {offsets = [0, 1024], sizes = [4, 256], strides = [1, 1]} : vector<4x1792xf32> to vector<4x256xf32>
    %60 = arith.truncf %59 : vector<4x256xf32> to vector<4x256xbf16>
    %c24 = arith.constant 24 : index
    %c0_29 = arith.constant 0 : index
    %61 = vector.load %arg16[%c24, %c0_29] : memref<44x256xbf16, #tpu.memory_space<vmem>>, vector<4x256xbf16>
    tpu.vector_store %arg16[%c24, %c0_29], %60 {strides = array<i32>} : memref<44x256xbf16, #tpu.memory_space<vmem>>, vector<4x256xbf16>,
    %62 = vector.extract_strided_slice %46 {offsets = [0, 1280], sizes = [4, 256], strides = [1, 1]} : vector<4x1792xf32> to vector<4x256xf32>
    %63 = arith.truncf %62 : vector<4x256xf32> to vector<4x256xbf16>
    %c28 = arith.constant 28 : index
    %c0_30 = arith.constant 0 : index
    %64 = vector.load %arg16[%c28, %c0_30] : memref<44x256xbf16, #tpu.memory_space<vmem>>, vector<4x256xbf16>
    tpu.vector_store %arg16[%c28, %c0_30], %63 {strides = array<i32>} : memref<44x256xbf16, #tpu.memory_space<vmem>>, vector<4x256xbf16>,
    %65 = vector.extract_strided_slice %46 {offsets = [0, 1536], sizes = [4, 256], strides = [1, 1]} : vector<4x1792xf32> to vector<4x256xf32>
    %66 = arith.truncf %65 : vector<4x256xf32> to vector<4x256xbf16>
    %c32 = arith.constant 32 : index
    %c0_31 = arith.constant 0 : index
    %67 = vector.load %arg16[%c32, %c0_31] : memref<44x256xbf16, #tpu.memory_space<vmem>>, vector<4x256xbf16>
    tpu.vector_store %arg16[%c32, %c0_31], %66 {strides = array<i32>} : memref<44x256xbf16, #tpu.memory_space<vmem>>, vector<4x256xbf16>,
    %cst_32 = arith.constant 0.000000e+00 : f32
    %68 = vector.broadcast %cst_32 : f32 to vector<28x112xf32>
    %c0_33 = arith.constant 0 : index
    %c0_34 = arith.constant 0 : index
    %69 = vector.load %arg16[%c0_33, %c0_34] : memref<44x256xbf16, #tpu.memory_space<vmem>>, vector<28x256xbf16>
    %c0_35 = arith.constant 0 : index
    %c0_36 = arith.constant 0 : index
    %c0_37 = arith.constant 0 : index
    %70 = vector.load %arg4[%c0_35, %c0_36, %c0_37] : memref<5x256x112xbf16, #tpu.memory_space<vmem>>, vector<1x256x112xbf16>
    %71 = vector.shape_cast %70 : vector<1x256x112xbf16> to vector<256x112xbf16>
    %cst_38 = arith.constant dense<0.000000e+00> : vector<28x112xf32>
    %72 = tpu.matmul %69, %71, %cst_38 {dimension_numbers = #tpu.dot_dimension_numbers<[1], [0], [0], [1], [0, 0, 1, 1], [], []>} : vector<28x256xbf16>, vector<256x112xbf16>, vector<28x112xf32> -> vector<28x112xf32>
    %73 = arith.addf %68, %72 : vector<28x112xf32>
    %c4 = arith.constant 4 : index
    %c0_39 = arith.constant 0 : index
    %74 = vector.load %arg16[%c4, %c0_39] : memref<44x256xbf16, #tpu.memory_space<vmem>>, vector<28x256xbf16>
    %c1 = arith.constant 1 : index
    %c0_40 = arith.constant 0 : index
    %c0_41 = arith.constant 0 : index
    %75 = vector.load %arg4[%c1, %c0_40, %c0_41] : memref<5x256x112xbf16, #tpu.memory_space<vmem>>, vector<1x256x112xbf16>
    %76 = vector.shape_cast %75 : vector<1x256x112xbf16> to vector<256x112xbf16>
    %cst_42 = arith.constant dense<0.000000e+00> : vector<28x112xf32>
    %77 = tpu.matmul %74, %76, %cst_42 {dimension_numbers = #tpu.dot_dimension_numbers<[1], [0], [0], [1], [0, 0, 1, 1], [], []>} : vector<28x256xbf16>, vector<256x112xbf16>, vector<28x112xf32> -> vector<28x112xf32>
    %78 = arith.addf %73, %77 : vector<28x112xf32>
    %c8_43 = arith.constant 8 : index
    %c0_44 = arith.constant 0 : index
    %79 = vector.load %arg16[%c8_43, %c0_44] : memref<44x256xbf16, #tpu.memory_space<vmem>>, vector<28x256xbf16>
    %c2 = arith.constant 2 : index
    %c0_45 = arith.constant 0 : index
    %c0_46 = arith.constant 0 : index
    %80 = vector.load %arg4[%c2, %c0_45, %c0_46] : memref<5x256x112xbf16, #tpu.memory_space<vmem>>, vector<1x256x112xbf16>
    %81 = vector.shape_cast %80 : vector<1x256x112xbf16> to vector<256x112xbf16>
    %cst_47 = arith.constant dense<0.000000e+00> : vector<28x112xf32>
    %82 = tpu.matmul %79, %81, %cst_47 {dimension_numbers = #tpu.dot_dimension_numbers<[1], [0], [0], [1], [0, 0, 1, 1], [], []>} : vector<28x256xbf16>, vector<256x112xbf16>, vector<28x112xf32> -> vector<28x112xf32>
    %83 = arith.addf %78, %82 : vector<28x112xf32>
    %c12_48 = arith.constant 12 : index
    %c0_49 = arith.constant 0 : index
    %84 = vector.load %arg16[%c12_48, %c0_49] : memref<44x256xbf16, #tpu.memory_space<vmem>>, vector<28x256xbf16>
    %c3 = arith.constant 3 : index
    %c0_50 = arith.constant 0 : index
    %c0_51 = arith.constant 0 : index
    %85 = vector.load %arg4[%c3, %c0_50, %c0_51] : memref<5x256x112xbf16, #tpu.memory_space<vmem>>, vector<1x256x112xbf16>
    %86 = vector.shape_cast %85 : vector<1x256x112xbf16> to vector<256x112xbf16>
    %cst_52 = arith.constant dense<0.000000e+00> : vector<28x112xf32>
    %87 = tpu.matmul %84, %86, %cst_52 {dimension_numbers = #tpu.dot_dimension_numbers<[1], [0], [0], [1], [0, 0, 1, 1], [], []>} : vector<28x256xbf16>, vector<256x112xbf16>, vector<28x112xf32> -> vector<28x112xf32>
    %88 = arith.addf %83, %87 : vector<28x112xf32>
    %c16_53 = arith.constant 16 : index
    %c0_54 = arith.constant 0 : index
    %89 = vector.load %arg16[%c16_53, %c0_54] : memref<44x256xbf16, #tpu.memory_space<vmem>>, vector<28x256xbf16>
    %c4_55 = arith.constant 4 : index
    %c0_56 = arith.constant 0 : index
    %c0_57 = arith.constant 0 : index
    %90 = vector.load %arg4[%c4_55, %c0_56, %c0_57] : memref<5x256x112xbf16, #tpu.memory_space<vmem>>, vector<1x256x112xbf16>
    %91 = vector.shape_cast %90 : vector<1x256x112xbf16> to vector<256x112xbf16>
    %cst_58 = arith.constant dense<0.000000e+00> : vector<28x112xf32>
    %92 = tpu.matmul %89, %91, %cst_58 {dimension_numbers = #tpu.dot_dimension_numbers<[1], [0], [0], [1], [0, 0, 1, 1], [], []>} : vector<28x256xbf16>, vector<256x112xbf16>, vector<28x112xf32> -> vector<28x112xf32>
    %93 = arith.addf %88, %92 : vector<28x112xf32>
    %cst_59 = arith.constant dense<0.000000e+00> : vector<112xf32>
    %94 = vector.multi_reduction <add>, %93, %cst_59 [0] : vector<28x112xf32> to vector<112xf32>
    %95 = vector.shape_cast %94 : vector<112xf32> to vector<1x112xf32>
    %96 = arith.mulf %93, %93 : vector<28x112xf32>
    %cst_60 = arith.constant dense<0.000000e+00> : vector<112xf32>
    %97 = vector.multi_reduction <add>, %96, %cst_60 [0] : vector<28x112xf32> to vector<112xf32>
    %98 = vector.shape_cast %97 : vector<112xf32> to vector<1x112xf32>
    %99 = tpu.concatenate %95, %98 in 0 : vector<1x112xf32>, vector<1x112xf32> -> vector<2x112xf32>
    %c0_61 = arith.constant 0 : index
    %c0_62 = arith.constant 0 : index
    %100 = vector.load %arg5[%c0_61, %c0_62] : memref<112x16xf32, #tpu.memory_space<vmem>>, vector<112x16xf32>
    %cst_63 = arith.constant dense<0.000000e+00> : vector<2x16xf32>
    %101 = tpu.matmul %99, %100, %cst_63 {dimension_numbers = #tpu.dot_dimension_numbers<[1], [0], [0], [1], [0, 0, 1, 1], [], []>} : vector<2x112xf32>, vector<112x16xf32>, vector<2x16xf32> -> vector<2x16xf32>
    %102 = vector.extract_strided_slice %101 {offsets = [0, 0], sizes = [1, 16], strides = [1, 1]} : vector<2x16xf32> to vector<1x16xf32>
    %cst_64 = arith.constant 1.960000e+02 : f32
    %103 = vector.broadcast %cst_64 : f32 to vector<1x16xf32>
    %104 = arith.divf %102, %103 : vector<1x16xf32>
    %105 = vector.extract_strided_slice %101 {offsets = [1, 0], sizes = [1, 16], strides = [1, 1]} : vector<2x16xf32> to vector<1x16xf32>
    %cst_65 = arith.constant 1.960000e+02 : f32
    %106 = vector.broadcast %cst_65 : f32 to vector<1x16xf32>
    %107 = arith.divf %105, %106 : vector<1x16xf32>
    %108 = arith.mulf %104, %104 : vector<1x16xf32>
    %109 = arith.subf %107, %108 : vector<1x16xf32>
    %cst_66 = arith.constant 0.000000e+00 : f32
    %110 = vector.broadcast %cst_66 : f32 to vector<1x16xf32>
    %111 = arith.maximumf %109, %110 : vector<1x16xf32>
    %c0_67 = arith.constant 0 : index
    %c0_68 = arith.constant 0 : index
    %112 = vector.load %arg7[%c0_67, %c0_68] : memref<1x16xf32, #tpu.memory_space<vmem>>, vector<1x16xf32>
    %cst_69 = arith.constant 9.99999974E-6 : f32
    %113 = vector.broadcast %cst_69 : f32 to vector<1x16xf32>
    %114 = arith.addf %111, %113 : vector<1x16xf32>
    %115 = math.rsqrt %114 : vector<1x16xf32>
    %116 = arith.mulf %112, %115 : vector<1x16xf32>
    %c0_70 = arith.constant 0 : index
    %c0_71 = arith.constant 0 : index
    %117 = vector.load %arg8[%c0_70, %c0_71] : memref<1x16xf32, #tpu.memory_space<vmem>>, vector<1x16xf32>
    %118 = arith.mulf %104, %116 : vector<1x16xf32>
    %119 = arith.subf %117, %118 : vector<1x16xf32>
    %120 = tpu.concatenate %116, %119 in 0 : vector<1x16xf32>, vector<1x16xf32> -> vector<2x16xf32>
    %c0_72 = arith.constant 0 : index
    %c0_73 = arith.constant 0 : index
    %121 = vector.load %arg6[%c0_72, %c0_73] : memref<16x112xf32, #tpu.memory_space<vmem>>, vector<16x112xf32>
    %cst_74 = arith.constant dense<0.000000e+00> : vector<2x112xf32>
    %122 = tpu.matmul %120, %121, %cst_74 {dimension_numbers = #tpu.dot_dimension_numbers<[1], [0], [0], [1], [0, 0, 1, 1], [], []>} : vector<2x16xf32>, vector<16x112xf32>, vector<2x112xf32> -> vector<2x112xf32>
    %123 = vector.extract_strided_slice %122 {offsets = [0, 0], sizes = [1, 112], strides = [1, 1]} : vector<2x112xf32> to vector<1x112xf32>
    %124 = vector.broadcast %123 : vector<1x112xf32> to vector<28x112xf32>
    %125 = arith.mulf %93, %124 : vector<28x112xf32>
    %126 = vector.extract_strided_slice %122 {offsets = [1, 0], sizes = [1, 112], strides = [1, 1]} : vector<2x112xf32> to vector<1x112xf32>
    %127 = vector.broadcast %126 : vector<1x112xf32> to vector<28x112xf32>
    %128 = arith.addf %125, %127 : vector<28x112xf32>
    %cst_75 = arith.constant 0.000000e+00 : f32
    %129 = vector.broadcast %cst_75 : f32 to vector<28x112xf32>
    %130 = arith.cmpf oge, %128, %129 : vector<28x112xf32>
    %cst_76 = arith.constant 3.000000e-01 : f32
    %131 = vector.broadcast %cst_76 : f32 to vector<28x112xf32>
    %132 = arith.mulf %131, %128 : vector<28x112xf32>
    %133 = arith.select %130, %128, %132 : vector<28x112xi1>, vector<28x112xf32>
    %134 = vector.extract_strided_slice %133 {offsets = [0, 0], sizes = [4, 112], strides = [1, 1]} : vector<28x112xf32> to vector<4x112xf32>
    %135 = arith.truncf %134 : vector<4x112xf32> to vector<4x112xbf16>
    %c8_77 = arith.constant 8 : index
    %c0_78 = arith.constant 0 : index
    %136 = vector.load %arg17[%c8_77, %c0_78] : memref<72x112xbf16, #tpu.memory_space<vmem>>, vector<4x112xbf16>
    tpu.vector_store %arg17[%c8_77, %c0_78], %135 {strides = array<i32>} : memref<72x112xbf16, #tpu.memory_space<vmem>>, vector<4x112xbf16>,
    %137 = vector.extract_strided_slice %133 {offsets = [4, 0], sizes = [4, 112], strides = [1, 1]} : vector<28x112xf32> to vector<4x112xf32>
    %138 = arith.truncf %137 : vector<4x112xf32> to vector<4x112xbf16>
    %c16_79 = arith.constant 16 : index
    %c0_80 = arith.constant 0 : index
    %139 = vector.load %arg17[%c16_79, %c0_80] : memref<72x112xbf16, #tpu.memory_space<vmem>>, vector<4x112xbf16>
    tpu.vector_store %arg17[%c16_79, %c0_80], %138 {strides = array<i32>} : memref<72x112xbf16, #tpu.memory_space<vmem>>, vector<4x112xbf16>,
    %140 = vector.extract_strided_slice %133 {offsets = [8, 0], sizes = [4, 112], strides = [1, 1]} : vector<28x112xf32> to vector<4x112xf32>
    %141 = arith.truncf %140 : vector<4x112xf32> to vector<4x112xbf16>
    %c24_81 = arith.constant 24 : index
    %c0_82 = arith.constant 0 : index
    %142 = vector.load %arg17[%c24_81, %c0_82] : memref<72x112xbf16, #tpu.memory_space<vmem>>, vector<4x112xbf16>
    tpu.vector_store %arg17[%c24_81, %c0_82], %141 {strides = array<i32>} : memref<72x112xbf16, #tpu.memory_space<vmem>>, vector<4x112xbf16>,
    %143 = vector.extract_strided_slice %133 {offsets = [12, 0], sizes = [4, 112], strides = [1, 1]} : vector<28x112xf32> to vector<4x112xf32>
    %144 = arith.truncf %143 : vector<4x112xf32> to vector<4x112xbf16>
    %c32_83 = arith.constant 32 : index
    %c0_84 = arith.constant 0 : index
    %145 = vector.load %arg17[%c32_83, %c0_84] : memref<72x112xbf16, #tpu.memory_space<vmem>>, vector<4x112xbf16>
    tpu.vector_store %arg17[%c32_83, %c0_84], %144 {strides = array<i32>} : memref<72x112xbf16, #tpu.memory_space<vmem>>, vector<4x112xbf16>,
    %146 = vector.extract_strided_slice %133 {offsets = [16, 0], sizes = [4, 112], strides = [1, 1]} : vector<28x112xf32> to vector<4x112xf32>
    %147 = arith.truncf %146 : vector<4x112xf32> to vector<4x112xbf16>
    %c40 = arith.constant 40 : index
    %c0_85 = arith.constant 0 : index
    %148 = vector.load %arg17[%c40, %c0_85] : memref<72x112xbf16, #tpu.memory_space<vmem>>, vector<4x112xbf16>
    tpu.vector_store %arg17[%c40, %c0_85], %147 {strides = array<i32>} : memref<72x112xbf16, #tpu.memory_space<vmem>>, vector<4x112xbf16>,
    %149 = vector.extract_strided_slice %133 {offsets = [20, 0], sizes = [4, 112], strides = [1, 1]} : vector<28x112xf32> to vector<4x112xf32>
    %150 = arith.truncf %149 : vector<4x112xf32> to vector<4x112xbf16>
    %c48 = arith.constant 48 : index
    %c0_86 = arith.constant 0 : index
    %151 = vector.load %arg17[%c48, %c0_86] : memref<72x112xbf16, #tpu.memory_space<vmem>>, vector<4x112xbf16>
    tpu.vector_store %arg17[%c48, %c0_86], %150 {strides = array<i32>} : memref<72x112xbf16, #tpu.memory_space<vmem>>, vector<4x112xbf16>,
    %152 = vector.extract_strided_slice %133 {offsets = [24, 0], sizes = [4, 112], strides = [1, 1]} : vector<28x112xf32> to vector<4x112xf32>
    %153 = arith.truncf %152 : vector<4x112xf32> to vector<4x112xbf16>
    %c56 = arith.constant 56 : index
    %c0_87 = arith.constant 0 : index
    %154 = vector.load %arg17[%c56, %c0_87] : memref<72x112xbf16, #tpu.memory_space<vmem>>, vector<4x112xbf16>
    tpu.vector_store %arg17[%c56, %c0_87], %153 {strides = array<i32>} : memref<72x112xbf16, #tpu.memory_space<vmem>>, vector<4x112xbf16>,
    %c0_i32_88 = arith.constant 0 : i32
    %155 = tpu.memref_slice %arg22[%c0_i32_88] : memref<2x!tpu.dma_semaphore, #tpu.memory_space<semaphore_mem>> -> memref<1x!tpu.dma_semaphore, #tpu.memory_space<semaphore_mem>>
    %156 = tpu.memref_squeeze %155 : memref<1x!tpu.dma_semaphore, #tpu.memory_space<semaphore_mem>> -> memref<!tpu.dma_semaphore, #tpu.memory_space<semaphore_mem>>
    tpu.wait_dma2 semaphore(%156 : memref<!tpu.dma_semaphore, #tpu.memory_space<semaphore_mem>>) src(%arg9 : memref<5x112x112xbf16, #tpu.memory_space<any>>) dst(%arg19 : memref<5x112x112xbf16, #tpu.memory_space<vmem>>)
    %cst_89 = arith.constant 0.000000e+00 : f32
    %157 = vector.broadcast %cst_89 : f32 to vector<56x112xf32>
    %c0_90 = arith.constant 0 : index
    %c0_91 = arith.constant 0 : index
    %158 = vector.load %arg17[%c0_90, %c0_91] : memref<72x112xbf16, #tpu.memory_space<vmem>>, vector<56x112xbf16>
    %c0_92 = arith.constant 0 : index
    %c0_93 = arith.constant 0 : index
    %c0_94 = arith.constant 0 : index
    %159 = vector.load %arg19[%c0_92, %c0_93, %c0_94] : memref<5x112x112xbf16, #tpu.memory_space<vmem>>, vector<1x112x112xbf16>
    %160 = vector.shape_cast %159 : vector<1x112x112xbf16> to vector<112x112xbf16>
    %cst_95 = arith.constant dense<0.000000e+00> : vector<56x112xf32>
    %161 = tpu.matmul %158, %160, %cst_95 {dimension_numbers = #tpu.dot_dimension_numbers<[1], [0], [0], [1], [0, 0, 1, 1], [], []>} : vector<56x112xbf16>, vector<112x112xbf16>, vector<56x112xf32> -> vector<56x112xf32>
    %162 = arith.addf %157, %161 : vector<56x112xf32>
    %c4_96 = arith.constant 4 : index
    %c0_97 = arith.constant 0 : index
    %163 = vector.load %arg17[%c4_96, %c0_97] : memref<72x112xbf16, #tpu.memory_space<vmem>>, vector<56x112xbf16>
    %c1_98 = arith.constant 1 : index
    %c0_99 = arith.constant 0 : index
    %c0_100 = arith.constant 0 : index
    %164 = vector.load %arg19[%c1_98, %c0_99, %c0_100] : memref<5x112x112xbf16, #tpu.memory_space<vmem>>, vector<1x112x112xbf16>
    %165 = vector.shape_cast %164 : vector<1x112x112xbf16> to vector<112x112xbf16>
    %cst_101 = arith.constant dense<0.000000e+00> : vector<56x112xf32>
    %166 = tpu.matmul %163, %165, %cst_101 {dimension_numbers = #tpu.dot_dimension_numbers<[1], [0], [0], [1], [0, 0, 1, 1], [], []>} : vector<56x112xbf16>, vector<112x112xbf16>, vector<56x112xf32> -> vector<56x112xf32>
    %167 = arith.addf %162, %166 : vector<56x112xf32>
    %c8_102 = arith.constant 8 : index
    %c0_103 = arith.constant 0 : index
    %168 = vector.load %arg17[%c8_102, %c0_103] : memref<72x112xbf16, #tpu.memory_space<vmem>>, vector<56x112xbf16>
    %c2_104 = arith.constant 2 : index
    %c0_105 = arith.constant 0 : index
    %c0_106 = arith.constant 0 : index
    %169 = vector.load %arg19[%c2_104, %c0_105, %c0_106] : memref<5x112x112xbf16, #tpu.memory_space<vmem>>, vector<1x112x112xbf16>
    %170 = vector.shape_cast %169 : vector<1x112x112xbf16> to vector<112x112xbf16>
    %cst_107 = arith.constant dense<0.000000e+00> : vector<56x112xf32>
    %171 = tpu.matmul %168, %170, %cst_107 {dimension_numbers = #tpu.dot_dimension_numbers<[1], [0], [0], [1], [0, 0, 1, 1], [], []>} : vector<56x112xbf16>, vector<112x112xbf16>, vector<56x112xf32> -> vector<56x112xf32>
    %172 = arith.addf %167, %171 : vector<56x112xf32>
    %c12_108 = arith.constant 12 : index
    %c0_109 = arith.constant 0 : index
    %173 = vector.load %arg17[%c12_108, %c0_109] : memref<72x112xbf16, #tpu.memory_space<vmem>>, vector<56x112xbf16>
    %c3_110 = arith.constant 3 : index
    %c0_111 = arith.constant 0 : index
    %c0_112 = arith.constant 0 : index
    %174 = vector.load %arg19[%c3_110, %c0_111, %c0_112] : memref<5x112x112xbf16, #tpu.memory_space<vmem>>, vector<1x112x112xbf16>
    %175 = vector.shape_cast %174 : vector<1x112x112xbf16> to vector<112x112xbf16>
    %cst_113 = arith.constant dense<0.000000e+00> : vector<56x112xf32>
    %176 = tpu.matmul %173, %175, %cst_113 {dimension_numbers = #tpu.dot_dimension_numbers<[1], [0], [0], [1], [0, 0, 1, 1], [], []>} : vector<56x112xbf16>, vector<112x112xbf16>, vector<56x112xf32> -> vector<56x112xf32>
    %177 = arith.addf %172, %176 : vector<56x112xf32>
    %c16_114 = arith.constant 16 : index
    %c0_115 = arith.constant 0 : index
    %178 = vector.load %arg17[%c16_114, %c0_115] : memref<72x112xbf16, #tpu.memory_space<vmem>>, vector<56x112xbf16>
    %c4_116 = arith.constant 4 : index
    %c0_117 = arith.constant 0 : index
    %c0_118 = arith.constant 0 : index
    %179 = vector.load %arg19[%c4_116, %c0_117, %c0_118] : memref<5x112x112xbf16, #tpu.memory_space<vmem>>, vector<1x112x112xbf16>
    %180 = vector.shape_cast %179 : vector<1x112x112xbf16> to vector<112x112xbf16>
    %cst_119 = arith.constant dense<0.000000e+00> : vector<56x112xf32>
    %181 = tpu.matmul %178, %180, %cst_119 {dimension_numbers = #tpu.dot_dimension_numbers<[1], [0], [0], [1], [0, 0, 1, 1], [], []>} : vector<56x112xbf16>, vector<112x112xbf16>, vector<56x112xf32> -> vector<56x112xf32>
    %182 = arith.addf %177, %181 : vector<56x112xf32>
    %cst_120 = arith.constant dense<0.000000e+00> : vector<112xf32>
    %183 = vector.multi_reduction <add>, %182, %cst_120 [0] : vector<56x112xf32> to vector<112xf32>
    %184 = vector.shape_cast %183 : vector<112xf32> to vector<1x112xf32>
    %185 = arith.mulf %182, %182 : vector<56x112xf32>
    %cst_121 = arith.constant dense<0.000000e+00> : vector<112xf32>
    %186 = vector.multi_reduction <add>, %185, %cst_121 [0] : vector<56x112xf32> to vector<112xf32>
    %187 = vector.shape_cast %186 : vector<112xf32> to vector<1x112xf32>
    %188 = tpu.concatenate %184, %187 in 0 : vector<1x112xf32>, vector<1x112xf32> -> vector<2x112xf32>
    %c0_122 = arith.constant 0 : index
    %c0_123 = arith.constant 0 : index
    %189 = vector.load %arg10[%c0_122, %c0_123] : memref<112x8xf32, #tpu.memory_space<vmem>>, vector<112x8xf32>
    %cst_124 = arith.constant dense<0.000000e+00> : vector<2x8xf32>
    %190 = tpu.matmul %188, %189, %cst_124 {dimension_numbers = #tpu.dot_dimension_numbers<[1], [0], [0], [1], [0, 0, 1, 1], [], []>} : vector<2x112xf32>, vector<112x8xf32>, vector<2x8xf32> -> vector<2x8xf32>
    %191 = vector.extract_strided_slice %190 {offsets = [0, 0], sizes = [1, 8], strides = [1, 1]} : vector<2x8xf32> to vector<1x8xf32>
    %cst_125 = arith.constant 7.840000e+02 : f32
    %192 = vector.broadcast %cst_125 : f32 to vector<1x8xf32>
    %193 = arith.divf %191, %192 : vector<1x8xf32>
    %194 = vector.extract_strided_slice %190 {offsets = [1, 0], sizes = [1, 8], strides = [1, 1]} : vector<2x8xf32> to vector<1x8xf32>
    %cst_126 = arith.constant 7.840000e+02 : f32
    %195 = vector.broadcast %cst_126 : f32 to vector<1x8xf32>
    %196 = arith.divf %194, %195 : vector<1x8xf32>
    %197 = arith.mulf %193, %193 : vector<1x8xf32>
    %198 = arith.subf %196, %197 : vector<1x8xf32>
    %cst_127 = arith.constant 0.000000e+00 : f32
    %199 = vector.broadcast %cst_127 : f32 to vector<1x8xf32>
    %200 = arith.maximumf %198, %199 : vector<1x8xf32>
    %c0_128 = arith.constant 0 : index
    %c0_129 = arith.constant 0 : index
    %201 = vector.load %arg12[%c0_128, %c0_129] : memref<1x8xf32, #tpu.memory_space<vmem>>, vector<1x8xf32>
    %cst_130 = arith.constant 9.99999974E-6 : f32
    %202 = vector.broadcast %cst_130 : f32 to vector<1x8xf32>
    %203 = arith.addf %200, %202 : vector<1x8xf32>
    %204 = math.rsqrt %203 : vector<1x8xf32>
    %205 = arith.mulf %201, %204 : vector<1x8xf32>
    %c0_131 = arith.constant 0 : index
    %c0_132 = arith.constant 0 : index
    %206 = vector.load %arg13[%c0_131, %c0_132] : memref<1x8xf32, #tpu.memory_space<vmem>>, vector<1x8xf32>
    %207 = arith.mulf %193, %205 : vector<1x8xf32>
    %208 = arith.subf %206, %207 : vector<1x8xf32>
    %209 = tpu.concatenate %205, %208 in 0 : vector<1x8xf32>, vector<1x8xf32> -> vector<2x8xf32>
    %c0_133 = arith.constant 0 : index
    %c0_134 = arith.constant 0 : index
    %210 = vector.load %arg11[%c0_133, %c0_134] : memref<8x112xf32, #tpu.memory_space<vmem>>, vector<8x112xf32>
    %cst_135 = arith.constant dense<0.000000e+00> : vector<2x112xf32>
    %211 = tpu.matmul %209, %210, %cst_135 {dimension_numbers = #tpu.dot_dimension_numbers<[1], [0], [0], [1], [0, 0, 1, 1], [], []>} : vector<2x8xf32>, vector<8x112xf32>, vector<2x112xf32> -> vector<2x112xf32>
    %212 = vector.extract_strided_slice %211 {offsets = [0, 0], sizes = [1, 112], strides = [1, 1]} : vector<2x112xf32> to vector<1x112xf32>
    %213 = vector.broadcast %212 : vector<1x112xf32> to vector<56x112xf32>
    %214 = arith.mulf %182, %213 : vector<56x112xf32>
    %215 = vector.extract_strided_slice %211 {offsets = [1, 0], sizes = [1, 112], strides = [1, 1]} : vector<2x112xf32> to vector<1x112xf32>
    %216 = vector.broadcast %215 : vector<1x112xf32> to vector<56x112xf32>
    %217 = arith.addf %214, %216 : vector<56x112xf32>
    %cst_136 = arith.constant 0.000000e+00 : f32
    %218 = vector.broadcast %cst_136 : f32 to vector<56x112xf32>
    %219 = arith.cmpf oge, %217, %218 : vector<56x112xf32>
    %cst_137 = arith.constant 3.000000e-01 : f32
    %220 = vector.broadcast %cst_137 : f32 to vector<56x112xf32>
    %221 = arith.mulf %220, %217 : vector<56x112xf32>
    %222 = arith.select %219, %217, %221 : vector<56x112xi1>, vector<56x112xf32>
    %223 = vector.extract_strided_slice %222 {offsets = [0, 0], sizes = [4, 112], strides = [1, 1]} : vector<56x112xf32> to vector<4x112xf32>
    %224 = arith.truncf %223 : vector<4x112xf32> to vector<4x112xbf16>
    %c8_138 = arith.constant 8 : index
    %c0_139 = arith.constant 0 : index
    %225 = vector.load %arg18[%c8_138, %c0_139] : memref<128x112xbf16, #tpu.memory_space<vmem>>, vector<4x112xbf16>
    tpu.vector_store %arg18[%c8_138, %c0_139], %224 {strides = array<i32>} : memref<128x112xbf16, #tpu.memory_space<vmem>>, vector<4x112xbf16>,
    %226 = vector.extract_strided_slice %222 {offsets = [4, 0], sizes = [4, 112], strides = [1, 1]} : vector<56x112xf32> to vector<4x112xf32>
    %227 = arith.truncf %226 : vector<4x112xf32> to vector<4x112xbf16>
    %c16_140 = arith.constant 16 : index
    %c0_141 = arith.constant 0 : index
    %228 = vector.load %arg18[%c16_140, %c0_141] : memref<128x112xbf16, #tpu.memory_space<vmem>>, vector<4x112xbf16>
    tpu.vector_store %arg18[%c16_140, %c0_141], %227 {strides = array<i32>} : memref<128x112xbf16, #tpu.memory_space<vmem>>, vector<4x112xbf16>,
    %229 = vector.extract_strided_slice %222 {offsets = [8, 0], sizes = [4, 112], strides = [1, 1]} : vector<56x112xf32> to vector<4x112xf32>
    %230 = arith.truncf %229 : vector<4x112xf32> to vector<4x112xbf16>
    %c24_142 = arith.constant 24 : index
    %c0_143 = arith.constant 0 : index
    %231 = vector.load %arg18[%c24_142, %c0_143] : memref<128x112xbf16, #tpu.memory_space<vmem>>, vector<4x112xbf16>
    tpu.vector_store %arg18[%c24_142, %c0_143], %230 {strides = array<i32>} : memref<128x112xbf16, #tpu.memory_space<vmem>>, vector<4x112xbf16>,
    %232 = vector.extract_strided_slice %222 {offsets = [12, 0], sizes = [4, 112], strides = [1, 1]} : vector<56x112xf32> to vector<4x112xf32>
    %233 = arith.truncf %232 : vector<4x112xf32> to vector<4x112xbf16>
    %c32_144 = arith.constant 32 : index
    %c0_145 = arith.constant 0 : index
    %234 = vector.load %arg18[%c32_144, %c0_145] : memref<128x112xbf16, #tpu.memory_space<vmem>>, vector<4x112xbf16>
    tpu.vector_store %arg18[%c32_144, %c0_145], %233 {strides = array<i32>} : memref<128x112xbf16, #tpu.memory_space<vmem>>, vector<4x112xbf16>,
    %235 = vector.extract_strided_slice %222 {offsets = [16, 0], sizes = [4, 112], strides = [1, 1]} : vector<56x112xf32> to vector<4x112xf32>
    %236 = arith.truncf %235 : vector<4x112xf32> to vector<4x112xbf16>
    %c40_146 = arith.constant 40 : index
    %c0_147 = arith.constant 0 : index
    %237 = vector.load %arg18[%c40_146, %c0_147] : memref<128x112xbf16, #tpu.memory_space<vmem>>, vector<4x112xbf16>
    tpu.vector_store %arg18[%c40_146, %c0_147], %236 {strides = array<i32>} : memref<128x112xbf16, #tpu.memory_space<vmem>>, vector<4x112xbf16>,
    %238 = vector.extract_strided_slice %222 {offsets = [20, 0], sizes = [4, 112], strides = [1, 1]} : vector<56x112xf32> to vector<4x112xf32>
    %239 = arith.truncf %238 : vector<4x112xf32> to vector<4x112xbf16>
    %c48_148 = arith.constant 48 : index
    %c0_149 = arith.constant 0 : index
    %240 = vector.load %arg18[%c48_148, %c0_149] : memref<128x112xbf16, #tpu.memory_space<vmem>>, vector<4x112xbf16>
    tpu.vector_store %arg18[%c48_148, %c0_149], %239 {strides = array<i32>} : memref<128x112xbf16, #tpu.memory_space<vmem>>, vector<4x112xbf16>,
    %241 = vector.extract_strided_slice %222 {offsets = [24, 0], sizes = [4, 112], strides = [1, 1]} : vector<56x112xf32> to vector<4x112xf32>
    %242 = arith.truncf %241 : vector<4x112xf32> to vector<4x112xbf16>
    %c56_150 = arith.constant 56 : index
    %c0_151 = arith.constant 0 : index
    %243 = vector.load %arg18[%c56_150, %c0_151] : memref<128x112xbf16, #tpu.memory_space<vmem>>, vector<4x112xbf16>
    tpu.vector_store %arg18[%c56_150, %c0_151], %242 {strides = array<i32>} : memref<128x112xbf16, #tpu.memory_space<vmem>>, vector<4x112xbf16>,
    %244 = vector.extract_strided_slice %222 {offsets = [28, 0], sizes = [4, 112], strides = [1, 1]} : vector<56x112xf32> to vector<4x112xf32>
    %245 = arith.truncf %244 : vector<4x112xf32> to vector<4x112xbf16>
    %c64 = arith.constant 64 : index
    %c0_152 = arith.constant 0 : index
    %246 = vector.load %arg18[%c64, %c0_152] : memref<128x112xbf16, #tpu.memory_space<vmem>>, vector<4x112xbf16>
    tpu.vector_store %arg18[%c64, %c0_152], %245 {strides = array<i32>} : memref<128x112xbf16, #tpu.memory_space<vmem>>, vector<4x112xbf16>,
    %247 = vector.extract_strided_slice %222 {offsets = [32, 0], sizes = [4, 112], strides = [1, 1]} : vector<56x112xf32> to vector<4x112xf32>
    %248 = arith.truncf %247 : vector<4x112xf32> to vector<4x112xbf16>
    %c72 = arith.constant 72 : index
    %c0_153 = arith.constant 0 : index
    %249 = vector.load %arg18[%c72, %c0_153] : memref<128x112xbf16, #tpu.memory_space<vmem>>, vector<4x112xbf16>
    tpu.vector_store %arg18[%c72, %c0_153], %248 {strides = array<i32>} : memref<128x112xbf16, #tpu.memory_space<vmem>>, vector<4x112xbf16>,
    %250 = vector.extract_strided_slice %222 {offsets = [36, 0], sizes = [4, 112], strides = [1, 1]} : vector<56x112xf32> to vector<4x112xf32>
    %251 = arith.truncf %250 : vector<4x112xf32> to vector<4x112xbf16>
    %c80 = arith.constant 80 : index
    %c0_154 = arith.constant 0 : index
    %252 = vector.load %arg18[%c80, %c0_154] : memref<128x112xbf16, #tpu.memory_space<vmem>>, vector<4x112xbf16>
    tpu.vector_store %arg18[%c80, %c0_154], %251 {strides = array<i32>} : memref<128x112xbf16, #tpu.memory_space<vmem>>, vector<4x112xbf16>,
    %253 = vector.extract_strided_slice %222 {offsets = [40, 0], sizes = [4, 112], strides = [1, 1]} : vector<56x112xf32> to vector<4x112xf32>
    %254 = arith.truncf %253 : vector<4x112xf32> to vector<4x112xbf16>
    %c88 = arith.constant 88 : index
    %c0_155 = arith.constant 0 : index
    %255 = vector.load %arg18[%c88, %c0_155] : memref<128x112xbf16, #tpu.memory_space<vmem>>, vector<4x112xbf16>
    tpu.vector_store %arg18[%c88, %c0_155], %254 {strides = array<i32>} : memref<128x112xbf16, #tpu.memory_space<vmem>>, vector<4x112xbf16>,
    %256 = vector.extract_strided_slice %222 {offsets = [44, 0], sizes = [4, 112], strides = [1, 1]} : vector<56x112xf32> to vector<4x112xf32>
    %257 = arith.truncf %256 : vector<4x112xf32> to vector<4x112xbf16>
    %c96 = arith.constant 96 : index
    %c0_156 = arith.constant 0 : index
    %258 = vector.load %arg18[%c96, %c0_156] : memref<128x112xbf16, #tpu.memory_space<vmem>>, vector<4x112xbf16>
    tpu.vector_store %arg18[%c96, %c0_156], %257 {strides = array<i32>} : memref<128x112xbf16, #tpu.memory_space<vmem>>, vector<4x112xbf16>,
    %259 = vector.extract_strided_slice %222 {offsets = [48, 0], sizes = [4, 112], strides = [1, 1]} : vector<56x112xf32> to vector<4x112xf32>
    %260 = arith.truncf %259 : vector<4x112xf32> to vector<4x112xbf16>
    %c104 = arith.constant 104 : index
    %c0_157 = arith.constant 0 : index
    %261 = vector.load %arg18[%c104, %c0_157] : memref<128x112xbf16, #tpu.memory_space<vmem>>, vector<4x112xbf16>
    tpu.vector_store %arg18[%c104, %c0_157], %260 {strides = array<i32>} : memref<128x112xbf16, #tpu.memory_space<vmem>>, vector<4x112xbf16>,
    %262 = vector.extract_strided_slice %222 {offsets = [52, 0], sizes = [4, 112], strides = [1, 1]} : vector<56x112xf32> to vector<4x112xf32>
    %263 = arith.truncf %262 : vector<4x112xf32> to vector<4x112xbf16>
    %c112 = arith.constant 112 : index
    %c0_158 = arith.constant 0 : index
    %264 = vector.load %arg18[%c112, %c0_158] : memref<128x112xbf16, #tpu.memory_space<vmem>>, vector<4x112xbf16>
    tpu.vector_store %arg18[%c112, %c0_158], %263 {strides = array<i32>} : memref<128x112xbf16, #tpu.memory_space<vmem>>, vector<4x112xbf16>,
    %c1_i32_159 = arith.constant 1 : i32
    %265 = tpu.memref_slice %arg22[%c1_i32_159] : memref<2x!tpu.dma_semaphore, #tpu.memory_space<semaphore_mem>> -> memref<1x!tpu.dma_semaphore, #tpu.memory_space<semaphore_mem>>
    %266 = tpu.memref_squeeze %265 : memref<1x!tpu.dma_semaphore, #tpu.memory_space<semaphore_mem>> -> memref<!tpu.dma_semaphore, #tpu.memory_space<semaphore_mem>>
    tpu.wait_dma2 semaphore(%266 : memref<!tpu.dma_semaphore, #tpu.memory_space<semaphore_mem>>) src(%arg14 : memref<5x112x28xbf16, #tpu.memory_space<any>>) dst(%arg20 : memref<5x112x28xbf16, #tpu.memory_space<vmem>>)
    %cst_160 = arith.constant 0.000000e+00 : f32
    %267 = vector.broadcast %cst_160 : f32 to vector<112x28xf32>
    %c0_161 = arith.constant 0 : index
    %c0_162 = arith.constant 0 : index
    %268 = vector.load %arg18[%c0_161, %c0_162] : memref<128x112xbf16, #tpu.memory_space<vmem>>, vector<112x112xbf16>
    %c0_163 = arith.constant 0 : index
    %c0_164 = arith.constant 0 : index
    %c0_165 = arith.constant 0 : index
    %269 = vector.load %arg20[%c0_163, %c0_164, %c0_165] : memref<5x112x28xbf16, #tpu.memory_space<vmem>>, vector<1x112x28xbf16>
    %270 = vector.shape_cast %269 : vector<1x112x28xbf16> to vector<112x28xbf16>
    %cst_166 = arith.constant dense<0.000000e+00> : vector<112x28xf32>
    %271 = tpu.matmul %268, %270, %cst_166 {dimension_numbers = #tpu.dot_dimension_numbers<[1], [0], [0], [1], [0, 0, 1, 1], [], []>} : vector<112x112xbf16>, vector<112x28xbf16>, vector<112x28xf32> -> vector<112x28xf32>
    %272 = arith.addf %267, %271 : vector<112x28xf32>
    %c4_167 = arith.constant 4 : index
    %c0_168 = arith.constant 0 : index
    %273 = vector.load %arg18[%c4_167, %c0_168] : memref<128x112xbf16, #tpu.memory_space<vmem>>, vector<112x112xbf16>
    %c1_169 = arith.constant 1 : index
    %c0_170 = arith.constant 0 : index
    %c0_171 = arith.constant 0 : index
    %274 = vector.load %arg20[%c1_169, %c0_170, %c0_171] : memref<5x112x28xbf16, #tpu.memory_space<vmem>>, vector<1x112x28xbf16>
    %275 = vector.shape_cast %274 : vector<1x112x28xbf16> to vector<112x28xbf16>
    %cst_172 = arith.constant dense<0.000000e+00> : vector<112x28xf32>
    %276 = tpu.matmul %273, %275, %cst_172 {dimension_numbers = #tpu.dot_dimension_numbers<[1], [0], [0], [1], [0, 0, 1, 1], [], []>} : vector<112x112xbf16>, vector<112x28xbf16>, vector<112x28xf32> -> vector<112x28xf32>
    %277 = arith.addf %272, %276 : vector<112x28xf32>
    %c8_173 = arith.constant 8 : index
    %c0_174 = arith.constant 0 : index
    %278 = vector.load %arg18[%c8_173, %c0_174] : memref<128x112xbf16, #tpu.memory_space<vmem>>, vector<112x112xbf16>
    %c2_175 = arith.constant 2 : index
    %c0_176 = arith.constant 0 : index
    %c0_177 = arith.constant 0 : index
    %279 = vector.load %arg20[%c2_175, %c0_176, %c0_177] : memref<5x112x28xbf16, #tpu.memory_space<vmem>>, vector<1x112x28xbf16>
    %280 = vector.shape_cast %279 : vector<1x112x28xbf16> to vector<112x28xbf16>
    %cst_178 = arith.constant dense<0.000000e+00> : vector<112x28xf32>
    %281 = tpu.matmul %278, %280, %cst_178 {dimension_numbers = #tpu.dot_dimension_numbers<[1], [0], [0], [1], [0, 0, 1, 1], [], []>} : vector<112x112xbf16>, vector<112x28xbf16>, vector<112x28xf32> -> vector<112x28xf32>
    %282 = arith.addf %277, %281 : vector<112x28xf32>
    %c12_179 = arith.constant 12 : index
    %c0_180 = arith.constant 0 : index
    %283 = vector.load %arg18[%c12_179, %c0_180] : memref<128x112xbf16, #tpu.memory_space<vmem>>, vector<112x112xbf16>
    %c3_181 = arith.constant 3 : index
    %c0_182 = arith.constant 0 : index
    %c0_183 = arith.constant 0 : index
    %284 = vector.load %arg20[%c3_181, %c0_182, %c0_183] : memref<5x112x28xbf16, #tpu.memory_space<vmem>>, vector<1x112x28xbf16>
    %285 = vector.shape_cast %284 : vector<1x112x28xbf16> to vector<112x28xbf16>
    %cst_184 = arith.constant dense<0.000000e+00> : vector<112x28xf32>
    %286 = tpu.matmul %283, %285, %cst_184 {dimension_numbers = #tpu.dot_dimension_numbers<[1], [0], [0], [1], [0, 0, 1, 1], [], []>} : vector<112x112xbf16>, vector<112x28xbf16>, vector<112x28xf32> -> vector<112x28xf32>
    %287 = arith.addf %282, %286 : vector<112x28xf32>
    %c16_185 = arith.constant 16 : index
    %c0_186 = arith.constant 0 : index
    %288 = vector.load %arg18[%c16_185, %c0_186] : memref<128x112xbf16, #tpu.memory_space<vmem>>, vector<112x112xbf16>
    %c4_187 = arith.constant 4 : index
    %c0_188 = arith.constant 0 : index
    %c0_189 = arith.constant 0 : index
    %289 = vector.load %arg20[%c4_187, %c0_188, %c0_189] : memref<5x112x28xbf16, #tpu.memory_space<vmem>>, vector<1x112x28xbf16>
    %290 = vector.shape_cast %289 : vector<1x112x28xbf16> to vector<112x28xbf16>
    %cst_190 = arith.constant dense<0.000000e+00> : vector<112x28xf32>
    %291 = tpu.matmul %288, %290, %cst_190 {dimension_numbers = #tpu.dot_dimension_numbers<[1], [0], [0], [1], [0, 0, 1, 1], [], []>} : vector<112x112xbf16>, vector<112x28xbf16>, vector<112x28xf32> -> vector<112x28xf32>
    %292 = arith.addf %287, %291 : vector<112x28xf32>
    %293 = math.tanh %292 : vector<112x28xf32>
    %c0_191 = arith.constant 0 : index
    %c0_192 = arith.constant 0 : index
    %294 = vector.load %arg21[%c0_191, %c0_192] : memref<112x28xf32, #tpu.memory_space<vmem>>, vector<112x28xf32>
    tpu.vector_store %arg21[%c0_191, %c0_192], %293 {strides = array<i32>} : memref<112x28xf32, #tpu.memory_space<vmem>>, vector<112x28xf32>,
    %c0_193 = arith.constant 0 : index
    %c0_194 = arith.constant 0 : index
    %295 = tpu.strided_load %arg21[%c0_193, %c0_194] {strides = array<i32: 4, 1>} : memref<112x28xf32, #tpu.memory_space<vmem>>, vector<28x28xf32>
    %c0_195 = arith.constant 0 : index
    %c0_196 = arith.constant 0 : index
    %c0_197 = arith.constant 0 : index
    %296 = vector.load %arg15[%c0_195, %c0_196, %c0_197] : memref<4x28x28xf32, #tpu.memory_space<vmem>>, vector<1x28x28xf32>
    %297 = vector.shape_cast %296 : vector<1x28x28xf32> to vector<28x28xf32>
    %298 = vector.shape_cast %295 : vector<28x28xf32> to vector<1x28x28xf32>
    tpu.vector_store %arg15[%c0_195, %c0_196, %c0_197], %298 {strides = array<i32>} : memref<4x28x28xf32, #tpu.memory_space<vmem>>, vector<1x28x28xf32>,
    %c1_198 = arith.constant 1 : index
    %c0_199 = arith.constant 0 : index
    %299 = tpu.strided_load %arg21[%c1_198, %c0_199] {strides = array<i32: 4, 1>} : memref<112x28xf32, #tpu.memory_space<vmem>>, vector<28x28xf32>
    %c1_200 = arith.constant 1 : index
    %c0_201 = arith.constant 0 : index
    %c0_202 = arith.constant 0 : index
    %300 = vector.load %arg15[%c1_200, %c0_201, %c0_202] : memref<4x28x28xf32, #tpu.memory_space<vmem>>, vector<1x28x28xf32>
    %301 = vector.shape_cast %300 : vector<1x28x28xf32> to vector<28x28xf32>
    %302 = vector.shape_cast %299 : vector<28x28xf32> to vector<1x28x28xf32>
    tpu.vector_store %arg15[%c1_200, %c0_201, %c0_202], %302 {strides = array<i32>} : memref<4x28x28xf32, #tpu.memory_space<vmem>>, vector<1x28x28xf32>,
    %c2_203 = arith.constant 2 : index
    %c0_204 = arith.constant 0 : index
    %303 = tpu.strided_load %arg21[%c2_203, %c0_204] {strides = array<i32: 4, 1>} : memref<112x28xf32, #tpu.memory_space<vmem>>, vector<28x28xf32>
    %c2_205 = arith.constant 2 : index
    %c0_206 = arith.constant 0 : index
    %c0_207 = arith.constant 0 : index
    %304 = vector.load %arg15[%c2_205, %c0_206, %c0_207] : memref<4x28x28xf32, #tpu.memory_space<vmem>>, vector<1x28x28xf32>
    %305 = vector.shape_cast %304 : vector<1x28x28xf32> to vector<28x28xf32>
    %306 = vector.shape_cast %303 : vector<28x28xf32> to vector<1x28x28xf32>
    tpu.vector_store %arg15[%c2_205, %c0_206, %c0_207], %306 {strides = array<i32>} : memref<4x28x28xf32, #tpu.memory_space<vmem>>, vector<1x28x28xf32>,
    %c3_208 = arith.constant 3 : index
    %c0_209 = arith.constant 0 : index
    %307 = tpu.strided_load %arg21[%c3_208, %c0_209] {strides = array<i32: 4, 1>} : memref<112x28xf32, #tpu.memory_space<vmem>>, vector<28x28xf32>
    %c3_210 = arith.constant 3 : index
    %c0_211 = arith.constant 0 : index
    %c0_212 = arith.constant 0 : index
    %308 = vector.load %arg15[%c3_210, %c0_211, %c0_212] : memref<4x28x28xf32, #tpu.memory_space<vmem>>, vector<1x28x28xf32>
    %309 = vector.shape_cast %308 : vector<1x28x28xf32> to vector<28x28xf32>
    %310 = vector.shape_cast %307 : vector<28x28xf32> to vector<1x28x28xf32>
    tpu.vector_store %arg15[%c3_210, %c0_211, %c0_212], %310 {strides = array<i32>} : memref<4x28x28xf32, #tpu.memory_space<vmem>>, vector<1x28x28xf32>,
    return
  }
}

</mosaic_0001>

<llo_original>
// kernel: generator_forward.1
$region0: #{generator_forward.1}
  #allocation0 [shape = 'u32[]', space=smem, size = 0x4, offset = 0x4, fixed_abs, tag = 'smem constant byte address 0x4 - core index']
  #allocation1 [shape = 'u32[72,128]{1,0:T(1,128)}', space=vmem, size = 0x9000, scoped, tag = 'internal scratch']
  #allocation2 [shape = 'bf16[44,256]{1,0:T(8,128)(2,1)}', space=vmem, size = 0x6000, scoped, tag = 'scratch operand']
  #allocation3 [shape = 'bf16[72,112]{1,0:T(8,128)(2,1)}', space=vmem, size = 0x4800, scoped, tag = 'scratch operand']
  #allocation4 [shape = 'bf16[128,112]{1,0:T(8,128)(2,1)}', space=vmem, size = 0x8000, scoped, tag = 'scratch operand']
  #allocation5 [shape = 'bf16[5,112,112]{2,1,0:T(8,128)(2,1)}', space=vmem, size = 0x23000, scoped, tag = 'scratch operand']
  #allocation6 [shape = 'bf16[5,112,28]{2,1,0:T(8,128)(2,1)}', space=vmem, size = 0x23000, scoped, tag = 'scratch operand']
  #allocation7 [shape = 'f32[112,28]{1,0:T(8,128)}', space=vmem, size = 0xe000, scoped, tag = 'scratch operand']
  #allocation8 [shape = 's32[2]{0}', space=sflag, size = 0x8, scoped, tag = 'scratch operand']
  #allocation9 [shape = 's32[]', space=sflag, size = 0x4, offset = 0, fixed_abs, tag = 'sflag constant byte address 0x0 - dummy sync flag']
  #allocation10 [shape = 's32[]', space=sflag, size = 0x4, offset = 0, fixed_abs, tag = 'sflag constant byte address 0x0 - dummy sync flag']
  %s0 = inlined_call_operand.vmem [shape: f32[4,100], index: 0, kind: input, shape index: {}]
  %s1 = inlined_call_operand.vmem [shape: bf16[100,1792], index: 1, kind: input, shape index: {}]
  %s2 = inlined_call_operand.vmem [shape: f32[1,1792], index: 2, kind: input, shape index: {}]
  %s3 = inlined_call_operand.vmem [shape: f32[1,1792], index: 3, kind: input, shape index: {}]
  %s4 = inlined_call_operand.vmem [shape: bf16[5,256,112], index: 4, kind: input, shape index: {}]
  %s5 = inlined_call_operand.vmem [shape: f32[112,16], index: 5, kind: input, shape index: {}]
  %s6 = inlined_call_operand.vmem [shape: f32[16,112], index: 6, kind: input, shape index: {}]
  %s7 = inlined_call_operand.vmem [shape: f32[1,16], index: 7, kind: input, shape index: {}]
  %s8 = inlined_call_operand.vmem [shape: f32[1,16], index: 8, kind: input, shape index: {}]
  %s9 = inlined_call_operand.vmem [shape: bf16[5,112,112], index: 9, kind: input, shape index: {}]
  %s10 = inlined_call_operand.vmem [shape: f32[112,8], index: 10, kind: input, shape index: {}]
  %s11 = inlined_call_operand.vmem [shape: f32[8,112], index: 11, kind: input, shape index: {}]
  %s12 = inlined_call_operand.vmem [shape: f32[1,8], index: 12, kind: input, shape index: {}]
  %s13 = inlined_call_operand.vmem [shape: f32[1,8], index: 13, kind: input, shape index: {}]
  %s14 = inlined_call_operand.vmem [shape: bf16[5,112,28], index: 14, kind: input, shape index: {}]
  %s15 = inlined_call_operand.vmem [shape: f32[4,28,28], index: 15, kind: output, shape index: {}]
  %s16 = sld [smem:[#allocation0]]
  $region100: #{generator_forward.1} parent=0
    _
  %s18 = ssub.s32 1, %s16
  %s19 = scalar_select 0, %s18, %s16
  // Predicated region
  $region2: #{generator_forward.1} parent=0 // pred_check
    _
  $region3: #{generator_forward.1} parent=0 // pred_check_branch
    %21 = sbr.rel (0) target = $region5
  $region4: #{generator_forward.1} parent=0 // pred_region
    _
  $region5: #{generator_forward.1} parent=0 // pred_fallthru
    _
  // Predicated region
  $region6: #{generator_forward.1} parent=0 // pred_check
    _
  $region7: #{generator_forward.1} parent=0 // pred_check_branch
    %23 = sbr.rel (0) target = $region9
  $region8: #{generator_forward.1} parent=0 // pred_region
    _
  $region9: #{generator_forward.1} parent=0 // pred_fallthru
    _
  // Predicated region
  $region10: #{generator_forward.1} parent=0 // pred_check
    _
  $region11: #{generator_forward.1} parent=0 // pred_check_branch
    %25 = sbr.rel (0) target = $region13
  $region12: #{generator_forward.1} parent=0 // pred_region
    _
  $region13: #{generator_forward.1} parent=0 // pred_fallthru
    _
  // Predicated region
  $region14: #{generator_forward.1} parent=0 // pred_check
    _
  $region15: #{generator_forward.1} parent=0 // pred_check_branch
    %27 = sbr.rel (0) target = $region17
  $region16: #{generator_forward.1} parent=0 // pred_region
    _
  $region17: #{generator_forward.1} parent=0 // pred_fallthru
    _
  // Predicated region
  $region18: #{generator_forward.1} parent=0 // pred_check
    _
  $region19: #{generator_forward.1} parent=0 // pred_check_branch
    %29 = sbr.rel (0) target = $region21
  $region20: #{generator_forward.1} parent=0 // pred_region
    _
  $region21: #{generator_forward.1} parent=0 // pred_fallthru
    _
  // Predicated region
  $region22: #{generator_forward.1} parent=0 // pred_check
    _
  $region23: #{generator_forward.1} parent=0 // pred_check_branch
    %31 = sbr.rel (0) target = $region25
  $region24: #{generator_forward.1} parent=0 // pred_region
    _
  $region25: #{generator_forward.1} parent=0 // pred_fallthru
    _
  // Predicated region
  $region26: #{generator_forward.1} parent=0 // pred_check
    _
  $region27: #{generator_forward.1} parent=0 // pred_check_branch
    %33 = sbr.rel (0) target = $region29
  $region28: #{generator_forward.1} parent=0 // pred_region
    _
  $region29: #{generator_forward.1} parent=0 // pred_fallthru
    _
  // Predicated region
  $region30: #{generator_forward.1} parent=0 // pred_check
    _
  $region31: #{generator_forward.1} parent=0 // pred_check_branch
    %35 = sbr.rel (0) target = $region33
  $region32: #{generator_forward.1} parent=0 // pred_region
    _
  $region33: #{generator_forward.1} parent=0 // pred_fallthru
    _
  // Predicated region
  $region34: #{generator_forward.1} parent=0 // pred_check
    _
  $region35: #{generator_forward.1} parent=0 // pred_check_branch
    %37 = sbr.rel (0) target = $region37
  $region36: #{generator_forward.1} parent=0 // pred_region
    _
  $region37: #{generator_forward.1} parent=0 // pred_fallthru
    _
  // Predicated region
  $region38: #{generator_forward.1} parent=0 // pred_check
    _
  $region39: #{generator_forward.1} parent=0 // pred_check_branch
    %39 = sbr.rel (0) target = $region41
  $region40: #{generator_forward.1} parent=0 // pred_region
    _
  $region41: #{generator_forward.1} parent=0 // pred_fallthru
    _
  // Predicated region
  $region42: #{generator_forward.1} parent=0 // pred_check
    _
  $region43: #{generator_forward.1} parent=0 // pred_check_branch
    %41 = sbr.rel (0) target = $region45
  $region44: #{generator_forward.1} parent=0 // pred_region
    _
  $region45: #{generator_forward.1} parent=0 // pred_fallthru
    _
  // Predicated region
  $region46: #{generator_forward.1} parent=0 // pred_check
    _
  $region47: #{generator_forward.1} parent=0 // pred_check_branch
    %43 = sbr.rel (0) target = $region49
  $region48: #{generator_forward.1} parent=0 // pred_region
    _
  $region49: #{generator_forward.1} parent=0 // pred_fallthru
    _
  // Predicated region
  $region50: #{generator_forward.1} parent=0 // pred_check
    _
  $region51: #{generator_forward.1} parent=0 // pred_check_branch
    %45 = sbr.rel (0) target = $region53
  $region52: #{generator_forward.1} parent=0 // pred_region
    _
  $region53: #{generator_forward.1} parent=0 // pred_fallthru
    _
  // Predicated region
  $region54: #{generator_forward.1} parent=0 // pred_check
    _
  $region55: #{generator_forward.1} parent=0 // pred_check_branch
    %48 = sbr.rel (0) target = $region57
  $region56: #{generator_forward.1} parent=0 // pred_region
    loop: start=0, step=1, limit=1
    $region58: #{generator_forward.1} parent=56 // loop_pre_header
      _
    $region59: #{generator_forward.1} parent=56 // loop_header
      %s50 = sphi 0, %s54
      %p51 = scmp.ge.s32.totalorder %s50, 1
      %s55 = sphi %s9, %s9
      %s56 = sphi [#allocation5], [#allocation5]
    $region60: #{generator_forward.1} parent=56 // loop_header_branch
      %53 = sbr.rel (%p51) target = $region64
    $region61: #{generator_forward.1} parent=56 // loop_body
      %v57 = vld [vmem:[%s55] sm:$0xff]
      %58 = vst [vmem:[%s56] sm:$0xff] %v57
      %v59 = vld [vmem:[%s55 + $0x8] sm:$0xff]
      %60 = vst [vmem:[%s56 + $0x8] sm:$0xff] %v59
      %v61 = vld [vmem:[%s55 + $0x10] sm:$0xff]
      %62 = vst [vmem:[%s56 + $0x10] sm:$0xff] %v61
      %v63 = vld [vmem:[%s55 + $0x18] sm:$0xff]
      %64 = vst [vmem:[%s56 + $0x18] sm:$0xff] %v63
      %v65 = vld [vmem:[%s55 + $0x20] sm:$0xff]
      %66 = vst [vmem:[%s56 + $0x20] sm:$0xff] %v65
      %v67 = vld [vmem:[%s55 + $0x28] sm:$0xff]
      %68 = vst [vmem:[%s56 + $0x28] sm:$0xff] %v67
      %v69 = vld [vmem:[%s55 + $0x30] sm:$0xff]
      %70 = vst [vmem:[%s56 + $0x30] sm:$0xff] %v69
      %v71 = vld [vmem:[%s55 + $0x38] sm:$0xff]
      %72 = vst [vmem:[%s56 + $0x38] sm:$0xff] %v71
      %v73 = vld [vmem:[%s55 + $0x40] sm:$0xff]
      %74 = vst [vmem:[%s56 + $0x40] sm:$0xff] %v73
      %v75 = vld [vmem:[%s55 + $0x48] sm:$0xff]
      %76 = vst [vmem:[%s56 + $0x48] sm:$0xff] %v75
      %v77 = vld [vmem:[%s55 + $0x50] sm:$0xff]
      %78 = vst [vmem:[%s56 + $0x50] sm:$0xff] %v77
      %v79 = vld [vmem:[%s55 + $0x58] sm:$0xff]
      %80 = vst [vmem:[%s56 + $0x58] sm:$0xff] %v79
      %v81 = vld [vmem:[%s55 + $0x60] sm:$0xff]
      %82 = vst [vmem:[%s56 + $0x60] sm:$0xff] %v81
      %v83 = vld [vmem:[%s55 + $0x68] sm:$0xff]
      %84 = vst [vmem:[%s56 + $0x68] sm:$0xff] %v83
      %v85 = vld [vmem:[%s55 + $0x70] sm:$0xff]
      %86 = vst [vmem:[%s56 + $0x70] sm:$0xff] %v85
      %v87 = vld [vmem:[%s55 + $0x78] sm:$0xff]
      %88 = vst [vmem:[%s56 + $0x78] sm:$0xff] %v87
      %v89 = vld [vmem:[%s55 + $0x80] sm:$0xff]
      %90 = vst [vmem:[%s56 + $0x80] sm:$0xff] %v89
      %v91 = vld [vmem:[%s55 + $0x88] sm:$0xff]
      %92 = vst [vmem:[%s56 + $0x88] sm:$0xff] %v91
      %v93 = vld [vmem:[%s55 + $0x90] sm:$0xff]
      %94 = vst [vmem:[%s56 + $0x90] sm:$0xff] %v93
      %v95 = vld [vmem:[%s55 + $0x98] sm:$0xff]
      %96 = vst [vmem:[%s56 + $0x98] sm:$0xff] %v95
      %v97 = vld [vmem:[%s55 + $0xa0] sm:$0xff]
      %98 = vst [vmem:[%s56 + $0xa0] sm:$0xff] %v97
      %v99 = vld [vmem:[%s55 + $0xa8] sm:$0xff]
      %100 = vst [vmem:[%s56 + $0xa8] sm:$0xff] %v99
      %v101 = vld [vmem:[%s55 + $0xb0] sm:$0xff]
      %102 = vst [vmem:[%s56 + $0xb0] sm:$0xff] %v101
      %v103 = vld [vmem:[%s55 + $0xb8] sm:$0xff]
      %104 = vst [vmem:[%s56 + $0xb8] sm:$0xff] %v103
      %v105 = vld [vmem:[%s55 + $0xc0] sm:$0xff]
      %106 = vst [vmem:[%s56 + $0xc0] sm:$0xff] %v105
      %v107 = vld [vmem:[%s55 + $0xc8] sm:$0xff]
      %108 = vst [vmem:[%s56 + $0xc8] sm:$0xff] %v107
      %v109 = vld [vmem:[%s55 + $0xd0] sm:$0xff]
      %110 = vst [vmem:[%s56 + $0xd0] sm:$0xff] %v109
      %v111 = vld [vmem:[%s55 + $0xd8] sm:$0xff]
      %112 = vst [vmem:[%s56 + $0xd8] sm:$0xff] %v111
      %v113 = vld [vmem:[%s55 + $0xe0] sm:$0xff]
      %114 = vst [vmem:[%s56 + $0xe0] sm:$0xff] %v113
      %v115 = vld [vmem:[%s55 + $0xe8] sm:$0xff]
      %116 = vst [vmem:[%s56 + $0xe8] sm:$0xff] %v115
      %v117 = vld [vmem:[%s55 + $0xf0] sm:$0xff]
      %118 = vst [vmem:[%s56 + $0xf0] sm:$0xff] %v117
      %v119 = vld [vmem:[%s55 + $0xf8] sm:$0xff]
      %120 = vst [vmem:[%s56 + $0xf8] sm:$0xff] %v119
      %v121 = vld [vmem:[%s55 + $0x100] sm:$0xff]
      %122 = vst [vmem:[%s56 + $0x100] sm:$0xff] %v121
      %v123 = vld [vmem:[%s55 + $0x108] sm:$0xff]
      %124 = vst [vmem:[%s56 + $0x108] sm:$0xff] %v123
      %v125 = vld [vmem:[%s55 + $0x110] sm:$0xff]
      %126 = vst [vmem:[%s56 + $0x110] sm:$0xff] %v125
    $region62: #{generator_forward.1} parent=56 // loop_footer
      %s54 = sadd.s32 1, %s50
    $region63: #{generator_forward.1} parent=56 // loop_footer_branch
      %49 = sbr.rel target = $region59
    $region64: #{generator_forward.1} parent=56 // loop_exit
      _
  $region57: #{generator_forward.1} parent=0 // pred_fallthru
    _
  // Predicated region
  $region65: #{generator_forward.1} parent=0 // pred_check
    _
  $region66: #{generator_forward.1} parent=0 // pred_check_branch
    %128 = sbr.rel target = $region68
  $region67: #{generator_forward.1} parent=0 // pred_region
    _
  $region68: #{generator_forward.1} parent=0 // pred_fallthru
    _
  // Predicated region
  $region69: #{generator_forward.1} parent=0 // pred_check
    _
  $region70: #{generator_forward.1} parent=0 // pred_check_branch
    %131 = sbr.rel (0) target = $region72
  $region71: #{generator_forward.1} parent=0 // pred_region
    %132 = vsyncadd [#allocation8], 4480
  $region72: #{generator_forward.1} parent=0 // pred_fallthru
    _
  %s133 = scalar_lea.sflag [#allocation8], 1
  // Predicated region
  $region73: #{generator_forward.1} parent=0 // pred_check
    _
  $region74: #{generator_forward.1} parent=0 // pred_check_branch
    %135 = sbr.rel (0) target = $region76
  $region75: #{generator_forward.1} parent=0 // pred_region
    loop: start=0, step=1, limit=1
    $region77: #{generator_forward.1} parent=75 // loop_pre_header
      _
    $region78: #{generator_forward.1} parent=75 // loop_header
      %s137 = sphi 0, %s141
      %p138 = scmp.ge.s32.totalorder %s137, 1
      %s142 = sphi %s14, %s14
      %s143 = sphi [#allocation6], [#allocation6]
    $region79: #{generator_forward.1} parent=75 // loop_header_branch
      %140 = sbr.rel (%p138) target = $region83
    $region80: #{generator_forward.1} parent=75 // loop_body
      %v144 = vld [vmem:[%s142] sm:$0xff]
      %145 = vst [vmem:[%s143] sm:$0xff] %v144
      %v146 = vld [vmem:[%s142 + $0x8] sm:$0xff]
      %147 = vst [vmem:[%s143 + $0x8] sm:$0xff] %v146
      %v148 = vld [vmem:[%s142 + $0x10] sm:$0xff]
      %149 = vst [vmem:[%s143 + $0x10] sm:$0xff] %v148
      %v150 = vld [vmem:[%s142 + $0x18] sm:$0xff]
      %151 = vst [vmem:[%s143 + $0x18] sm:$0xff] %v150
      %v152 = vld [vmem:[%s142 + $0x20] sm:$0xff]
      %153 = vst [vmem:[%s143 + $0x20] sm:$0xff] %v152
      %v154 = vld [vmem:[%s142 + $0x28] sm:$0xff]
      %155 = vst [vmem:[%s143 + $0x28] sm:$0xff] %v154
      %v156 = vld [vmem:[%s142 + $0x30] sm:$0xff]
      %157 = vst [vmem:[%s143 + $0x30] sm:$0xff] %v156
      %v158 = vld [vmem:[%s142 + $0x38] sm:$0xff]
      %159 = vst [vmem:[%s143 + $0x38] sm:$0xff] %v158
      %v160 = vld [vmem:[%s142 + $0x40] sm:$0xff]
      %161 = vst [vmem:[%s143 + $0x40] sm:$0xff] %v160
      %v162 = vld [vmem:[%s142 + $0x48] sm:$0xff]
      %163 = vst [vmem:[%s143 + $0x48] sm:$0xff] %v162
      %v164 = vld [vmem:[%s142 + $0x50] sm:$0xff]
      %165 = vst [vmem:[%s143 + $0x50] sm:$0xff] %v164
      %v166 = vld [vmem:[%s142 + $0x58] sm:$0xff]
      %167 = vst [vmem:[%s143 + $0x58] sm:$0xff] %v166
      %v168 = vld [vmem:[%s142 + $0x60] sm:$0xff]
      %169 = vst [vmem:[%s143 + $0x60] sm:$0xff] %v168
      %v170 = vld [vmem:[%s142 + $0x68] sm:$0xff]
      %171 = vst [vmem:[%s143 + $0x68] sm:$0xff] %v170
      %v172 = vld [vmem:[%s142 + $0x70] sm:$0xff]
      %173 = vst [vmem:[%s143 + $0x70] sm:$0xff] %v172
      %v174 = vld [vmem:[%s142 + $0x78] sm:$0xff]
      %175 = vst [vmem:[%s143 + $0x78] sm:$0xff] %v174
      %v176 = vld [vmem:[%s142 + $0x80] sm:$0xff]
      %177 = vst [vmem:[%s143 + $0x80] sm:$0xff] %v176
      %v178 = vld [vmem:[%s142 + $0x88] sm:$0xff]
      %179 = vst [vmem:[%s143 + $0x88] sm:$0xff] %v178
      %v180 = vld [vmem:[%s142 + $0x90] sm:$0xff]
      %181 = vst [vmem:[%s143 + $0x90] sm:$0xff] %v180
      %v182 = vld [vmem:[%s142 + $0x98] sm:$0xff]
      %183 = vst [vmem:[%s143 + $0x98] sm:$0xff] %v182
      %v184 = vld [vmem:[%s142 + $0xa0] sm:$0xff]
      %185 = vst [vmem:[%s143 + $0xa0] sm:$0xff] %v184
      %v186 = vld [vmem:[%s142 + $0xa8] sm:$0xff]
      %187 = vst [vmem:[%s143 + $0xa8] sm:$0xff] %v186
      %v188 = vld [vmem:[%s142 + $0xb0] sm:$0xff]
      %189 = vst [vmem:[%s143 + $0xb0] sm:$0xff] %v188
      %v190 = vld [vmem:[%s142 + $0xb8] sm:$0xff]
      %191 = vst [vmem:[%s143 + $0xb8] sm:$0xff] %v190
      %v192 = vld [vmem:[%s142 + $0xc0] sm:$0xff]
      %193 = vst [vmem:[%s143 + $0xc0] sm:$0xff] %v192
      %v194 = vld [vmem:[%s142 + $0xc8] sm:$0xff]
      %195 = vst [vmem:[%s143 + $0xc8] sm:$0xff] %v194
      %v196 = vld [vmem:[%s142 + $0xd0] sm:$0xff]
      %197 = vst [vmem:[%s143 + $0xd0] sm:$0xff] %v196
      %v198 = vld [vmem:[%s142 + $0xd8] sm:$0xff]
      %199 = vst [vmem:[%s143 + $0xd8] sm:$0xff] %v198
      %v200 = vld [vmem:[%s142 + $0xe0] sm:$0xff]
      %201 = vst [vmem:[%s143 + $0xe0] sm:$0xff] %v200
      %v202 = vld [vmem:[%s142 + $0xe8] sm:$0xff]
      %203 = vst [vmem:[%s143 + $0xe8] sm:$0xff] %v202
      %v204 = vld [vmem:[%s142 + $0xf0] sm:$0xff]
      %205 = vst [vmem:[%s143 + $0xf0] sm:$0xff] %v204
      %v206 = vld [vmem:[%s142 + $0xf8] sm:$0xff]
      %207 = vst [vmem:[%s143 + $0xf8] sm:$0xff] %v206
      %v208 = vld [vmem:[%s142 + $0x100] sm:$0xff]
      %209 = vst [vmem:[%s143 + $0x100] sm:$0xff] %v208
      %v210 = vld [vmem:[%s142 + $0x108] sm:$0xff]
      %211 = vst [vmem:[%s143 + $0x108] sm:$0xff] %v210
      %v212 = vld [vmem:[%s142 + $0x110] sm:$0xff]
      %213 = vst [vmem:[%s143 + $0x110] sm:$0xff] %v212
    $region81: #{generator_forward.1} parent=75 // loop_footer
      %s141 = sadd.s32 1, %s137
    $region82: #{generator_forward.1} parent=75 // loop_footer_branch
      %136 = sbr.rel target = $region78
    $region83: #{generator_forward.1} parent=75 // loop_exit
      _
  $region76: #{generator_forward.1} parent=0 // pred_fallthru
    _
  // Predicated region
  $region84: #{generator_forward.1} parent=0 // pred_check
    _
  $region85: #{generator_forward.1} parent=0 // pred_check_branch
    %215 = sbr.rel target = $region87
  $region86: #{generator_forward.1} parent=0 // pred_region
    _
  $region87: #{generator_forward.1} parent=0 // pred_fallthru
    _
  // Predicated region
  $region88: #{generator_forward.1} parent=0 // pred_check
    _
  $region89: #{generator_forward.1} parent=0 // pred_check_branch
    %218 = sbr.rel (0) target = $region91
  $region90: #{generator_forward.1} parent=0 // pred_region
    %219 = vsyncadd %s133, 4480
  $region91: #{generator_forward.1} parent=0 // pred_fallthru
    _
  %220 = vst [vmem:[#allocation2] sm:$0xff] 0
  %221 = vst [vmem:[#allocation2 + $0x20] sm:$0xcc] 0
  %222 = vst [vmem:[#allocation2 + $0x28] sm:$0x33] 0
  %vm223 = vcmask 912384
  %224 = vst.msk [vmem:[#allocation3] sm:$0xf] %vm223, 0
  %225 = vst.msk [vmem:[#allocation3 + $0x4] sm:$0xf] %vm223, 0
  %226 = vst.msk [vmem:[#allocation3 + $0x8] sm:$0xf] %vm223, 0
  %227 = vst.msk [vmem:[#allocation3 + $0xc] sm:$0xf] %vm223, 0
  %228 = vst.msk [vmem:[#allocation3 + $0x10] sm:$0xf] %vm223, 0
  %229 = vst.msk [vmem:[#allocation3 + $0x14] sm:$0xf] %vm223, 0
  %230 = vst.msk [vmem:[#allocation3 + $0x18] sm:$0xf] %vm223, 0
  %231 = vst.msk [vmem:[#allocation3 + $0x1c] sm:$0xf] %vm223, 0
  %232 = vst.msk [vmem:[#allocation3 + $0x20] sm:$0xf] %vm223, 0
  %233 = vst.msk [vmem:[#allocation4] sm:$0xf] %vm223, 0
  %234 = vst.msk [vmem:[#allocation4 + $0x4] sm:$0xf] %vm223, 0
  %235 = vst.msk [vmem:[#allocation4 + $0x8] sm:$0xf] %vm223, 0
  %236 = vst.msk [vmem:[#allocation4 + $0xc] sm:$0xf] %vm223, 0
  %237 = vst.msk [vmem:[#allocation4 + $0x10] sm:$0xf] %vm223, 0
  %238 = vst.msk [vmem:[#allocation4 + $0x14] sm:$0xf] %vm223, 0
  %239 = vst.msk [vmem:[#allocation4 + $0x18] sm:$0xf] %vm223, 0
  %240 = vst.msk [vmem:[#allocation4 + $0x1c] sm:$0xf] %vm223, 0
  %241 = vst.msk [vmem:[#allocation4 + $0x20] sm:$0xf] %vm223, 0
  %242 = vst.msk [vmem:[#allocation4 + $0x24] sm:$0xf] %vm223, 0
  %243 = vst.msk [vmem:[#allocation4 + $0x28] sm:$0xf] %vm223, 0
  %244 = vst.msk [vmem:[#allocation4 + $0x2c] sm:$0xf] %vm223, 0
  %245 = vst.msk [vmem:[#allocation4 + $0x30] sm:$0xf] %vm223, 0
  %246 = vst.msk [vmem:[#allocation4 + $0x34] sm:$0xf] %vm223, 0
  %247 = vst.msk [vmem:[#allocation4 + $0x38] sm:$0xf] %vm223, 0
  %248 = vst.msk [vmem:[#allocation4 + $0x3c] sm:$0xf] %vm223, 0
  %v249 = vld [vmem:[%s0] sm:$0xf]
  %v250 = vpack.c.bf16 %v249, %v249
  %v251 = vld [vmem:[%s1] sm:$0xff]
  %v252 = vld [vmem:[%s1 + $0x8] sm:$0xff]
  %v253 = vld [vmem:[%s1 + $0x10] sm:$0xff]
  %v254 = vld [vmem:[%s1 + $0x18] sm:$0xff]
  %v255 = vld [vmem:[%s1 + $0x20] sm:$0xff]
  %v256 = vld [vmem:[%s1 + $0x28] sm:$0xff]
  %v257 = vld [vmem:[%s1 + $0x30] sm:$0xff]
  %v258 = vld [vmem:[%s1 + $0x38] sm:$0xff]
  %v259 = vld [vmem:[%s1 + $0x40] sm:$0xff]
  %v260 = vld [vmem:[%s1 + $0x48] sm:$0xff]
  %v261 = vld [vmem:[%s1 + $0x50] sm:$0xff]
  %v262 = vld [vmem:[%s1 + $0x58] sm:$0xff]
  %v263 = vld [vmem:[%s1 + $0x60] sm:$0xff]
  %v264 = vld [vmem:[%s1 + $0x68] sm:$0xff]
  %v265 = vld [vmem:[%s1 + $0x70] sm:$0xff]
  %v266 = vld [vmem:[%s1 + $0x78] sm:$0xff]
  %v267 = vld [vmem:[%s1 + $0x80] sm:$0xff]
  %v268 = vld [vmem:[%s1 + $0x88] sm:$0xff]
  %v269 = vld [vmem:[%s1 + $0x90] sm:$0xff]
  %v270 = vld [vmem:[%s1 + $0x98] sm:$0xff]
  %v271 = vld [vmem:[%s1 + $0xa0] sm:$0xff]
  %v272 = vld [vmem:[%s1 + $0xa8] sm:$0xff]
  %v273 = vld [vmem:[%s1 + $0xb0] sm:$0xff]
  %v274 = vld [vmem:[%s1 + $0xb8] sm:$0xff]
  %v275 = vld [vmem:[%s1 + $0xc0] sm:$0xff]
  %v276 = vld [vmem:[%s1 + $0xc8] sm:$0xff]
  %v277 = vld [vmem:[%s1 + $0xd0] sm:$0xff]
  %v278 = vld [vmem:[%s1 + $0xd8] sm:$0xff]
  %v279 = vld [vmem:[%s1 + $0xe0] sm:$0xff]
  %v280 = vld [vmem:[%s1 + $0xe8] sm:$0xff]
  %v281 = vld [vmem:[%s1 + $0xf0] sm:$0xff]
  %v282 = vld [vmem:[%s1 + $0xf8] sm:$0xff]
  %v283 = vld [vmem:[%s1 + $0x100] sm:$0xff]
  %v284 = vld [vmem:[%s1 + $0x108] sm:$0xff]
  %v285 = vld [vmem:[%s1 + $0x110] sm:$0xff]
  %v286 = vld [vmem:[%s1 + $0x118] sm:$0xff]
  %v287 = vld [vmem:[%s1 + $0x120] sm:$0xff]
  %v288 = vld [vmem:[%s1 + $0x128] sm:$0xff]
  %v289 = vld [vmem:[%s1 + $0x130] sm:$0xff]
  %v290 = vld [vmem:[%s1 + $0x138] sm:$0xff]
  %v291 = vld [vmem:[%s1 + $0x140] sm:$0xff]
  %v292 = vld [vmem:[%s1 + $0x148] sm:$0xff]
  %v293 = vld [vmem:[%s1 + $0x150] sm:$0xff]
  %v294 = vld [vmem:[%s1 + $0x158] sm:$0xff]
  %v295 = vld [vmem:[%s1 + $0x160] sm:$0xff]
  %v296 = vld [vmem:[%s1 + $0x168] sm:$0xff]
  %v297 = vld [vmem:[%s1 + $0x170] sm:$0xff]
  %v298 = vld [vmem:[%s1 + $0x178] sm:$0xff]
  %v299 = vld [vmem:[%s1 + $0x180] sm:$0xff]
  %v300 = vld [vmem:[%s1 + $0x188] sm:$0xff]
  %v301 = vld [vmem:[%s1 + $0x190] sm:$0xff]
  %v302 = vld [vmem:[%s1 + $0x198] sm:$0xff]
  %v303 = vld [vmem:[%s1 + $0x1a0] sm:$0xff]
  %v304 = vld [vmem:[%s1 + $0x1a8] sm:$0xff]
  %v305 = vld [vmem:[%s1 + $0x1b0] sm:$0xff]
  %v306 = vld [vmem:[%s1 + $0x1b8] sm:$0xff]
  %v307 = vld [vmem:[%s1 + $0x1c0] sm:$0xff]
  %v308 = vld [vmem:[%s1 + $0x1c8] sm:$0xff]
  %v309 = vld [vmem:[%s1 + $0x1d0] sm:$0xff]
  %v310 = vld [vmem:[%s1 + $0x1d8] sm:$0xff]
  %v311 = vld [vmem:[%s1 + $0x1e0] sm:$0xff]
  %v312 = vld [vmem:[%s1 + $0x1e8] sm:$0xff]
  %v313 = vld [vmem:[%s1 + $0x1f0] sm:$0xff]
  %v314 = vld [vmem:[%s1 + $0x1f8] sm:$0xff]
  %v315 = vld [vmem:[%s1 + $0x200] sm:$0xff]
  %v316 = vld [vmem:[%s1 + $0x208] sm:$0xff]
  %v317 = vld [vmem:[%s1 + $0x210] sm:$0xff]
  %v318 = vld [vmem:[%s1 + $0x218] sm:$0xff]
  %v319 = vld [vmem:[%s1 + $0x220] sm:$0xff]
  %v320 = vld [vmem:[%s1 + $0x228] sm:$0xff]
  %v321 = vld [vmem:[%s1 + $0x230] sm:$0xff]
  %v322 = vld [vmem:[%s1 + $0x238] sm:$0xff]
  %v323 = vld [vmem:[%s1 + $0x240] sm:$0xff]
  %v324 = vld [vmem:[%s1 + $0x248] sm:$0xff]
  %v325 = vld [vmem:[%s1 + $0x250] sm:$0xff]
  %v326 = vld [vmem:[%s1 + $0x258] sm:$0xff]
  %v327 = vld [vmem:[%s1 + $0x260] sm:$0xff]
  %v328 = vld [vmem:[%s1 + $0x268] sm:$0xff]
  %v329 = vld [vmem:[%s1 + $0x270] sm:$0xff]
  %v330 = vld [vmem:[%s1 + $0x278] sm:$0xff]
  %v331 = vld [vmem:[%s1 + $0x280] sm:$0xff]
  %v332 = vld [vmem:[%s1 + $0x288] sm:$0xff]
  %v333 = vld [vmem:[%s1 + $0x290] sm:$0xff]
  %v334 = vld [vmem:[%s1 + $0x298] sm:$0xff]
  %v335 = vld [vmem:[%s1 + $0x2a0] sm:$0x33]
  %v336 = vld [vmem:[%s1 + $0x2a8] sm:$0x33]
  %v337 = vld [vmem:[%s1 + $0x2b0] sm:$0x33]
  %v338 = vld [vmem:[%s1 + $0x2b8] sm:$0x33]
  %v339 = vld [vmem:[%s1 + $0x2c0] sm:$0x33]
  %v340 = vld [vmem:[%s1 + $0x2c8] sm:$0x33]
  %v341 = vld [vmem:[%s1 + $0x2d0] sm:$0x33]
  %v433 = vunpack.c.l.b16 %v251
  %v434 = vunpack.c.h.b16 %v251
  %v435 = vunpack.c.l.b16 %v252
  %v436 = vunpack.c.h.b16 %v252
  %v437 = vunpack.c.l.b16 %v253
  %v438 = vunpack.c.h.b16 %v253
  %v439 = vunpack.c.l.b16 %v254
  %v440 = vunpack.c.h.b16 %v254
  %v441 = vunpack.c.l.b16 %v255
  %v442 = vunpack.c.h.b16 %v255
  %v443 = vunpack.c.l.b16 %v256
  %v444 = vunpack.c.h.b16 %v256
  %v445 = vunpack.c.l.b16 %v257
  %v446 = vunpack.c.h.b16 %v257
  %v447 = vunpack.c.l.b16 %v258
  %v448 = vunpack.c.h.b16 %v258
  %v449 = vunpack.c.l.b16 %v259
  %v450 = vunpack.c.h.b16 %v259
  %v451 = vunpack.c.l.b16 %v260
  %v452 = vunpack.c.h.b16 %v260
  %v453 = vunpack.c.l.b16 %v261
  %v454 = vunpack.c.h.b16 %v261
  %v455 = vunpack.c.l.b16 %v262
  %v456 = vunpack.c.h.b16 %v262
  %v457 = vunpack.c.l.b16 %v263
  %v458 = vunpack.c.h.b16 %v263
  %v459 = vunpack.c.l.b16 %v264
  %v460 = vunpack.c.h.b16 %v264
  %v461 = vunpack.c.l.b16 %v265
  %v462 = vunpack.c.h.b16 %v265
  %v463 = vunpack.c.l.b16 %v266
  %v464 = vunpack.c.h.b16 %v266
  %v465 = vunpack.c.l.b16 %v267
  %v466 = vunpack.c.h.b16 %v267
  %v467 = vunpack.c.l.b16 %v268
  %v468 = vunpack.c.h.b16 %v268
  %v469 = vunpack.c.l.b16 %v269
  %v470 = vunpack.c.h.b16 %v269
  %v471 = vunpack.c.l.b16 %v270
  %v472 = vunpack.c.h.b16 %v270
  %v473 = vunpack.c.l.b16 %v271
  %v474 = vunpack.c.h.b16 %v271
  %v475 = vunpack.c.l.b16 %v272
  %v476 = vunpack.c.h.b16 %v272
  %v477 = vunpack.c.l.b16 %v273
  %v478 = vunpack.c.h.b16 %v273
  %v479 = vunpack.c.l.b16 %v274
  %v480 = vunpack.c.h.b16 %v274
  %v481 = vunpack.c.l.b16 %v275
  %v482 = vunpack.c.h.b16 %v275
  %v483 = vunpack.c.l.b16 %v276
  %v484 = vunpack.c.h.b16 %v276
  %v485 = vunpack.c.l.b16 %v277
  %v486 = vunpack.c.h.b16 %v277
  %v487 = vunpack.c.l.b16 %v278
  %v488 = vunpack.c.h.b16 %v278
  %v489 = vunpack.c.l.b16 %v279
  %v490 = vunpack.c.h.b16 %v279
  %v491 = vunpack.c.l.b16 %v280
  %v492 = vunpack.c.h.b16 %v280
  %v493 = vunpack.c.l.b16 %v281
  %v494 = vunpack.c.h.b16 %v281
  %v495 = vunpack.c.l.b16 %v282
  %v496 = vunpack.c.h.b16 %v282
  %v497 = vunpack.c.l.b16 %v283
  %v498 = vunpack.c.h.b16 %v283
  %v499 = vunpack.c.l.b16 %v284
  %v500 = vunpack.c.h.b16 %v284
  %v501 = vunpack.c.l.b16 %v285
  %v502 = vunpack.c.h.b16 %v285
  %v503 = vunpack.c.l.b16 %v286
  %v504 = vunpack.c.h.b16 %v286
  %v505 = vunpack.c.l.b16 %v287
  %v506 = vunpack.c.h.b16 %v287
  %v507 = vunpack.c.l.b16 %v288
  %v508 = vunpack.c.h.b16 %v288
  %v509 = vunpack.c.l.b16 %v289
  %v510 = vunpack.c.h.b16 %v289
  %v511 = vunpack.c.l.b16 %v290
  %v512 = vunpack.c.h.b16 %v290
  %v513 = vunpack.c.l.b16 %v291
  %v514 = vunpack.c.h.b16 %v291
  %v515 = vunpack.c.l.b16 %v292
  %v516 = vunpack.c.h.b16 %v292
  %v517 = vunpack.c.l.b16 %v293
  %v518 = vunpack.c.h.b16 %v293
  %v519 = vunpack.c.l.b16 %v294
  %v520 = vunpack.c.h.b16 %v294
  %v521 = vunpack.c.l.b16 %v295
  %v522 = vunpack.c.h.b16 %v295
  %v523 = vunpack.c.l.b16 %v296
  %v524 = vunpack.c.h.b16 %v296
  %v525 = vunpack.c.l.b16 %v297
  %v526 = vunpack.c.h.b16 %v297
  %v527 = vunpack.c.l.b16 %v298
  %v528 = vunpack.c.h.b16 %v298
  %v529 = vunpack.c.l.b16 %v299
  %v530 = vunpack.c.h.b16 %v299
  %v531 = vunpack.c.l.b16 %v300
  %v532 = vunpack.c.h.b16 %v300
  %v533 = vunpack.c.l.b16 %v301
  %v534 = vunpack.c.h.b16 %v301
  %v535 = vunpack.c.l.b16 %v302
  %v536 = vunpack.c.h.b16 %v302
  %v537 = vunpack.c.l.b16 %v303
  %v538 = vunpack.c.h.b16 %v303
  %v539 = vunpack.c.l.b16 %v304
  %v540 = vunpack.c.h.b16 %v304
  %v541 = vunpack.c.l.b16 %v305
  %v542 = vunpack.c.h.b16 %v305
  %v543 = vunpack.c.l.b16 %v306
  %v544 = vunpack.c.h.b16 %v306
  %v545 = vunpack.c.l.b16 %v307
  %v546 = vunpack.c.h.b16 %v307
  %v547 = vunpack.c.l.b16 %v308
  %v548 = vunpack.c.h.b16 %v308
  %v549 = vunpack.c.l.b16 %v309
  %v550 = vunpack.c.h.b16 %v309
  %v551 = vunpack.c.l.b16 %v310
  %v552 = vunpack.c.h.b16 %v310
  %v553 = vunpack.c.l.b16 %v311
  %v554 = vunpack.c.h.b16 %v311
  %v555 = vunpack.c.l.b16 %v312
  %v556 = vunpack.c.h.b16 %v312
  %v557 = vunpack.c.l.b16 %v313
  %v558 = vunpack.c.h.b16 %v313
  %v559 = vunpack.c.l.b16 %v314
  %v560 = vunpack.c.h.b16 %v314
  %v561 = vunpack.c.l.b16 %v315
  %v562 = vunpack.c.h.b16 %v315
  %v563 = vunpack.c.l.b16 %v316
  %v564 = vunpack.c.h.b16 %v316
  %v565 = vunpack.c.l.b16 %v317
  %v566 = vunpack.c.h.b16 %v317
  %v567 = vunpack.c.l.b16 %v318
  %v568 = vunpack.c.h.b16 %v318
  %v569 = vunpack.c.l.b16 %v319
  %v570 = vunpack.c.h.b16 %v319
  %v571 = vunpack.c.l.b16 %v320
  %v572 = vunpack.c.h.b16 %v320
  %v573 = vunpack.c.l.b16 %v321
  %v574 = vunpack.c.h.b16 %v321
  %v575 = vunpack.c.l.b16 %v322
  %v576 = vunpack.c.h.b16 %v322
  %v577 = vunpack.c.l.b16 %v323
  %v578 = vunpack.c.h.b16 %v323
  %v579 = vunpack.c.l.b16 %v324
  %v580 = vunpack.c.h.b16 %v324
  %v581 = vunpack.c.l.b16 %v325
  %v582 = vunpack.c.h.b16 %v325
  %v583 = vunpack.c.l.b16 %v326
  %v584 = vunpack.c.h.b16 %v326
  %v585 = vunpack.c.l.b16 %v327
  %v586 = vunpack.c.h.b16 %v327
  %v587 = vunpack.c.l.b16 %v328
  %v588 = vunpack.c.h.b16 %v328
  %v589 = vunpack.c.l.b16 %v329
  %v590 = vunpack.c.h.b16 %v329
  %v591 = vunpack.c.l.b16 %v330
  %v592 = vunpack.c.h.b16 %v330
  %v593 = vunpack.c.l.b16 %v331
  %v594 = vunpack.c.h.b16 %v331
  %v595 = vunpack.c.l.b16 %v332
  %v596 = vunpack.c.h.b16 %v332
  %v597 = vunpack.c.l.b16 %v333
  %v598 = vunpack.c.h.b16 %v333
  %v599 = vunpack.c.l.b16 %v334
  %v600 = vunpack.c.h.b16 %v334
  %v601 = vunpack.c.l.b16 %v335
  %v602 = vunpack.c.h.b16 %v335
  %v603 = vunpack.c.l.b16 %v336
  %v604 = vunpack.c.h.b16 %v336
  %v605 = vunpack.c.l.b16 %v337
  %v606 = vunpack.c.h.b16 %v337
  %v607 = vunpack.c.l.b16 %v338
  %v608 = vunpack.c.h.b16 %v338
  %v609 = vunpack.c.l.b16 %v339
  %v610 = vunpack.c.h.b16 %v339
  %v611 = vunpack.c.l.b16 %v340
  %v612 = vunpack.c.h.b16 %v340
  %v613 = vunpack.c.l.b16 %v341
  %v614 = vunpack.c.h.b16 %v341
  %v615 = vpack.c.b16 %v447, %v433
  %v616 = vpack.c.b16 %v448, %v434
  %v617 = vpack.c.b16 %v449, %v435
  %v618 = vpack.c.b16 %v450, %v436
  %v619 = vpack.c.b16 %v451, %v437
  %v620 = vpack.c.b16 %v452, %v438
  %v621 = vpack.c.b16 %v453, %v439
  %v622 = vpack.c.b16 %v454, %v440
  %v623 = vpack.c.b16 %v455, %v441
  %v624 = vpack.c.b16 %v456, %v442
  %v625 = vpack.c.b16 %v457, %v443
  %v626 = vpack.c.b16 %v458, %v444
  %v627 = vpack.c.b16 %v459, %v445
  %v628 = vpack.c.b16 %v460, %v446
  %v629 = vpack.c.b16 %v475, %v461
  %v630 = vpack.c.b16 %v476, %v462
  %v631 = vpack.c.b16 %v477, %v463
  %v632 = vpack.c.b16 %v478, %v464
  %v633 = vpack.c.b16 %v479, %v465
  %v634 = vpack.c.b16 %v480, %v466
  %v635 = vpack.c.b16 %v481, %v467
  %v636 = vpack.c.b16 %v482, %v468
  %v637 = vpack.c.b16 %v483, %v469
  %v638 = vpack.c.b16 %v484, %v470
  %v639 = vpack.c.b16 %v485, %v471
  %v640 = vpack.c.b16 %v486, %v472
  %v641 = vpack.c.b16 %v487, %v473
  %v642 = vpack.c.b16 %v488, %v474
  %v643 = vpack.c.b16 %v503, %v489
  %v644 = vpack.c.b16 %v504, %v490
  %v645 = vpack.c.b16 %v505, %v491
  %v646 = vpack.c.b16 %v506, %v492
  %v647 = vpack.c.b16 %v507, %v493
  %v648 = vpack.c.b16 %v508, %v494
  %v649 = vpack.c.b16 %v509, %v495
  %v650 = vpack.c.b16 %v510, %v496
  %v651 = vpack.c.b16 %v511, %v497
  %v652 = vpack.c.b16 %v512, %v498
  %v653 = vpack.c.b16 %v513, %v499
  %v654 = vpack.c.b16 %v514, %v500
  %v655 = vpack.c.b16 %v515, %v501
  %v656 = vpack.c.b16 %v516, %v502
  %v657 = vpack.c.b16 %v531, %v517
  %v658 = vpack.c.b16 %v532, %v518
  %v659 = vpack.c.b16 %v533, %v519
  %v660 = vpack.c.b16 %v534, %v520
  %v661 = vpack.c.b16 %v535, %v521
  %v662 = vpack.c.b16 %v536, %v522
  %v663 = vpack.c.b16 %v537, %v523
  %v664 = vpack.c.b16 %v538, %v524
  %v665 = vpack.c.b16 %v539, %v525
  %v666 = vpack.c.b16 %v540, %v526
  %v667 = vpack.c.b16 %v541, %v527
  %v668 = vpack.c.b16 %v542, %v528
  %v669 = vpack.c.b16 %v543, %v529
  %v670 = vpack.c.b16 %v544, %v530
  %v671 = vpack.c.b16 %v559, %v545
  %v672 = vpack.c.b16 %v560, %v546
  %v673 = vpack.c.b16 %v561, %v547
  %v674 = vpack.c.b16 %v562, %v548
  %v675 = vpack.c.b16 %v563, %v549
  %v676 = vpack.c.b16 %v564, %v550
  %v677 = vpack.c.b16 %v565, %v551
  %v678 = vpack.c.b16 %v566, %v552
  %v679 = vpack.c.b16 %v567, %v553
  %v680 = vpack.c.b16 %v568, %v554
  %v681 = vpack.c.b16 %v569, %v555
  %v682 = vpack.c.b16 %v570, %v556
  %v683 = vpack.c.b16 %v571, %v557
  %v684 = vpack.c.b16 %v572, %v558
  %v685 = vpack.c.b16 %v587, %v573
  %v686 = vpack.c.b16 %v588, %v574
  %v687 = vpack.c.b16 %v589, %v575
  %v688 = vpack.c.b16 %v590, %v576
  %v689 = vpack.c.b16 %v591, %v577
  %v690 = vpack.c.b16 %v592, %v578
  %v691 = vpack.c.b16 %v593, %v579
  %v692 = vpack.c.b16 %v594, %v580
  %v693 = vpack.c.b16 %v595, %v581
  %v694 = vpack.c.b16 %v596, %v582
  %v695 = vpack.c.b16 %v597, %v583
  %v696 = vpack.c.b16 %v598, %v584
  %v697 = vpack.c.b16 %v599, %v585
  %v698 = vpack.c.b16 %v600, %v586
  %v699 = vpack.c.b16 %v601, %v601
  %v700 = vpack.c.b16 %v602, %v602
  %v701 = vpack.c.b16 %v603, %v603
  %v702 = vpack.c.b16 %v604, %v604
  %v703 = vpack.c.b16 %v605, %v605
  %v704 = vpack.c.b16 %v606, %v606
  %v705 = vpack.c.b16 %v607, %v607
  %v706 = vpack.c.b16 %v608, %v608
  %v707 = vpack.c.b16 %v609, %v609
  %v708 = vpack.c.b16 %v610, %v610
  %v709 = vpack.c.b16 %v611, %v611
  %v710 = vpack.c.b16 %v612, %v612
  %v711 = vpack.c.b16 %v613, %v613
  %v712 = vpack.c.b16 %v614, %v614
  %vm797 = vcmask 818176
  %v799 = vsel %vm797, %v250, 0
  %vm801 = vcmask 1041408
  %v803 = vsel %vm801, %v699, 0
  %v806 = vsel %vm801, %v700, 0
  %v809 = vsel %vm801, %v701, 0
  %v812 = vsel %vm801, %v702, 0
  %v815 = vsel %vm801, %v703, 0
  %v818 = vsel %vm801, %v704, 0
  %v821 = vsel %vm801, %v705, 0
  %v824 = vsel %vm801, %v706, 0
  %v827 = vsel %vm801, %v707, 0
  %v830 = vsel %vm801, %v708, 0
  %v833 = vsel %vm801, %v709, 0
  %v836 = vsel %vm801, %v710, 0
  %v839 = vsel %vm801, %v711, 0
  %v842 = vsel %vm801, %v712, 0
  %844 = vmatpush.bf16.msra.mxu0 0
  %845 = vmatpush.bf16.msra.mxu0 %v803
  %846 = vmatpush.bf16.msra.mxu0 %v685
  %847 = vmatpush.bf16.msra.mxu0 %v671
  %848 = vmatpush.bf16.msra.mxu0 %v657
  %849 = vmatpush.bf16.msra.mxu0 %v643
  %850 = vmatpush.bf16.msra.mxu0 %v629
  %851 = vmatpush.bf16.msra.mxu0 %v615
  %852 = vmatmul.bf16.gmra.mxu0 %v799
  %v853 = vpop.f32.mrf.mxu0
  %v854 = vadd.f32 0.0, %v853
  %v855 = vpop.f32.mrf.mxu0
  %856 = vdwg.mxu0
  %857 = vmatpush.bf16.msra.mxu0 0
  %858 = vmatpush.bf16.msra.mxu0 %v806
  %859 = vmatpush.bf16.msra.mxu0 %v686
  %860 = vmatpush.bf16.msra.mxu0 %v672
  %861 = vmatpush.bf16.msra.mxu0 %v658
  %862 = vmatpush.bf16.msra.mxu0 %v644
  %863 = vmatpush.bf16.msra.mxu0 %v630
  %864 = vmatpush.bf16.msra.mxu0 %v616
  %865 = vmatmul.bf16.gmra.mxu0 %v799
  %v866 = vpop.f32.mrf.mxu0
  %v867 = vadd.f32 0.0, %v866
  %v868 = vpop.f32.mrf.mxu0
  %869 = vdwg.mxu0
  %870 = vmatpush.bf16.msra.mxu0 0
  %871 = vmatpush.bf16.msra.mxu0 %v809
  %872 = vmatpush.bf16.msra.mxu0 %v687
  %873 = vmatpush.bf16.msra.mxu0 %v673
  %874 = vmatpush.bf16.msra.mxu0 %v659
  %875 = vmatpush.bf16.msra.mxu0 %v645
  %876 = vmatpush.bf16.msra.mxu0 %v631
  %877 = vmatpush.bf16.msra.mxu0 %v617
  %878 = vmatmul.bf16.gmra.mxu0 %v799
  %v879 = vpop.f32.mrf.mxu0
  %v880 = vadd.f32 0.0, %v879
  %v881 = vpop.f32.mrf.mxu0
  %882 = vdwg.mxu0
  %883 = vmatpush.bf16.msra.mxu0 0
  %884 = vmatpush.bf16.msra.mxu0 %v812
  %885 = vmatpush.bf16.msra.mxu0 %v688
  %886 = vmatpush.bf16.msra.mxu0 %v674
  %887 = vmatpush.bf16.msra.mxu0 %v660
  %888 = vmatpush.bf16.msra.mxu0 %v646
  %889 = vmatpush.bf16.msra.mxu0 %v632
  %890 = vmatpush.bf16.msra.mxu0 %v618
  %891 = vmatmul.bf16.gmra.mxu0 %v799
  %v892 = vpop.f32.mrf.mxu0
  %v893 = vadd.f32 0.0, %v892
  %v894 = vpop.f32.mrf.mxu0
  %895 = vdwg.mxu0
  %896 = vmatpush.bf16.msra.mxu0 0
  %897 = vmatpush.bf16.msra.mxu0 %v815
  %898 = vmatpush.bf16.msra.mxu0 %v689
  %899 = vmatpush.bf16.msra.mxu0 %v675
  %900 = vmatpush.bf16.msra.mxu0 %v661
  %901 = vmatpush.bf16.msra.mxu0 %v647
  %902 = vmatpush.bf16.msra.mxu0 %v633
  %903 = vmatpush.bf16.msra.mxu0 %v619
  %904 = vmatmul.bf16.gmra.mxu0 %v799
  %v905 = vpop.f32.mrf.mxu0
  %v906 = vadd.f32 0.0, %v905
  %v907 = vpop.f32.mrf.mxu0
  %908 = vdwg.mxu0
  %909 = vmatpush.bf16.msra.mxu0 0
  %910 = vmatpush.bf16.msra.mxu0 %v818
  %911 = vmatpush.bf16.msra.mxu0 %v690
  %912 = vmatpush.bf16.msra.mxu0 %v676
  %913 = vmatpush.bf16.msra.mxu0 %v662
  %914 = vmatpush.bf16.msra.mxu0 %v648
  %915 = vmatpush.bf16.msra.mxu0 %v634
  %916 = vmatpush.bf16.msra.mxu0 %v620
  %917 = vmatmul.bf16.gmra.mxu0 %v799
  %v918 = vpop.f32.mrf.mxu0
  %v919 = vadd.f32 0.0, %v918
  %v920 = vpop.f32.mrf.mxu0
  %921 = vdwg.mxu0
  %922 = vmatpush.bf16.msra.mxu0 0
  %923 = vmatpush.bf16.msra.mxu0 %v821
  %924 = vmatpush.bf16.msra.mxu0 %v691
  %925 = vmatpush.bf16.msra.mxu0 %v677
  %926 = vmatpush.bf16.msra.mxu0 %v663
  %927 = vmatpush.bf16.msra.mxu0 %v649
  %928 = vmatpush.bf16.msra.mxu0 %v635
  %929 = vmatpush.bf16.msra.mxu0 %v621
  %930 = vmatmul.bf16.gmra.mxu0 %v799
  %v931 = vpop.f32.mrf.mxu0
  %v932 = vadd.f32 0.0, %v931
  %v933 = vpop.f32.mrf.mxu0
  %934 = vdwg.mxu0
  %935 = vmatpush.bf16.msra.mxu0 0
  %936 = vmatpush.bf16.msra.mxu0 %v824
  %937 = vmatpush.bf16.msra.mxu0 %v692
  %938 = vmatpush.bf16.msra.mxu0 %v678
  %939 = vmatpush.bf16.msra.mxu0 %v664
  %940 = vmatpush.bf16.msra.mxu0 %v650
  %941 = vmatpush.bf16.msra.mxu0 %v636
  %942 = vmatpush.bf16.msra.mxu0 %v622
  %943 = vmatmul.bf16.gmra.mxu0 %v799
  %v944 = vpop.f32.mrf.mxu0
  %v945 = vadd.f32 0.0, %v944
  %v946 = vpop.f32.mrf.mxu0
  %947 = vdwg.mxu0
  %948 = vmatpush.bf16.msra.mxu0 0
  %949 = vmatpush.bf16.msra.mxu0 %v827
  %950 = vmatpush.bf16.msra.mxu0 %v693
  %951 = vmatpush.bf16.msra.mxu0 %v679
  %952 = vmatpush.bf16.msra.mxu0 %v665
  %953 = vmatpush.bf16.msra.mxu0 %v651
  %954 = vmatpush.bf16.msra.mxu0 %v637
  %955 = vmatpush.bf16.msra.mxu0 %v623
  %956 = vmatmul.bf16.gmra.mxu0 %v799
  %v957 = vpop.f32.mrf.mxu0
  %v958 = vadd.f32 0.0, %v957
  %v959 = vpop.f32.mrf.mxu0
  %960 = vdwg.mxu0
  %961 = vmatpush.bf16.msra.mxu0 0
  %962 = vmatpush.bf16.msra.mxu0 %v830
  %963 = vmatpush.bf16.msra.mxu0 %v694
  %964 = vmatpush.bf16.msra.mxu0 %v680
  %965 = vmatpush.bf16.msra.mxu0 %v666
  %966 = vmatpush.bf16.msra.mxu0 %v652
  %967 = vmatpush.bf16.msra.mxu0 %v638
  %968 = vmatpush.bf16.msra.mxu0 %v624
  %969 = vmatmul.bf16.gmra.mxu0 %v799
  %v970 = vpop.f32.mrf.mxu0
  %v971 = vadd.f32 0.0, %v970
  %v972 = vpop.f32.mrf.mxu0
  %973 = vdwg.mxu0
  %974 = vmatpush.bf16.msra.mxu0 0
  %975 = vmatpush.bf16.msra.mxu0 %v833
  %976 = vmatpush.bf16.msra.mxu0 %v695
  %977 = vmatpush.bf16.msra.mxu0 %v681
  %978 = vmatpush.bf16.msra.mxu0 %v667
  %979 = vmatpush.bf16.msra.mxu0 %v653
  %980 = vmatpush.bf16.msra.mxu0 %v639
  %981 = vmatpush.bf16.msra.mxu0 %v625
  %982 = vmatmul.bf16.gmra.mxu0 %v799
  %v983 = vpop.f32.mrf.mxu0
  %v984 = vadd.f32 0.0, %v983
  %v985 = vpop.f32.mrf.mxu0
  %986 = vdwg.mxu0
  %987 = vmatpush.bf16.msra.mxu0 0
  %988 = vmatpush.bf16.msra.mxu0 %v836
  %989 = vmatpush.bf16.msra.mxu0 %v696
  %990 = vmatpush.bf16.msra.mxu0 %v682
  %991 = vmatpush.bf16.msra.mxu0 %v668
  %992 = vmatpush.bf16.msra.mxu0 %v654
  %993 = vmatpush.bf16.msra.mxu0 %v640
  %994 = vmatpush.bf16.msra.mxu0 %v626
  %995 = vmatmul.bf16.gmra.mxu0 %v799
  %v996 = vpop.f32.mrf.mxu0
  %v997 = vadd.f32 0.0, %v996
  %v998 = vpop.f32.mrf.mxu0
  %999 = vdwg.mxu0
  %1000 = vmatpush.bf16.msra.mxu0 0
  %1001 = vmatpush.bf16.msra.mxu0 %v839
  %1002 = vmatpush.bf16.msra.mxu0 %v697
  %1003 = vmatpush.bf16.msra.mxu0 %v683
  %1004 = vmatpush.bf16.msra.mxu0 %v669
  %1005 = vmatpush.bf16.msra.mxu0 %v655
  %1006 = vmatpush.bf16.msra.mxu0 %v641
  %1007 = vmatpush.bf16.msra.mxu0 %v627
  %1008 = vmatmul.bf16.gmra.mxu0 %v799
  %v1009 = vpop.f32.mrf.mxu0
  %v1010 = vadd.f32 0.0, %v1009
  %v1011 = vpop.f32.mrf.mxu0
  %1012 = vdwg.mxu0
  %1013 = vmatpush.bf16.msra.mxu0 0
  %1014 = vmatpush.bf16.msra.mxu0 %v842
  %1015 = vmatpush.bf16.msra.mxu0 %v698
  %1016 = vmatpush.bf16.msra.mxu0 %v684
  %1017 = vmatpush.bf16.msra.mxu0 %v670
  %1018 = vmatpush.bf16.msra.mxu0 %v656
  %1019 = vmatpush.bf16.msra.mxu0 %v642
  %1020 = vmatpush.bf16.msra.mxu0 %v628
  %1021 = vmatmul.bf16.gmra.mxu0 %v799
  %v1022 = vpop.f32.mrf.mxu0
  %v1023 = vadd.f32 0.0, %v1022
  %v1024 = vpop.f32.mrf.mxu0
  %1025 = vdwg.mxu0
  %vm1026 = vcmask 1043456
  %v1027 = vsel %vm1026, %v854, 0.0
  %v1028 = vrot.slane %v1027, 4
  %v1029 = vadd.f32 %v1027, %v1028
  %v1030 = vrot.slane %v1029, 2
  %v1031 = vadd.f32 %v1029, %v1030
  %v1032 = vrot.slane %v1031, 1
  %v1033 = vadd.f32 %v1031, %v1032
  %v1034 = vsel %vm1026, %v867, 0.0
  %v1035 = vrot.slane %v1034, 4
  %v1036 = vadd.f32 %v1034, %v1035
  %v1037 = vrot.slane %v1036, 2
  %v1038 = vadd.f32 %v1036, %v1037
  %v1039 = vrot.slane %v1038, 1
  %v1040 = vadd.f32 %v1038, %v1039
  %v1041 = vsel %vm1026, %v880, 0.0
  %v1042 = vrot.slane %v1041, 4
  %v1043 = vadd.f32 %v1041, %v1042
  %v1044 = vrot.slane %v1043, 2
  %v1045 = vadd.f32 %v1043, %v1044
  %v1046 = vrot.slane %v1045, 1
  %v1047 = vadd.f32 %v1045, %v1046
  %v1048 = vsel %vm1026, %v893, 0.0
  %v1049 = vrot.slane %v1048, 4
  %v1050 = vadd.f32 %v1048, %v1049
  %v1051 = vrot.slane %v1050, 2
  %v1052 = vadd.f32 %v1050, %v1051
  %v1053 = vrot.slane %v1052, 1
  %v1054 = vadd.f32 %v1052, %v1053
  %v1055 = vsel %vm1026, %v906, 0.0
  %v1056 = vrot.slane %v1055, 4
  %v1057 = vadd.f32 %v1055, %v1056
  %v1058 = vrot.slane %v1057, 2
  %v1059 = vadd.f32 %v1057, %v1058
  %v1060 = vrot.slane %v1059, 1
  %v1061 = vadd.f32 %v1059, %v1060
  %v1062 = vsel %vm1026, %v919, 0.0
  %v1063 = vrot.slane %v1062, 4
  %v1064 = vadd.f32 %v1062, %v1063
  %v1065 = vrot.slane %v1064, 2
  %v1066 = vadd.f32 %v1064, %v1065
  %v1067 = vrot.slane %v1066, 1
  %v1068 = vadd.f32 %v1066, %v1067
  %v1069 = vsel %vm1026, %v932, 0.0
  %v1070 = vrot.slane %v1069, 4
  %v1071 = vadd.f32 %v1069, %v1070
  %v1072 = vrot.slane %v1071, 2
  %v1073 = vadd.f32 %v1071, %v1072
  %v1074 = vrot.slane %v1073, 1
  %v1075 = vadd.f32 %v1073, %v1074
  %v1076 = vsel %vm1026, %v945, 0.0
  %v1077 = vrot.slane %v1076, 4
  %v1078 = vadd.f32 %v1076, %v1077
  %v1079 = vrot.slane %v1078, 2
  %v1080 = vadd.f32 %v1078, %v1079
  %v1081 = vrot.slane %v1080, 1
  %v1082 = vadd.f32 %v1080, %v1081
  %v1083 = vsel %vm1026, %v958, 0.0
  %v1084 = vrot.slane %v1083, 4
  %v1085 = vadd.f32 %v1083, %v1084
  %v1086 = vrot.slane %v1085, 2
  %v1087 = vadd.f32 %v1085, %v1086
  %v1088 = vrot.slane %v1087, 1
  %v1089 = vadd.f32 %v1087, %v1088
  %v1090 = vsel %vm1026, %v971, 0.0
  %v1091 = vrot.slane %v1090, 4
  %v1092 = vadd.f32 %v1090, %v1091
  %v1093 = vrot.slane %v1092, 2
  %v1094 = vadd.f32 %v1092, %v1093
  %v1095 = vrot.slane %v1094, 1
  %v1096 = vadd.f32 %v1094, %v1095
  %v1097 = vsel %vm1026, %v984, 0.0
  %v1098 = vrot.slane %v1097, 4
  %v1099 = vadd.f32 %v1097, %v1098
  %v1100 = vrot.slane %v1099, 2
  %v1101 = vadd.f32 %v1099, %v1100
  %v1102 = vrot.slane %v1101, 1
  %v1103 = vadd.f32 %v1101, %v1102
  %v1104 = vsel %vm1026, %v997, 0.0
  %v1105 = vrot.slane %v1104, 4
  %v1106 = vadd.f32 %v1104, %v1105
  %v1107 = vrot.slane %v1106, 2
  %v1108 = vadd.f32 %v1106, %v1107
  %v1109 = vrot.slane %v1108, 1
  %v1110 = vadd.f32 %v1108, %v1109
  %v1111 = vsel %vm1026, %v1010, 0.0
  %v1112 = vrot.slane %v1111, 4
  %v1113 = vadd.f32 %v1111, %v1112
  %v1114 = vrot.slane %v1113, 2
  %v1115 = vadd.f32 %v1113, %v1114
  %v1116 = vrot.slane %v1115, 1
  %v1117 = vadd.f32 %v1115, %v1116
  %v1118 = vsel %vm1026, %v1023, 0.0
  %v1119 = vrot.slane %v1118, 4
  %v1120 = vadd.f32 %v1118, %v1119
  %v1121 = vrot.slane %v1120, 2
  %v1122 = vadd.f32 %v1120, %v1121
  %v1123 = vrot.slane %v1122, 1
  %v1124 = vadd.f32 %v1122, %v1123
  %v1125 = vrcp.pop 4.0
  %v1126 = vmul.f32 4.0, %v1125
  %v1127 = vsub.f32 1.0, %v1126
  %v1128 = vmul.f32 %v1125, %v1127
  %v1129 = vadd.f32 %v1125, %v1128
  %vm1130 = vweird.f32 %v1125
  %v1131 = vsel %vm1130, %v1125, %v1129
  %v1132 = vmul.f32 %v1033, %v1131
  %v1133 = vmul.f32 %v1040, %v1131
  %v1134 = vmul.f32 %v1047, %v1131
  %v1135 = vmul.f32 %v1054, %v1131
  %v1136 = vmul.f32 %v1061, %v1131
  %v1137 = vmul.f32 %v1068, %v1131
  %v1138 = vmul.f32 %v1075, %v1131
  %v1139 = vmul.f32 %v1082, %v1131
  %v1140 = vmul.f32 %v1089, %v1131
  %v1141 = vmul.f32 %v1096, %v1131
  %v1142 = vmul.f32 %v1103, %v1131
  %v1143 = vmul.f32 %v1110, %v1131
  %v1144 = vmul.f32 %v1117, %v1131
  %v1145 = vmul.f32 %v1124, %v1131
  %v1146 = vsub.f32 %v854, %v1132
  %v1147 = vsub.f32 %v867, %v1133
  %v1148 = vsub.f32 %v880, %v1134
  %v1149 = vsub.f32 %v893, %v1135
  %v1150 = vsub.f32 %v906, %v1136
  %v1151 = vsub.f32 %v919, %v1137
  %v1152 = vsub.f32 %v932, %v1138
  %v1153 = vsub.f32 %v945, %v1139
  %v1154 = vsub.f32 %v958, %v1140
  %v1155 = vsub.f32 %v971, %v1141
  %v1156 = vsub.f32 %v984, %v1142
  %v1157 = vsub.f32 %v997, %v1143
  %v1158 = vsub.f32 %v1010, %v1144
  %v1159 = vsub.f32 %v1023, %v1145
  %v1160 = vmul.f32 %v1146, %v1146
  %v1161 = vmul.f32 %v1147, %v1147
  %v1162 = vmul.f32 %v1148, %v1148
  %v1163 = vmul.f32 %v1149, %v1149
  %v1164 = vmul.f32 %v1150, %v1150
  %v1165 = vmul.f32 %v1151, %v1151
  %v1166 = vmul.f32 %v1152, %v1152
  %v1167 = vmul.f32 %v1153, %v1153
  %v1168 = vmul.f32 %v1154, %v1154
  %v1169 = vmul.f32 %v1155, %v1155
  %v1170 = vmul.f32 %v1156, %v1156
  %v1171 = vmul.f32 %v1157, %v1157
  %v1172 = vmul.f32 %v1158, %v1158
  %v1173 = vmul.f32 %v1159, %v1159
  %v1174 = vsel %vm1026, %v1160, 0.0
  %v1175 = vrot.slane %v1174, 4
  %v1176 = vadd.f32 %v1174, %v1175
  %v1177 = vrot.slane %v1176, 2
  %v1178 = vadd.f32 %v1176, %v1177
  %v1179 = vrot.slane %v1178, 1
  %v1180 = vadd.f32 %v1178, %v1179
  %v1181 = vsel %vm1026, %v1161, 0.0
  %v1182 = vrot.slane %v1181, 4
  %v1183 = vadd.f32 %v1181, %v1182
  %v1184 = vrot.slane %v1183, 2
  %v1185 = vadd.f32 %v1183, %v1184
  %v1186 = vrot.slane %v1185, 1
  %v1187 = vadd.f32 %v1185, %v1186
  %v1188 = vsel %vm1026, %v1162, 0.0
  %v1189 = vrot.slane %v1188, 4
  %v1190 = vadd.f32 %v1188, %v1189
  %v1191 = vrot.slane %v1190, 2
  %v1192 = vadd.f32 %v1190, %v1191
  %v1193 = vrot.slane %v1192, 1
  %v1194 = vadd.f32 %v1192, %v1193
  %v1195 = vsel %vm1026, %v1163, 0.0
  %v1196 = vrot.slane %v1195, 4
  %v1197 = vadd.f32 %v1195, %v1196
  %v1198 = vrot.slane %v1197, 2
  %v1199 = vadd.f32 %v1197, %v1198
  %v1200 = vrot.slane %v1199, 1
  %v1201 = vadd.f32 %v1199, %v1200
  %v1202 = vsel %vm1026, %v1164, 0.0
  %v1203 = vrot.slane %v1202, 4
  %v1204 = vadd.f32 %v1202, %v1203
  %v1205 = vrot.slane %v1204, 2
  %v1206 = vadd.f32 %v1204, %v1205
  %v1207 = vrot.slane %v1206, 1
  %v1208 = vadd.f32 %v1206, %v1207
  %v1209 = vsel %vm1026, %v1165, 0.0
  %v1210 = vrot.slane %v1209, 4
  %v1211 = vadd.f32 %v1209, %v1210
  %v1212 = vrot.slane %v1211, 2
  %v1213 = vadd.f32 %v1211, %v1212
  %v1214 = vrot.slane %v1213, 1
  %v1215 = vadd.f32 %v1213, %v1214
  %v1216 = vsel %vm1026, %v1166, 0.0
  %v1217 = vrot.slane %v1216, 4
  %v1218 = vadd.f32 %v1216, %v1217
  %v1219 = vrot.slane %v1218, 2
  %v1220 = vadd.f32 %v1218, %v1219
  %v1221 = vrot.slane %v1220, 1
  %v1222 = vadd.f32 %v1220, %v1221
  %v1223 = vsel %vm1026, %v1167, 0.0
  %v1224 = vrot.slane %v1223, 4
  %v1225 = vadd.f32 %v1223, %v1224
  %v1226 = vrot.slane %v1225, 2
  %v1227 = vadd.f32 %v1225, %v1226
  %v1228 = vrot.slane %v1227, 1
  %v1229 = vadd.f32 %v1227, %v1228
  %v1230 = vsel %vm1026, %v1168, 0.0
  %v1231 = vrot.slane %v1230, 4
  %v1232 = vadd.f32 %v1230, %v1231
  %v1233 = vrot.slane %v1232, 2
  %v1234 = vadd.f32 %v1232, %v1233
  %v1235 = vrot.slane %v1234, 1
  %v1236 = vadd.f32 %v1234, %v1235
  %v1237 = vsel %vm1026, %v1169, 0.0
  %v1238 = vrot.slane %v1237, 4
  %v1239 = vadd.f32 %v1237, %v1238
  %v1240 = vrot.slane %v1239, 2
  %v1241 = vadd.f32 %v1239, %v1240
  %v1242 = vrot.slane %v1241, 1
  %v1243 = vadd.f32 %v1241, %v1242
  %v1244 = vsel %vm1026, %v1170, 0.0
  %v1245 = vrot.slane %v1244, 4
  %v1246 = vadd.f32 %v1244, %v1245
  %v1247 = vrot.slane %v1246, 2
  %v1248 = vadd.f32 %v1246, %v1247
  %v1249 = vrot.slane %v1248, 1
  %v1250 = vadd.f32 %v1248, %v1249
  %v1251 = vsel %vm1026, %v1171, 0.0
  %v1252 = vrot.slane %v1251, 4
  %v1253 = vadd.f32 %v1251, %v1252
  %v1254 = vrot.slane %v1253, 2
  %v1255 = vadd.f32 %v1253, %v1254
  %v1256 = vrot.slane %v1255, 1
  %v1257 = vadd.f32 %v1255, %v1256
  %v1258 = vsel %vm1026, %v1172, 0.0
  %v1259 = vrot.slane %v1258, 4
  %v1260 = vadd.f32 %v1258, %v1259
  %v1261 = vrot.slane %v1260, 2
  %v1262 = vadd.f32 %v1260, %v1261
  %v1263 = vrot.slane %v1262, 1
  %v1264 = vadd.f32 %v1262, %v1263
  %v1265 = vsel %vm1026, %v1173, 0.0
  %v1266 = vrot.slane %v1265, 4
  %v1267 = vadd.f32 %v1265, %v1266
  %v1268 = vrot.slane %v1267, 2
  %v1269 = vadd.f32 %v1267, %v1268
  %v1270 = vrot.slane %v1269, 1
  %v1271 = vadd.f32 %v1269, %v1270
  %v1272 = vmul.f32 %v1180, %v1131
  %v1273 = vmul.f32 %v1187, %v1131
  %v1274 = vmul.f32 %v1194, %v1131
  %v1275 = vmul.f32 %v1201, %v1131
  %v1276 = vmul.f32 %v1208, %v1131
  %v1277 = vmul.f32 %v1215, %v1131
  %v1278 = vmul.f32 %v1222, %v1131
  %v1279 = vmul.f32 %v1229, %v1131
  %v1280 = vmul.f32 %v1236, %v1131
  %v1281 = vmul.f32 %v1243, %v1131
  %v1282 = vmul.f32 %v1250, %v1131
  %v1283 = vmul.f32 %v1257, %v1131
  %v1284 = vmul.f32 %v1264, %v1131
  %v1285 = vmul.f32 %v1271, %v1131
  %v1286 = vadd.f32 %v1272, 1e-05
  %v1287 = vadd.f32 %v1273, 1e-05
  %v1288 = vadd.f32 %v1274, 1e-05
  %v1289 = vadd.f32 %v1275, 1e-05
  %v1290 = vadd.f32 %v1276, 1e-05
  %v1291 = vadd.f32 %v1277, 1e-05
  %v1292 = vadd.f32 %v1278, 1e-05
  %v1293 = vadd.f32 %v1279, 1e-05
  %v1294 = vadd.f32 %v1280, 1e-05
  %v1295 = vadd.f32 %v1281, 1e-05
  %v1296 = vadd.f32 %v1282, 1e-05
  %v1297 = vadd.f32 %v1283, 1e-05
  %v1298 = vadd.f32 %v1284, 1e-05
  %v1299 = vadd.f32 %v1285, 1e-05
  %v1300 = vrsqrt.pop %v1286
  %v1301 = vmul.f32 %v1300, %v1286
  %v1302 = vmul.f32 %v1301, %v1300
  %v1303 = vmul.f32 0.5, %v1302
  %v1304 = vsub.f32 1.5, %v1303
  %v1305 = vmul.f32 %v1300, %v1304
  %vm1306 = vweird.f32 %v1286
  %vm1307 = vweird.f32 %v1300
  %vm1308 = vmor %vm1306, %vm1307
  %v1309 = vsel %vm1308, %v1300, %v1305
  %v1310 = vrsqrt.pop %v1287
  %v1311 = vmul.f32 %v1310, %v1287
  %v1312 = vmul.f32 %v1311, %v1310
  %v1313 = vmul.f32 0.5, %v1312
  %v1314 = vsub.f32 1.5, %v1313
  %v1315 = vmul.f32 %v1310, %v1314
  %vm1316 = vweird.f32 %v1287
  %vm1317 = vweird.f32 %v1310
  %vm1318 = vmor %vm1316, %vm1317
  %v1319 = vsel %vm1318, %v1310, %v1315
  %v1320 = vrsqrt.pop %v1288
  %v1321 = vmul.f32 %v1320, %v1288
  %v1322 = vmul.f32 %v1321, %v1320
  %v1323 = vmul.f32 0.5, %v1322
  %v1324 = vsub.f32 1.5, %v1323
  %v1325 = vmul.f32 %v1320, %v1324
  %vm1326 = vweird.f32 %v1288
  %vm1327 = vweird.f32 %v1320
  %vm1328 = vmor %vm1326, %vm1327
  %v1329 = vsel %vm1328, %v1320, %v1325
  %v1330 = vrsqrt.pop %v1289
  %v1331 = vmul.f32 %v1330, %v1289
  %v1332 = vmul.f32 %v1331, %v1330
  %v1333 = vmul.f32 0.5, %v1332
  %v1334 = vsub.f32 1.5, %v1333
  %v1335 = vmul.f32 %v1330, %v1334
  %vm1336 = vweird.f32 %v1289
  %vm1337 = vweird.f32 %v1330
  %vm1338 = vmor %vm1336, %vm1337
  %v1339 = vsel %vm1338, %v1330, %v1335
  %v1340 = vrsqrt.pop %v1290
  %v1341 = vmul.f32 %v1340, %v1290
  %v1342 = vmul.f32 %v1341, %v1340
  %v1343 = vmul.f32 0.5, %v1342
  %v1344 = vsub.f32 1.5, %v1343
  %v1345 = vmul.f32 %v1340, %v1344
  %vm1346 = vweird.f32 %v1290
  %vm1347 = vweird.f32 %v1340
  %vm1348 = vmor %vm1346, %vm1347
  %v1349 = vsel %vm1348, %v1340, %v1345
  %v1350 = vrsqrt.pop %v1291
  %v1351 = vmul.f32 %v1350, %v1291
  %v1352 = vmul.f32 %v1351, %v1350
  %v1353 = vmul.f32 0.5, %v1352
  %v1354 = vsub.f32 1.5, %v1353
  %v1355 = vmul.f32 %v1350, %v1354
  %vm1356 = vweird.f32 %v1291
  %vm1357 = vweird.f32 %v1350
  %vm1358 = vmor %vm1356, %vm1357
  %v1359 = vsel %vm1358, %v1350, %v1355
  %v1360 = vrsqrt.pop %v1292
  %v1361 = vmul.f32 %v1360, %v1292
  %v1362 = vmul.f32 %v1361, %v1360
  %v1363 = vmul.f32 0.5, %v1362
  %v1364 = vsub.f32 1.5, %v1363
  %v1365 = vmul.f32 %v1360, %v1364
  %vm1366 = vweird.f32 %v1292
  %vm1367 = vweird.f32 %v1360
  %vm1368 = vmor %vm1366, %vm1367
  %v1369 = vsel %vm1368, %v1360, %v1365
  %v1370 = vrsqrt.pop %v1293
  %v1371 = vmul.f32 %v1370, %v1293
  %v1372 = vmul.f32 %v1371, %v1370
  %v1373 = vmul.f32 0.5, %v1372
  %v1374 = vsub.f32 1.5, %v1373
  %v1375 = vmul.f32 %v1370, %v1374
  %vm1376 = vweird.f32 %v1293
  %vm1377 = vweird.f32 %v1370
  %vm1378 = vmor %vm1376, %vm1377
  %v1379 = vsel %vm1378, %v1370, %v1375
  %v1380 = vrsqrt.pop %v1294
  %v1381 = vmul.f32 %v1380, %v1294
  %v1382 = vmul.f32 %v1381, %v1380
  %v1383 = vmul.f32 0.5, %v1382
  %v1384 = vsub.f32 1.5, %v1383
  %v1385 = vmul.f32 %v1380, %v1384
  %vm1386 = vweird.f32 %v1294
  %vm1387 = vweird.f32 %v1380
  %vm1388 = vmor %vm1386, %vm1387
  %v1389 = vsel %vm1388, %v1380, %v1385
  %v1390 = vrsqrt.pop %v1295
  %v1391 = vmul.f32 %v1390, %v1295
  %v1392 = vmul.f32 %v1391, %v1390
  %v1393 = vmul.f32 0.5, %v1392
  %v1394 = vsub.f32 1.5, %v1393
  %v1395 = vmul.f32 %v1390, %v1394
  %vm1396 = vweird.f32 %v1295
  %vm1397 = vweird.f32 %v1390
  %vm1398 = vmor %vm1396, %vm1397
  %v1399 = vsel %vm1398, %v1390, %v1395
  %v1400 = vrsqrt.pop %v1296
  %v1401 = vmul.f32 %v1400, %v1296
  %v1402 = vmul.f32 %v1401, %v1400
  %v1403 = vmul.f32 0.5, %v1402
  %v1404 = vsub.f32 1.5, %v1403
  %v1405 = vmul.f32 %v1400, %v1404
  %vm1406 = vweird.f32 %v1296
  %vm1407 = vweird.f32 %v1400
  %vm1408 = vmor %vm1406, %vm1407
  %v1409 = vsel %vm1408, %v1400, %v1405
  %v1410 = vrsqrt.pop %v1297
  %v1411 = vmul.f32 %v1410, %v1297
  %v1412 = vmul.f32 %v1411, %v1410
  %v1413 = vmul.f32 0.5, %v1412
  %v1414 = vsub.f32 1.5, %v1413
  %v1415 = vmul.f32 %v1410, %v1414
  %vm1416 = vweird.f32 %v1297
  %vm1417 = vweird.f32 %v1410
  %vm1418 = vmor %vm1416, %vm1417
  %v1419 = vsel %vm1418, %v1410, %v1415
  %v1420 = vrsqrt.pop %v1298
  %v1421 = vmul.f32 %v1420, %v1298
  %v1422 = vmul.f32 %v1421, %v1420
  %v1423 = vmul.f32 0.5, %v1422
  %v1424 = vsub.f32 1.5, %v1423
  %v1425 = vmul.f32 %v1420, %v1424
  %vm1426 = vweird.f32 %v1298
  %vm1427 = vweird.f32 %v1420
  %vm1428 = vmor %vm1426, %vm1427
  %v1429 = vsel %vm1428, %v1420, %v1425
  %v1430 = vrsqrt.pop %v1299
  %v1431 = vmul.f32 %v1430, %v1299
  %v1432 = vmul.f32 %v1431, %v1430
  %v1433 = vmul.f32 0.5, %v1432
  %v1434 = vsub.f32 1.5, %v1433
  %v1435 = vmul.f32 %v1430, %v1434
  %vm1436 = vweird.f32 %v1299
  %vm1437 = vweird.f32 %v1430
  %vm1438 = vmor %vm1436, %vm1437
  %v1439 = vsel %vm1438, %v1430, %v1435
  %v1440 = vmul.f32 %v1146, %v1309
  %v1441 = vmul.f32 %v1147, %v1319
  %v1442 = vmul.f32 %v1148, %v1329
  %v1443 = vmul.f32 %v1149, %v1339
  %v1444 = vmul.f32 %v1150, %v1349
  %v1445 = vmul.f32 %v1151, %v1359
  %v1446 = vmul.f32 %v1152, %v1369
  %v1447 = vmul.f32 %v1153, %v1379
  %v1448 = vmul.f32 %v1154, %v1389
  %v1449 = vmul.f32 %v1155, %v1399
  %v1450 = vmul.f32 %v1156, %v1409
  %v1451 = vmul.f32 %v1157, %v1419
  %v1452 = vmul.f32 %v1158, %v1429
  %v1453 = vmul.f32 %v1159, %v1439
  %v1454 = vld [vmem:[%s2] sm:$0xff]
  %v1455 = vld [vmem:[%s2 + $0x8] sm:$0x3f]
  %v1458 = vperm.slane %v1454, 0
  %v1459 = vperm.slane %v1454, 1
  %v1460 = vperm.slane %v1454, 2
  %v1461 = vperm.slane %v1454, 3
  %v1462 = vperm.slane %v1454, 4
  %v1463 = vperm.slane %v1454, 5
  %v1464 = vperm.slane %v1454, 6
  %v1465 = vperm.slane %v1454, 7
  %v1466 = vperm.slane %v1455, 0
  %v1467 = vperm.slane %v1455, 1
  %v1468 = vperm.slane %v1455, 2
  %v1469 = vperm.slane %v1455, 3
  %v1470 = vperm.slane %v1455, 4
  %v1471 = vperm.slane %v1455, 5
  %v1486 = vmul.f32 %v1440, %v1458
  %v1487 = vmul.f32 %v1441, %v1459
  %v1488 = vmul.f32 %v1442, %v1460
  %v1489 = vmul.f32 %v1443, %v1461
  %v1490 = vmul.f32 %v1444, %v1462
  %v1491 = vmul.f32 %v1445, %v1463
  %v1492 = vmul.f32 %v1446, %v1464
  %v1493 = vmul.f32 %v1447, %v1465
  %v1494 = vmul.f32 %v1448, %v1466
  %v1495 = vmul.f32 %v1449, %v1467
  %v1496 = vmul.f32 %v1450, %v1468
  %v1497 = vmul.f32 %v1451, %v1469
  %v1498 = vmul.f32 %v1452, %v1470
  %v1499 = vmul.f32 %v1453, %v1471
  %v1500 = vld [vmem:[%s3] sm:$0xff]
  %v1501 = vld [vmem:[%s3 + $0x8] sm:$0x3f]
  %v1504 = vperm.slane %v1500, 0
  %v1505 = vperm.slane %v1500, 1
  %v1506 = vperm.slane %v1500, 2
  %v1507 = vperm.slane %v1500, 3
  %v1508 = vperm.slane %v1500, 4
  %v1509 = vperm.slane %v1500, 5
  %v1510 = vperm.slane %v1500, 6
  %v1511 = vperm.slane %v1500, 7
  %v1512 = vperm.slane %v1501, 0
  %v1513 = vperm.slane %v1501, 1
  %v1514 = vperm.slane %v1501, 2
  %v1515 = vperm.slane %v1501, 3
  %v1516 = vperm.slane %v1501, 4
  %v1517 = vperm.slane %v1501, 5
  %v1532 = vadd.f32 %v1486, %v1504
  %v1533 = vadd.f32 %v1487, %v1505
  %v1534 = vadd.f32 %v1488, %v1506
  %v1535 = vadd.f32 %v1489, %v1507
  %v1536 = vadd.f32 %v1490, %v1508
  %v1537 = vadd.f32 %v1491, %v1509
  %v1538 = vadd.f32 %v1492, %v1510
  %v1539 = vadd.f32 %v1493, %v1511
  %v1540 = vadd.f32 %v1494, %v1512
  %v1541 = vadd.f32 %v1495, %v1513
  %v1542 = vadd.f32 %v1496, %v1514
  %v1543 = vadd.f32 %v1497, %v1515
  %v1544 = vadd.f32 %v1498, %v1516
  %v1545 = vadd.f32 %v1499, %v1517
  %vm1546 = vcmp.ge.f32.partialorder %v1532, 0.0
  %vm1547 = vcmp.ge.f32.partialorder %v1533, 0.0
  %vm1548 = vcmp.ge.f32.partialorder %v1534, 0.0
  %vm1549 = vcmp.ge.f32.partialorder %v1535, 0.0
  %vm1550 = vcmp.ge.f32.partialorder %v1536, 0.0
  %vm1551 = vcmp.ge.f32.partialorder %v1537, 0.0
  %vm1552 = vcmp.ge.f32.partialorder %v1538, 0.0
  %vm1553 = vcmp.ge.f32.partialorder %v1539, 0.0
  %vm1554 = vcmp.ge.f32.partialorder %v1540, 0.0
  %vm1555 = vcmp.ge.f32.partialorder %v1541, 0.0
  %vm1556 = vcmp.ge.f32.partialorder %v1542, 0.0
  %vm1557 = vcmp.ge.f32.partialorder %v1543, 0.0
  %vm1558 = vcmp.ge.f32.partialorder %v1544, 0.0
  %vm1559 = vcmp.ge.f32.partialorder %v1545, 0.0
  %v1560 = vmul.f32 %v1532, 0.3
  %v1561 = vmul.f32 %v1533, 0.3
  %v1562 = vmul.f32 %v1534, 0.3
  %v1563 = vmul.f32 %v1535, 0.3
  %v1564 = vmul.f32 %v1536, 0.3
  %v1565 = vmul.f32 %v1537, 0.3
  %v1566 = vmul.f32 %v1538, 0.3
  %v1567 = vmul.f32 %v1539, 0.3
  %v1568 = vmul.f32 %v1540, 0.3
  %v1569 = vmul.f32 %v1541, 0.3
  %v1570 = vmul.f32 %v1542, 0.3
  %v1571 = vmul.f32 %v1543, 0.3
  %v1572 = vmul.f32 %v1544, 0.3
  %v1573 = vmul.f32 %v1545, 0.3
  %v1574 = vsel %vm1546, %v1532, %v1560
  %v1575 = vsel %vm1547, %v1533, %v1561
  %v1576 = vsel %vm1548, %v1534, %v1562
  %v1577 = vsel %vm1549, %v1535, %v1563
  %v1578 = vsel %vm1550, %v1536, %v1564
  %v1579 = vsel %vm1551, %v1537, %v1565
  %v1580 = vsel %vm1552, %v1538, %v1566
  %v1581 = vsel %vm1553, %v1539, %v1567
  %v1582 = vsel %vm1554, %v1540, %v1568
  %v1583 = vsel %vm1555, %v1541, %v1569
  %v1584 = vsel %vm1556, %v1542, %v1570
  %v1585 = vsel %vm1557, %v1543, %v1571
  %v1586 = vsel %vm1558, %v1544, %v1572
  %v1587 = vsel %vm1559, %v1545, %v1573
  %v1588 = vpack.c.bf16 %v1575, %v1574
  %1589 = vst [vmem:[#allocation2 + $0x8] sm:$0x33] %v1588
  %v1590 = vpack.c.bf16 %v1577, %v1576
  %v1592 = vrot.slane %v1590, 6
  %1594 = vst [vmem:[#allocation2 + $0x8] sm:$0xcc] %v1592
  %v1595 = vpack.c.bf16 %v1579, %v1578
  %1596 = vst [vmem:[#allocation2 + $0x10] sm:$0x33] %v1595
  %v1597 = vpack.c.bf16 %v1581, %v1580
  %v1599 = vrot.slane %v1597, 6
  %1601 = vst [vmem:[#allocation2 + $0x10] sm:$0xcc] %v1599
  %v1602 = vpack.c.bf16 %v1583, %v1582
  %1603 = vst [vmem:[#allocation2 + $0x18] sm:$0x33] %v1602
  %v1604 = vpack.c.bf16 %v1585, %v1584
  %v1606 = vrot.slane %v1604, 6
  %1608 = vst [vmem:[#allocation2 + $0x18] sm:$0xcc] %v1606
  %v1609 = vpack.c.bf16 %v1587, %v1586
  %1610 = vst [vmem:[#allocation2 + $0x20] sm:$0x33] %v1609
  %v1611 = vld [vmem:[#allocation2] sm:$0xff]
  %v1612 = vld [vmem:[#allocation2 + $0x8] sm:$0xff]
  %v1613 = vld [vmem:[#allocation2 + $0x10] sm:$0xff]
  %v1614 = vld [vmem:[#allocation2 + $0x18] sm:$0x33]
  %v1615 = vld [vmem:[%s4] sm:$0xf]
  %v1616 = vld [vmem:[%s4 + $0x4] sm:$0xf]
  %v1617 = vld [vmem:[%s4 + $0x8] sm:$0xf]
  %v1618 = vld [vmem:[%s4 + $0xc] sm:$0xf]
  %v1619 = vld [vmem:[%s4 + $0x10] sm:$0xf]
  %v1620 = vld [vmem:[%s4 + $0x14] sm:$0xf]
  %v1621 = vld [vmem:[%s4 + $0x18] sm:$0xf]
  %v1622 = vld [vmem:[%s4 + $0x1c] sm:$0xf]
  %v1623 = vld [vmem:[%s4 + $0x20] sm:$0xf]
  %v1624 = vld [vmem:[%s4 + $0x24] sm:$0xf]
  %v1625 = vld [vmem:[%s4 + $0x28] sm:$0xf]
  %v1626 = vld [vmem:[%s4 + $0x2c] sm:$0xf]
  %v1627 = vld [vmem:[%s4 + $0x30] sm:$0xf]
  %v1628 = vld [vmem:[%s4 + $0x34] sm:$0xf]
  %v1629 = vld [vmem:[%s4 + $0x38] sm:$0xf]
  %v1630 = vld [vmem:[%s4 + $0x3c] sm:$0xf]
  %v1631 = vld [vmem:[%s4 + $0x40] sm:$0xf]
  %v1632 = vld [vmem:[%s4 + $0x44] sm:$0xf]
  %v1633 = vld [vmem:[%s4 + $0x48] sm:$0xf]
  %v1634 = vld [vmem:[%s4 + $0x4c] sm:$0xf]
  %v1635 = vld [vmem:[%s4 + $0x50] sm:$0xf]
  %v1636 = vld [vmem:[%s4 + $0x54] sm:$0xf]
  %v1637 = vld [vmem:[%s4 + $0x58] sm:$0xf]
  %v1638 = vld [vmem:[%s4 + $0x5c] sm:$0xf]
  %v1639 = vld [vmem:[%s4 + $0x60] sm:$0xf]
  %v1640 = vld [vmem:[%s4 + $0x64] sm:$0xf]
  %v1641 = vld [vmem:[%s4 + $0x68] sm:$0xf]
  %v1642 = vld [vmem:[%s4 + $0x6c] sm:$0xf]
  %v1643 = vld [vmem:[%s4 + $0x70] sm:$0xf]
  %v1644 = vld [vmem:[%s4 + $0x74] sm:$0xf]
  %v1645 = vld [vmem:[%s4 + $0x78] sm:$0xf]
  %v1646 = vld [vmem:[%s4 + $0x7c] sm:$0xf]
  %v1647 = vld [vmem:[#allocation2] sm:$0xcc]
  %v1648 = vld [vmem:[#allocation2 + $0x18] sm:$0xff]
  %s1649 = scalar_lea.vmem %s4, 128
  %v1650 = vld [vmem:[%s1649] sm:$0xf]
  %v1651 = vld [vmem:[%s1649 + $0x4] sm:$0xf]
  %v1652 = vld [vmem:[%s1649 + $0x8] sm:$0xf]
  %v1653 = vld [vmem:[%s1649 + $0xc] sm:$0xf]
  %v1654 = vld [vmem:[%s1649 + $0x10] sm:$0xf]
  %v1655 = vld [vmem:[%s1649 + $0x14] sm:$0xf]
  %v1656 = vld [vmem:[%s1649 + $0x18] sm:$0xf]
  %v1657 = vld [vmem:[%s1649 + $0x1c] sm:$0xf]
  %v1658 = vld [vmem:[%s1649 + $0x20] sm:$0xf]
  %v1659 = vld [vmem:[%s1649 + $0x24] sm:$0xf]
  %v1660 = vld [vmem:[%s1649 + $0x28] sm:$0xf]
  %v1661 = vld [vmem:[%s1649 + $0x2c] sm:$0xf]
  %v1662 = vld [vmem:[%s1649 + $0x30] sm:$0xf]
  %v1663 = vld [vmem:[%s1649 + $0x34] sm:$0xf]
  %v1664 = vld [vmem:[%s1649 + $0x38] sm:$0xf]
  %v1665 = vld [vmem:[%s1649 + $0x3c] sm:$0xf]
  %v1666 = vld [vmem:[%s1649 + $0x40] sm:$0xf]
  %v1667 = vld [vmem:[%s1649 + $0x44] sm:$0xf]
  %v1668 = vld [vmem:[%s1649 + $0x48] sm:$0xf]
  %v1669 = vld [vmem:[%s1649 + $0x4c] sm:$0xf]
  %v1670 = vld [vmem:[%s1649 + $0x50] sm:$0xf]
  %v1671 = vld [vmem:[%s1649 + $0x54] sm:$0xf]
  %v1672 = vld [vmem:[%s1649 + $0x58] sm:$0xf]
  %v1673 = vld [vmem:[%s1649 + $0x5c] sm:$0xf]
  %v1674 = vld [vmem:[%s1649 + $0x60] sm:$0xf]
  %v1675 = vld [vmem:[%s1649 + $0x64] sm:$0xf]
  %v1676 = vld [vmem:[%s1649 + $0x68] sm:$0xf]
  %v1677 = vld [vmem:[%s1649 + $0x6c] sm:$0xf]
  %v1678 = vld [vmem:[%s1649 + $0x70] sm:$0xf]
  %v1679 = vld [vmem:[%s1649 + $0x74] sm:$0xf]
  %v1680 = vld [vmem:[%s1649 + $0x78] sm:$0xf]
  %v1681 = vld [vmem:[%s1649 + $0x7c] sm:$0xf]
  %v1686 = vunpack.c.l.b16 %v1647
  %v1687 = vunpack.c.h.b16 %v1647
  %v1688 = vunpack.c.l.b16 %v1612
  %v1689 = vunpack.c.h.b16 %v1612
  %v1690 = vunpack.c.l.b16 %v1613
  %v1691 = vunpack.c.h.b16 %v1613
  %v1692 = vunpack.c.l.b16 %v1648
  %v1693 = vunpack.c.h.b16 %v1648
  %v1694 = vpack.c.b16 %v1688, %v1686
  %v1695 = vpack.c.b16 %v1689, %v1687
  %v1696 = vpack.c.b16 %v1692, %v1690
  %v1697 = vpack.c.b16 %v1693, %v1691
  %vm1698 = vcmask 1045504
  %v1699 = vrot.slane %v1694, 2
  %v1700 = vrot.slane %v1696, 2
  %v1701 = vsel %vm1698, %v1699, %v1700
  %v1702 = vrot.slane %v1695, 2
  %v1703 = vrot.slane %v1697, 2
  %v1704 = vsel %vm1698, %v1702, %v1703
  %v1741 = vunpack.c.l.b16 %v1650
  %v1742 = vunpack.c.l.b16 %v1651
  %v1743 = vunpack.c.l.b16 %v1652
  %v1744 = vunpack.c.l.b16 %v1653
  %v1745 = vunpack.c.l.b16 %v1654
  %v1746 = vunpack.c.l.b16 %v1655
  %v1747 = vunpack.c.l.b16 %v1656
  %v1748 = vunpack.c.l.b16 %v1657
  %v1749 = vunpack.c.l.b16 %v1658
  %v1750 = vunpack.c.l.b16 %v1659
  %v1751 = vunpack.c.l.b16 %v1660
  %v1752 = vunpack.c.l.b16 %v1661
  %v1753 = vunpack.c.l.b16 %v1662
  %v1754 = vunpack.c.l.b16 %v1663
  %v1755 = vunpack.c.l.b16 %v1664
  %v1756 = vunpack.c.l.b16 %v1665
  %v1757 = vunpack.c.l.b16 %v1666
  %v1758 = vunpack.c.l.b16 %v1667
  %v1759 = vunpack.c.l.b16 %v1668
  %v1760 = vunpack.c.l.b16 %v1669
  %v1761 = vunpack.c.l.b16 %v1670
  %v1762 = vunpack.c.l.b16 %v1671
  %v1763 = vunpack.c.l.b16 %v1672
  %v1764 = vunpack.c.l.b16 %v1673
  %v1765 = vunpack.c.l.b16 %v1674
  %v1766 = vunpack.c.l.b16 %v1675
  %v1767 = vunpack.c.l.b16 %v1676
  %v1768 = vunpack.c.l.b16 %v1677
  %v1769 = vunpack.c.l.b16 %v1678
  %v1770 = vunpack.c.l.b16 %v1679
  %v1771 = vunpack.c.l.b16 %v1680
  %v1772 = vunpack.c.l.b16 %v1681
  %v1773 = vpack.c.b16 %v1742, %v1741
  %v1774 = vpack.c.b16 %v1744, %v1743
  %v1775 = vpack.c.b16 %v1746, %v1745
  %v1776 = vpack.c.b16 %v1748, %v1747
  %v1777 = vpack.c.b16 %v1750, %v1749
  %v1778 = vpack.c.b16 %v1752, %v1751
  %v1779 = vpack.c.b16 %v1754, %v1753
  %v1780 = vpack.c.b16 %v1756, %v1755
  %v1781 = vpack.c.b16 %v1758, %v1757
  %v1782 = vpack.c.b16 %v1760, %v1759
  %v1783 = vpack.c.b16 %v1762, %v1761
  %v1784 = vpack.c.b16 %v1764, %v1763
  %v1785 = vpack.c.b16 %v1766, %v1765
  %v1786 = vpack.c.b16 %v1768, %v1767
  %v1787 = vpack.c.b16 %v1770, %v1769
  %v1788 = vpack.c.b16 %v1772, %v1771
  %1805 = vmatpush.bf16.msra.mxu0 %v1780
  %1806 = vmatpush.bf16.msra.mxu0 %v1779
  %1807 = vmatpush.bf16.msra.mxu0 %v1778
  %1808 = vmatpush.bf16.msra.mxu0 %v1777
  %1809 = vmatpush.bf16.msra.mxu0 %v1776
  %1810 = vmatpush.bf16.msra.mxu0 %v1775
  %1811 = vmatpush.bf16.msra.mxu0 %v1774
  %1812 = vmatpush.bf16.msra.mxu0 %v1773
  %1813 = vmatmul.bf16.gmra.mxu0 %v1701
  %v1814 = vpop.f32.mrf.mxu0
  %v1815 = vadd.f32 0.0, %v1814
  %v1816 = vpop.f32.mrf.mxu0
  %v1817 = vadd.f32 0.0, %v1816
  %1818 = vmatmul.bf16.gmra.mxu0 %v1700
  %v1819 = vpop.f32.mrf.mxu0
  %v1820 = vadd.f32 0.0, %v1819
  %v1821 = vpop.f32.mrf.mxu0
  %v1822 = vadd.f32 0.0, %v1821
  %1823 = vdwg.mxu0
  %1824 = vmatpush.bf16.msra.mxu0 %v1788
  %1825 = vmatpush.bf16.msra.mxu0 %v1787
  %1826 = vmatpush.bf16.msra.mxu0 %v1786
  %1827 = vmatpush.bf16.msra.mxu0 %v1785
  %1828 = vmatpush.bf16.msra.mxu0 %v1784
  %1829 = vmatpush.bf16.msra.mxu0 %v1783
  %1830 = vmatpush.bf16.msra.mxu0 %v1782
  %1831 = vmatpush.bf16.msra.mxu0 %v1781
  %1832 = vmatmul.bf16.gmra.mxu0 %v1704
  %v1833 = vpop.f32.mrf.mxu0
  %v1834 = vadd.f32 %v1815, %v1833
  %v1835 = vpop.f32.mrf.mxu0
  %v1836 = vadd.f32 %v1817, %v1835
  %1837 = vmatmul.bf16.gmra.mxu0 %v1703
  %v1838 = vpop.f32.mrf.mxu0
  %v1839 = vadd.f32 %v1820, %v1838
  %v1840 = vpop.f32.mrf.mxu0
  %v1841 = vadd.f32 %v1822, %v1840
  %1842 = vdwg.mxu0
  %v1845 = vunpack.c.l.b16 %v1611
  %v1846 = vunpack.c.h.b16 %v1611
  %v1847 = vunpack.c.l.b16 %v1614
  %v1848 = vunpack.c.h.b16 %v1614
  %v1849 = vpack.c.b16 %v1688, %v1845
  %v1850 = vpack.c.b16 %v1689, %v1846
  %v1851 = vpack.c.b16 %v1847, %v1690
  %v1852 = vpack.c.b16 %v1848, %v1691
  %v1889 = vunpack.c.l.b16 %v1615
  %v1890 = vunpack.c.l.b16 %v1616
  %v1891 = vunpack.c.l.b16 %v1617
  %v1892 = vunpack.c.l.b16 %v1618
  %v1893 = vunpack.c.l.b16 %v1619
  %v1894 = vunpack.c.l.b16 %v1620
  %v1895 = vunpack.c.l.b16 %v1621
  %v1896 = vunpack.c.l.b16 %v1622
  %v1897 = vunpack.c.l.b16 %v1623
  %v1898 = vunpack.c.l.b16 %v1624
  %v1899 = vunpack.c.l.b16 %v1625
  %v1900 = vunpack.c.l.b16 %v1626
  %v1901 = vunpack.c.l.b16 %v1627
  %v1902 = vunpack.c.l.b16 %v1628
  %v1903 = vunpack.c.l.b16 %v1629
  %v1904 = vunpack.c.l.b16 %v1630
  %v1905 = vunpack.c.l.b16 %v1631
  %v1906 = vunpack.c.l.b16 %v1632
  %v1907 = vunpack.c.l.b16 %v1633
  %v1908 = vunpack.c.l.b16 %v1634
  %v1909 = vunpack.c.l.b16 %v1635
  %v1910 = vunpack.c.l.b16 %v1636
  %v1911 = vunpack.c.l.b16 %v1637
  %v1912 = vunpack.c.l.b16 %v1638
  %v1913 = vunpack.c.l.b16 %v1639
  %v1914 = vunpack.c.l.b16 %v1640
  %v1915 = vunpack.c.l.b16 %v1641
  %v1916 = vunpack.c.l.b16 %v1642
  %v1917 = vunpack.c.l.b16 %v1643
  %v1918 = vunpack.c.l.b16 %v1644
  %v1919 = vunpack.c.l.b16 %v1645
  %v1920 = vunpack.c.l.b16 %v1646
  %v1921 = vpack.c.b16 %v1890, %v1889
  %v1922 = vpack.c.b16 %v1892, %v1891
  %v1923 = vpack.c.b16 %v1894, %v1893
  %v1924 = vpack.c.b16 %v1896, %v1895
  %v1925 = vpack.c.b16 %v1898, %v1897
  %v1926 = vpack.c.b16 %v1900, %v1899
  %v1927 = vpack.c.b16 %v1902, %v1901
  %v1928 = vpack.c.b16 %v1904, %v1903
  %v1929 = vpack.c.b16 %v1906, %v1905
  %v1930 = vpack.c.b16 %v1908, %v1907
  %v1931 = vpack.c.b16 %v1910, %v1909
  %v1932 = vpack.c.b16 %v1912, %v1911
  %v1933 = vpack.c.b16 %v1914, %v1913
  %v1934 = vpack.c.b16 %v1916, %v1915
  %v1935 = vpack.c.b16 %v1918, %v1917
  %v1936 = vpack.c.b16 %v1920, %v1919
  %1953 = vmatpush.bf16.msra.mxu0 %v1928
  %1954 = vmatpush.bf16.msra.mxu0 %v1927
  %1955 = vmatpush.bf16.msra.mxu0 %v1926
  %1956 = vmatpush.bf16.msra.mxu0 %v1925
  %1957 = vmatpush.bf16.msra.mxu0 %v1924
  %1958 = vmatpush.bf16.msra.mxu0 %v1923
  %1959 = vmatpush.bf16.msra.mxu0 %v1922
  %1960 = vmatpush.bf16.msra.mxu0 %v1921
  %1961 = vmatmul.bf16.gmra.mxu0 %v1849
  %v1962 = vpop.f32.mrf.mxu0
  %v1963 = vadd.f32 %v1834, %v1962
  %v1964 = vpop.f32.mrf.mxu0
  %v1965 = vadd.f32 %v1836, %v1964
  %1966 = vmatmul.bf16.gmra.mxu0 %v1851
  %v1967 = vpop.f32.mrf.mxu0
  %v1968 = vadd.f32 %v1839, %v1967
  %v1969 = vpop.f32.mrf.mxu0
  %v1970 = vadd.f32 %v1841, %v1969
  %1971 = vdwg.mxu0
  %1972 = vmatpush.bf16.msra.mxu0 %v1936
  %1973 = vmatpush.bf16.msra.mxu0 %v1935
  %1974 = vmatpush.bf16.msra.mxu0 %v1934
  %1975 = vmatpush.bf16.msra.mxu0 %v1933
  %1976 = vmatpush.bf16.msra.mxu0 %v1932
  %1977 = vmatpush.bf16.msra.mxu0 %v1931
  %1978 = vmatpush.bf16.msra.mxu0 %v1930
  %1979 = vmatpush.bf16.msra.mxu0 %v1929
  %1980 = vmatmul.bf16.gmra.mxu0 %v1850
  %v1981 = vpop.f32.mrf.mxu0
  %v1982 = vadd.f32 %v1963, %v1981
  %v1983 = vpop.f32.mrf.mxu0
  %v1984 = vadd.f32 %v1965, %v1983
  %1985 = vmatmul.bf16.gmra.mxu0 %v1852
  %v1986 = vpop.f32.mrf.mxu0
  %v1987 = vadd.f32 %v1968, %v1986
  %v1988 = vpop.f32.mrf.mxu0
  %v1989 = vadd.f32 %v1970, %v1988
  %1990 = vdwg.mxu0
  %v1991 = vld [vmem:[#allocation2 + $0x8] sm:$0xff]
  %v1992 = vld [vmem:[#allocation2 + $0x10] sm:$0xff]
  %v1993 = vld [vmem:[#allocation2 + $0x18] sm:$0xff]
  %v1994 = vld [vmem:[#allocation2 + $0x20] sm:$0x33]
  %s1995 = scalar_lea.vmem %s4, 256
  %v1996 = vld [vmem:[%s1995] sm:$0xf]
  %v1997 = vld [vmem:[%s1995 + $0x4] sm:$0xf]
  %v1998 = vld [vmem:[%s1995 + $0x8] sm:$0xf]
  %v1999 = vld [vmem:[%s1995 + $0xc] sm:$0xf]
  %v2000 = vld [vmem:[%s1995 + $0x10] sm:$0xf]
  %v2001 = vld [vmem:[%s1995 + $0x14] sm:$0xf]
  %v2002 = vld [vmem:[%s1995 + $0x18] sm:$0xf]
  %v2003 = vld [vmem:[%s1995 + $0x1c] sm:$0xf]
  %v2004 = vld [vmem:[%s1995 + $0x20] sm:$0xf]
  %v2005 = vld [vmem:[%s1995 + $0x24] sm:$0xf]
  %v2006 = vld [vmem:[%s1995 + $0x28] sm:$0xf]
  %v2007 = vld [vmem:[%s1995 + $0x2c] sm:$0xf]
  %v2008 = vld [vmem:[%s1995 + $0x30] sm:$0xf]
  %v2009 = vld [vmem:[%s1995 + $0x34] sm:$0xf]
  %v2010 = vld [vmem:[%s1995 + $0x38] sm:$0xf]
  %v2011 = vld [vmem:[%s1995 + $0x3c] sm:$0xf]
  %v2012 = vld [vmem:[%s1995 + $0x40] sm:$0xf]
  %v2013 = vld [vmem:[%s1995 + $0x44] sm:$0xf]
  %v2014 = vld [vmem:[%s1995 + $0x48] sm:$0xf]
  %v2015 = vld [vmem:[%s1995 + $0x4c] sm:$0xf]
  %v2016 = vld [vmem:[%s1995 + $0x50] sm:$0xf]
  %v2017 = vld [vmem:[%s1995 + $0x54] sm:$0xf]
  %v2018 = vld [vmem:[%s1995 + $0x58] sm:$0xf]
  %v2019 = vld [vmem:[%s1995 + $0x5c] sm:$0xf]
  %v2020 = vld [vmem:[%s1995 + $0x60] sm:$0xf]
  %v2021 = vld [vmem:[%s1995 + $0x64] sm:$0xf]
  %v2022 = vld [vmem:[%s1995 + $0x68] sm:$0xf]
  %v2023 = vld [vmem:[%s1995 + $0x6c] sm:$0xf]
  %v2024 = vld [vmem:[%s1995 + $0x70] sm:$0xf]
  %v2025 = vld [vmem:[%s1995 + $0x74] sm:$0xf]
  %v2026 = vld [vmem:[%s1995 + $0x78] sm:$0xf]
  %v2027 = vld [vmem:[%s1995 + $0x7c] sm:$0xf]
  %v2032 = vunpack.c.l.b16 %v1991
  %v2033 = vunpack.c.h.b16 %v1991
  %v2034 = vunpack.c.l.b16 %v1992
  %v2035 = vunpack.c.h.b16 %v1992
  %v2036 = vunpack.c.l.b16 %v1993
  %v2037 = vunpack.c.h.b16 %v1993
  %v2038 = vunpack.c.l.b16 %v1994
  %v2039 = vunpack.c.h.b16 %v1994
  %v2040 = vpack.c.b16 %v2034, %v2032
  %v2041 = vpack.c.b16 %v2035, %v2033
  %v2042 = vpack.c.b16 %v2038, %v2036
  %v2043 = vpack.c.b16 %v2039, %v2037
  %v2080 = vunpack.c.l.b16 %v1996
  %v2081 = vunpack.c.l.b16 %v1997
  %v2082 = vunpack.c.l.b16 %v1998
  %v2083 = vunpack.c.l.b16 %v1999
  %v2084 = vunpack.c.l.b16 %v2000
  %v2085 = vunpack.c.l.b16 %v2001
  %v2086 = vunpack.c.l.b16 %v2002
  %v2087 = vunpack.c.l.b16 %v2003
  %v2088 = vunpack.c.l.b16 %v2004
  %v2089 = vunpack.c.l.b16 %v2005
  %v2090 = vunpack.c.l.b16 %v2006
  %v2091 = vunpack.c.l.b16 %v2007
  %v2092 = vunpack.c.l.b16 %v2008
  %v2093 = vunpack.c.l.b16 %v2009
  %v2094 = vunpack.c.l.b16 %v2010
  %v2095 = vunpack.c.l.b16 %v2011
  %v2096 = vunpack.c.l.b16 %v2012
  %v2097 = vunpack.c.l.b16 %v2013
  %v2098 = vunpack.c.l.b16 %v2014
  %v2099 = vunpack.c.l.b16 %v2015
  %v2100 = vunpack.c.l.b16 %v2016
  %v2101 = vunpack.c.l.b16 %v2017
  %v2102 = vunpack.c.l.b16 %v2018
  %v2103 = vunpack.c.l.b16 %v2019
  %v2104 = vunpack.c.l.b16 %v2020
  %v2105 = vunpack.c.l.b16 %v2021
  %v2106 = vunpack.c.l.b16 %v2022
  %v2107 = vunpack.c.l.b16 %v2023
  %v2108 = vunpack.c.l.b16 %v2024
  %v2109 = vunpack.c.l.b16 %v2025
  %v2110 = vunpack.c.l.b16 %v2026
  %v2111 = vunpack.c.l.b16 %v2027
  %v2112 = vpack.c.b16 %v2081, %v2080
  %v2113 = vpack.c.b16 %v2083, %v2082
  %v2114 = vpack.c.b16 %v2085, %v2084
  %v2115 = vpack.c.b16 %v2087, %v2086
  %v2116 = vpack.c.b16 %v2089, %v2088
  %v2117 = vpack.c.b16 %v2091, %v2090
  %v2118 = vpack.c.b16 %v2093, %v2092
  %v2119 = vpack.c.b16 %v2095, %v2094
  %v2120 = vpack.c.b16 %v2097, %v2096
  %v2121 = vpack.c.b16 %v2099, %v2098
  %v2122 = vpack.c.b16 %v2101, %v2100
  %v2123 = vpack.c.b16 %v2103, %v2102
  %v2124 = vpack.c.b16 %v2105, %v2104
  %v2125 = vpack.c.b16 %v2107, %v2106
  %v2126 = vpack.c.b16 %v2109, %v2108
  %v2127 = vpack.c.b16 %v2111, %v2110
  %2144 = vmatpush.bf16.msra.mxu0 %v2119
  %2145 = vmatpush.bf16.msra.mxu0 %v2118
  %2146 = vmatpush.bf16.msra.mxu0 %v2117
  %2147 = vmatpush.bf16.msra.mxu0 %v2116
  %2148 = vmatpush.bf16.msra.mxu0 %v2115
  %2149 = vmatpush.bf16.msra.mxu0 %v2114
  %2150 = vmatpush.bf16.msra.mxu0 %v2113
  %2151 = vmatpush.bf16.msra.mxu0 %v2112
  %2152 = vmatmul.bf16.gmra.mxu0 %v2040
  %v2153 = vpop.f32.mrf.mxu0
  %v2154 = vadd.f32 0.0, %v2153
  %v2155 = vpop.f32.mrf.mxu0
  %v2156 = vadd.f32 0.0, %v2155
  %2157 = vmatmul.bf16.gmra.mxu0 %v2042
  %v2158 = vpop.f32.mrf.mxu0
  %v2159 = vadd.f32 0.0, %v2158
  %v2160 = vpop.f32.mrf.mxu0
  %v2161 = vadd.f32 0.0, %v2160
  %2162 = vdwg.mxu0
  %2163 = vmatpush.bf16.msra.mxu0 %v2127
  %2164 = vmatpush.bf16.msra.mxu0 %v2126
  %2165 = vmatpush.bf16.msra.mxu0 %v2125
  %2166 = vmatpush.bf16.msra.mxu0 %v2124
  %2167 = vmatpush.bf16.msra.mxu0 %v2123
  %2168 = vmatpush.bf16.msra.mxu0 %v2122
  %2169 = vmatpush.bf16.msra.mxu0 %v2121
  %2170 = vmatpush.bf16.msra.mxu0 %v2120
  %2171 = vmatmul.bf16.gmra.mxu0 %v2041
  %v2172 = vpop.f32.mrf.mxu0
  %v2173 = vadd.f32 %v2154, %v2172
  %v2174 = vpop.f32.mrf.mxu0
  %v2175 = vadd.f32 %v2156, %v2174
  %2176 = vmatmul.bf16.gmra.mxu0 %v2043
  %v2177 = vpop.f32.mrf.mxu0
  %v2178 = vadd.f32 %v2159, %v2177
  %v2179 = vpop.f32.mrf.mxu0
  %v2180 = vadd.f32 %v2161, %v2179
  %2181 = vdwg.mxu0
  %v2182 = vadd.f32 %v1982, %v2173
  %v2183 = vadd.f32 %v1984, %v2175
  %v2184 = vadd.f32 %v1987, %v2178
  %v2185 = vadd.f32 %v1989, %v2180
  %v2186 = vld [vmem:[#allocation2 + $0x8] sm:$0xcc]
  %v2187 = vld [vmem:[#allocation2 + $0x20] sm:$0xff]
  %s2188 = scalar_lea.vmem %s4, 384
  %v2189 = vld [vmem:[%s2188] sm:$0xf]
  %v2190 = vld [vmem:[%s2188 + $0x4] sm:$0xf]
  %v2191 = vld [vmem:[%s2188 + $0x8] sm:$0xf]
  %v2192 = vld [vmem:[%s2188 + $0xc] sm:$0xf]
  %v2193 = vld [vmem:[%s2188 + $0x10] sm:$0xf]
  %v2194 = vld [vmem:[%s2188 + $0x14] sm:$0xf]
  %v2195 = vld [vmem:[%s2188 + $0x18] sm:$0xf]
  %v2196 = vld [vmem:[%s2188 + $0x1c] sm:$0xf]
  %v2197 = vld [vmem:[%s2188 + $0x20] sm:$0xf]
  %v2198 = vld [vmem:[%s2188 + $0x24] sm:$0xf]
  %v2199 = vld [vmem:[%s2188 + $0x28] sm:$0xf]
  %v2200 = vld [vmem:[%s2188 + $0x2c] sm:$0xf]
  %v2201 = vld [vmem:[%s2188 + $0x30] sm:$0xf]
  %v2202 = vld [vmem:[%s2188 + $0x34] sm:$0xf]
  %v2203 = vld [vmem:[%s2188 + $0x38] sm:$0xf]
  %v2204 = vld [vmem:[%s2188 + $0x3c] sm:$0xf]
  %v2205 = vld [vmem:[%s2188 + $0x40] sm:$0xf]
  %v2206 = vld [vmem:[%s2188 + $0x44] sm:$0xf]
  %v2207 = vld [vmem:[%s2188 + $0x48] sm:$0xf]
  %v2208 = vld [vmem:[%s2188 + $0x4c] sm:$0xf]
  %v2209 = vld [vmem:[%s2188 + $0x50] sm:$0xf]
  %v2210 = vld [vmem:[%s2188 + $0x54] sm:$0xf]
  %v2211 = vld [vmem:[%s2188 + $0x58] sm:$0xf]
  %v2212 = vld [vmem:[%s2188 + $0x5c] sm:$0xf]
  %v2213 = vld [vmem:[%s2188 + $0x60] sm:$0xf]
  %v2214 = vld [vmem:[%s2188 + $0x64] sm:$0xf]
  %v2215 = vld [vmem:[%s2188 + $0x68] sm:$0xf]
  %v2216 = vld [vmem:[%s2188 + $0x6c] sm:$0xf]
  %v2217 = vld [vmem:[%s2188 + $0x70] sm:$0xf]
  %v2218 = vld [vmem:[%s2188 + $0x74] sm:$0xf]
  %v2219 = vld [vmem:[%s2188 + $0x78] sm:$0xf]
  %v2220 = vld [vmem:[%s2188 + $0x7c] sm:$0xf]
  %v2223 = vunpack.c.l.b16 %v2186
  %v2224 = vunpack.c.h.b16 %v2186
  %v2225 = vunpack.c.l.b16 %v2187
  %v2226 = vunpack.c.h.b16 %v2187
  %v2227 = vpack.c.b16 %v2034, %v2223
  %v2228 = vpack.c.b16 %v2035, %v2224
  %v2229 = vpack.c.b16 %v2225, %v2036
  %v2230 = vpack.c.b16 %v2226, %v2037
  %v2231 = vrot.slane %v2227, 2
  %v2232 = vrot.slane %v2229, 2
  %v2233 = vsel %vm1698, %v2231, %v2232
  %v2234 = vrot.slane %v2228, 2
  %v2235 = vrot.slane %v2230, 2
  %v2236 = vsel %vm1698, %v2234, %v2235
  %v2273 = vunpack.c.l.b16 %v2189
  %v2274 = vunpack.c.l.b16 %v2190
  %v2275 = vunpack.c.l.b16 %v2191
  %v2276 = vunpack.c.l.b16 %v2192
  %v2277 = vunpack.c.l.b16 %v2193
  %v2278 = vunpack.c.l.b16 %v2194
  %v2279 = vunpack.c.l.b16 %v2195
  %v2280 = vunpack.c.l.b16 %v2196
  %v2281 = vunpack.c.l.b16 %v2197
  %v2282 = vunpack.c.l.b16 %v2198
  %v2283 = vunpack.c.l.b16 %v2199
  %v2284 = vunpack.c.l.b16 %v2200
  %v2285 = vunpack.c.l.b16 %v2201
  %v2286 = vunpack.c.l.b16 %v2202
  %v2287 = vunpack.c.l.b16 %v2203
  %v2288 = vunpack.c.l.b16 %v2204
  %v2289 = vunpack.c.l.b16 %v2205
  %v2290 = vunpack.c.l.b16 %v2206
  %v2291 = vunpack.c.l.b16 %v2207
  %v2292 = vunpack.c.l.b16 %v2208
  %v2293 = vunpack.c.l.b16 %v2209
  %v2294 = vunpack.c.l.b16 %v2210
  %v2295 = vunpack.c.l.b16 %v2211
  %v2296 = vunpack.c.l.b16 %v2212
  %v2297 = vunpack.c.l.b16 %v2213
  %v2298 = vunpack.c.l.b16 %v2214
  %v2299 = vunpack.c.l.b16 %v2215
  %v2300 = vunpack.c.l.b16 %v2216
  %v2301 = vunpack.c.l.b16 %v2217
  %v2302 = vunpack.c.l.b16 %v2218
  %v2303 = vunpack.c.l.b16 %v2219
  %v2304 = vunpack.c.l.b16 %v2220
  %v2305 = vpack.c.b16 %v2274, %v2273
  %v2306 = vpack.c.b16 %v2276, %v2275
  %v2307 = vpack.c.b16 %v2278, %v2277
  %v2308 = vpack.c.b16 %v2280, %v2279
  %v2309 = vpack.c.b16 %v2282, %v2281
  %v2310 = vpack.c.b16 %v2284, %v2283
  %v2311 = vpack.c.b16 %v2286, %v2285
  %v2312 = vpack.c.b16 %v2288, %v2287
  %v2313 = vpack.c.b16 %v2290, %v2289
  %v2314 = vpack.c.b16 %v2292, %v2291
  %v2315 = vpack.c.b16 %v2294, %v2293
  %v2316 = vpack.c.b16 %v2296, %v2295
  %v2317 = vpack.c.b16 %v2298, %v2297
  %v2318 = vpack.c.b16 %v2300, %v2299
  %v2319 = vpack.c.b16 %v2302, %v2301
  %v2320 = vpack.c.b16 %v2304, %v2303
  %2337 = vmatpush.bf16.msra.mxu0 %v2312
  %2338 = vmatpush.bf16.msra.mxu0 %v2311
  %2339 = vmatpush.bf16.msra.mxu0 %v2310
  %2340 = vmatpush.bf16.msra.mxu0 %v2309
  %2341 = vmatpush.bf16.msra.mxu0 %v2308
  %2342 = vmatpush.bf16.msra.mxu0 %v2307
  %2343 = vmatpush.bf16.msra.mxu0 %v2306
  %2344 = vmatpush.bf16.msra.mxu0 %v2305
  %2345 = vmatmul.bf16.gmra.mxu0 %v2233
  %v2346 = vpop.f32.mrf.mxu0
  %v2347 = vadd.f32 0.0, %v2346
  %v2348 = vpop.f32.mrf.mxu0
  %v2349 = vadd.f32 0.0, %v2348
  %2350 = vmatmul.bf16.gmra.mxu0 %v2232
  %v2351 = vpop.f32.mrf.mxu0
  %v2352 = vadd.f32 0.0, %v2351
  %v2353 = vpop.f32.mrf.mxu0
  %v2354 = vadd.f32 0.0, %v2353
  %2355 = vdwg.mxu0
  %2356 = vmatpush.bf16.msra.mxu0 %v2320
  %2357 = vmatpush.bf16.msra.mxu0 %v2319
  %2358 = vmatpush.bf16.msra.mxu0 %v2318
  %2359 = vmatpush.bf16.msra.mxu0 %v2317
  %2360 = vmatpush.bf16.msra.mxu0 %v2316
  %2361 = vmatpush.bf16.msra.mxu0 %v2315
  %2362 = vmatpush.bf16.msra.mxu0 %v2314
  %2363 = vmatpush.bf16.msra.mxu0 %v2313
  %2364 = vmatmul.bf16.gmra.mxu0 %v2236
  %v2365 = vpop.f32.mrf.mxu0
  %v2366 = vadd.f32 %v2347, %v2365
  %v2367 = vpop.f32.mrf.mxu0
  %v2368 = vadd.f32 %v2349, %v2367
  %2369 = vmatmul.bf16.gmra.mxu0 %v2235
  %v2370 = vpop.f32.mrf.mxu0
  %v2371 = vadd.f32 %v2352, %v2370
  %v2372 = vpop.f32.mrf.mxu0
  %v2373 = vadd.f32 %v2354, %v2372
  %2374 = vdwg.mxu0
  %v2375 = vadd.f32 %v2182, %v2366
  %v2376 = vadd.f32 %v2183, %v2368
  %v2377 = vadd.f32 %v2184, %v2371
  %v2378 = vadd.f32 %v2185, %v2373
  %v2379 = vld [vmem:[#allocation2 + $0x10] sm:$0xff]
  %v2380 = vld [vmem:[#allocation2 + $0x18] sm:$0xff]
  %v2381 = vld [vmem:[#allocation2 + $0x20] sm:$0xff]
  %v2382 = vld [vmem:[#allocation2 + $0x28] sm:$0x33]
  %s2383 = scalar_lea.vmem %s4, 512
  %v2384 = vld [vmem:[%s2383] sm:$0xf]
  %v2385 = vld [vmem:[%s2383 + $0x4] sm:$0xf]
  %v2386 = vld [vmem:[%s2383 + $0x8] sm:$0xf]
  %v2387 = vld [vmem:[%s2383 + $0xc] sm:$0xf]
  %v2388 = vld [vmem:[%s2383 + $0x10] sm:$0xf]
  %v2389 = vld [vmem:[%s2383 + $0x14] sm:$0xf]
  %v2390 = vld [vmem:[%s2383 + $0x18] sm:$0xf]
  %v2391 = vld [vmem:[%s2383 + $0x1c] sm:$0xf]
  %v2392 = vld [vmem:[%s2383 + $0x20] sm:$0xf]
  %v2393 = vld [vmem:[%s2383 + $0x24] sm:$0xf]
  %v2394 = vld [vmem:[%s2383 + $0x28] sm:$0xf]
  %v2395 = vld [vmem:[%s2383 + $0x2c] sm:$0xf]
  %v2396 = vld [vmem:[%s2383 + $0x30] sm:$0xf]
  %v2397 = vld [vmem:[%s2383 + $0x34] sm:$0xf]
  %v2398 = vld [vmem:[%s2383 + $0x38] sm:$0xf]
  %v2399 = vld [vmem:[%s2383 + $0x3c] sm:$0xf]
  %v2400 = vld [vmem:[%s2383 + $0x40] sm:$0xf]
  %v2401 = vld [vmem:[%s2383 + $0x44] sm:$0xf]
  %v2402 = vld [vmem:[%s2383 + $0x48] sm:$0xf]
  %v2403 = vld [vmem:[%s2383 + $0x4c] sm:$0xf]
  %v2404 = vld [vmem:[%s2383 + $0x50] sm:$0xf]
  %v2405 = vld [vmem:[%s2383 + $0x54] sm:$0xf]
  %v2406 = vld [vmem:[%s2383 + $0x58] sm:$0xf]
  %v2407 = vld [vmem:[%s2383 + $0x5c] sm:$0xf]
  %v2408 = vld [vmem:[%s2383 + $0x60] sm:$0xf]
  %v2409 = vld [vmem:[%s2383 + $0x64] sm:$0xf]
  %v2410 = vld [vmem:[%s2383 + $0x68] sm:$0xf]
  %v2411 = vld [vmem:[%s2383 + $0x6c] sm:$0xf]
  %v2412 = vld [vmem:[%s2383 + $0x70] sm:$0xf]
  %v2413 = vld [vmem:[%s2383 + $0x74] sm:$0xf]
  %v2414 = vld [vmem:[%s2383 + $0x78] sm:$0xf]
  %v2415 = vld [vmem:[%s2383 + $0x7c] sm:$0xf]
  %v2420 = vunpack.c.l.b16 %v2379
  %v2421 = vunpack.c.h.b16 %v2379
  %v2422 = vunpack.c.l.b16 %v2380
  %v2423 = vunpack.c.h.b16 %v2380
  %v2424 = vunpack.c.l.b16 %v2381
  %v2425 = vunpack.c.h.b16 %v2381
  %v2426 = vunpack.c.l.b16 %v2382
  %v2427 = vunpack.c.h.b16 %v2382
  %v2428 = vpack.c.b16 %v2422, %v2420
  %v2429 = vpack.c.b16 %v2423, %v2421
  %v2430 = vpack.c.b16 %v2426, %v2424
  %v2431 = vpack.c.b16 %v2427, %v2425
  %v2468 = vunpack.c.l.b16 %v2384
  %v2469 = vunpack.c.l.b16 %v2385
  %v2470 = vunpack.c.l.b16 %v2386
  %v2471 = vunpack.c.l.b16 %v2387
  %v2472 = vunpack.c.l.b16 %v2388
  %v2473 = vunpack.c.l.b16 %v2389
  %v2474 = vunpack.c.l.b16 %v2390
  %v2475 = vunpack.c.l.b16 %v2391
  %v2476 = vunpack.c.l.b16 %v2392
  %v2477 = vunpack.c.l.b16 %v2393
  %v2478 = vunpack.c.l.b16 %v2394
  %v2479 = vunpack.c.l.b16 %v2395
  %v2480 = vunpack.c.l.b16 %v2396
  %v2481 = vunpack.c.l.b16 %v2397
  %v2482 = vunpack.c.l.b16 %v2398
  %v2483 = vunpack.c.l.b16 %v2399
  %v2484 = vunpack.c.l.b16 %v2400
  %v2485 = vunpack.c.l.b16 %v2401
  %v2486 = vunpack.c.l.b16 %v2402
  %v2487 = vunpack.c.l.b16 %v2403
  %v2488 = vunpack.c.l.b16 %v2404
  %v2489 = vunpack.c.l.b16 %v2405
  %v2490 = vunpack.c.l.b16 %v2406
  %v2491 = vunpack.c.l.b16 %v2407
  %v2492 = vunpack.c.l.b16 %v2408
  %v2493 = vunpack.c.l.b16 %v2409
  %v2494 = vunpack.c.l.b16 %v2410
  %v2495 = vunpack.c.l.b16 %v2411
  %v2496 = vunpack.c.l.b16 %v2412
  %v2497 = vunpack.c.l.b16 %v2413
  %v2498 = vunpack.c.l.b16 %v2414
  %v2499 = vunpack.c.l.b16 %v2415
  %v2500 = vpack.c.b16 %v2469, %v2468
  %v2501 = vpack.c.b16 %v2471, %v2470
  %v2502 = vpack.c.b16 %v2473, %v2472
  %v2503 = vpack.c.b16 %v2475, %v2474
  %v2504 = vpack.c.b16 %v2477, %v2476
  %v2505 = vpack.c.b16 %v2479, %v2478
  %v2506 = vpack.c.b16 %v2481, %v2480
  %v2507 = vpack.c.b16 %v2483, %v2482
  %v2508 = vpack.c.b16 %v2485, %v2484
  %v2509 = vpack.c.b16 %v2487, %v2486
  %v2510 = vpack.c.b16 %v2489, %v2488
  %v2511 = vpack.c.b16 %v2491, %v2490
  %v2512 = vpack.c.b16 %v2493, %v2492
  %v2513 = vpack.c.b16 %v2495, %v2494
  %v2514 = vpack.c.b16 %v2497, %v2496
  %v2515 = vpack.c.b16 %v2499, %v2498
  %2532 = vmatpush.bf16.msra.mxu0 %v2507
  %2533 = vmatpush.bf16.msra.mxu0 %v2506
  %2534 = vmatpush.bf16.msra.mxu0 %v2505
  %2535 = vmatpush.bf16.msra.mxu0 %v2504
  %2536 = vmatpush.bf16.msra.mxu0 %v2503
  %2537 = vmatpush.bf16.msra.mxu0 %v2502
  %2538 = vmatpush.bf16.msra.mxu0 %v2501
  %2539 = vmatpush.bf16.msra.mxu0 %v2500
  %2540 = vmatmul.bf16.gmra.mxu0 %v2428
  %v2541 = vpop.f32.mrf.mxu0
  %v2542 = vadd.f32 0.0, %v2541
  %v2543 = vpop.f32.mrf.mxu0
  %v2544 = vadd.f32 0.0, %v2543
  %2545 = vmatmul.bf16.gmra.mxu0 %v2430
  %v2546 = vpop.f32.mrf.mxu0
  %v2547 = vadd.f32 0.0, %v2546
  %v2548 = vpop.f32.mrf.mxu0
  %v2549 = vadd.f32 0.0, %v2548
  %2550 = vdwg.mxu0
  %2551 = vmatpush.bf16.msra.mxu0 %v2515
  %2552 = vmatpush.bf16.msra.mxu0 %v2514
  %2553 = vmatpush.bf16.msra.mxu0 %v2513
  %2554 = vmatpush.bf16.msra.mxu0 %v2512
  %2555 = vmatpush.bf16.msra.mxu0 %v2511
  %2556 = vmatpush.bf16.msra.mxu0 %v2510
  %2557 = vmatpush.bf16.msra.mxu0 %v2509
  %2558 = vmatpush.bf16.msra.mxu0 %v2508
  %2559 = vmatmul.bf16.gmra.mxu0 %v2429
  %v2560 = vpop.f32.mrf.mxu0
  %v2561 = vadd.f32 %v2542, %v2560
  %v2562 = vpop.f32.mrf.mxu0
  %v2563 = vadd.f32 %v2544, %v2562
  %2564 = vmatmul.bf16.gmra.mxu0 %v2431
  %v2565 = vpop.f32.mrf.mxu0
  %v2566 = vadd.f32 %v2547, %v2565
  %v2567 = vpop.f32.mrf.mxu0
  %v2568 = vadd.f32 %v2549, %v2567
  %2569 = vdwg.mxu0
  %v2570 = vadd.f32 %v2375, %v2561
  %v2571 = vadd.f32 %v2376, %v2563
  %v2572 = vadd.f32 %v2377, %v2566
  %v2573 = vadd.f32 %v2378, %v2568
  %vm2574 = vcmask 916480
  %v2575 = vsel %vm2574, %v2570, 0.0
  %v2576 = vsel %vm2574, %v2571, 0.0
  %v2577 = vadd.f32 %v2575, %v2576
  %v2578 = vsel %vm2574, %v2572, 0.0
  %v2579 = vadd.f32 %v2577, %v2578
  %v2580 = vsel %vm223, %v2573, 0.0
  %v2581 = vadd.f32 %v2579, %v2580
  %v2582 = vrot.slane %v2581, 4
  %v2583 = vadd.f32 %v2581, %v2582
  %v2584 = vrot.slane %v2583, 2
  %v2585 = vadd.f32 %v2583, %v2584
  %v2586 = vrot.slane %v2585, 1
  %v2587 = vadd.f32 %v2585, %v2586
  %v2588 = vmul.f32 %v2570, %v2570
  %v2589 = vmul.f32 %v2571, %v2571
  %v2590 = vmul.f32 %v2572, %v2572
  %v2591 = vmul.f32 %v2573, %v2573
  %v2592 = vsel %vm2574, %v2588, 0.0
  %v2593 = vsel %vm2574, %v2589, 0.0
  %v2594 = vadd.f32 %v2592, %v2593
  %v2595 = vsel %vm2574, %v2590, 0.0
  %v2596 = vadd.f32 %v2594, %v2595
  %v2597 = vsel %vm223, %v2591, 0.0
  %v2598 = vadd.f32 %v2596, %v2597
  %v2599 = vrot.slane %v2598, 4
  %v2600 = vadd.f32 %v2598, %v2599
  %v2601 = vrot.slane %v2600, 2
  %v2602 = vadd.f32 %v2600, %v2601
  %v2603 = vrot.slane %v2602, 1
  %v2604 = vadd.f32 %v2602, %v2603
  %vm2605 = vcmask 1040384
  %v2606 = vsel %vm2605, %v2587, %v2604
  %v2607 = vld [vmem:[%s5] sm:$0xff]
  %v2608 = vld [vmem:[%s5 + $0x8] sm:$0xff]
  %v2609 = vld [vmem:[%s5 + $0x10] sm:$0xff]
  %v2610 = vld [vmem:[%s5 + $0x18] sm:$0xff]
  %v2611 = vld [vmem:[%s5 + $0x20] sm:$0xff]
  %v2612 = vld [vmem:[%s5 + $0x28] sm:$0xff]
  %v2613 = vld [vmem:[%s5 + $0x30] sm:$0xff]
  %v2614 = vld [vmem:[%s5 + $0x38] sm:$0xff]
  %v2615 = vld [vmem:[%s5 + $0x40] sm:$0xff]
  %v2616 = vld [vmem:[%s5 + $0x48] sm:$0xff]
  %v2617 = vld [vmem:[%s5 + $0x50] sm:$0xff]
  %v2618 = vld [vmem:[%s5 + $0x58] sm:$0xff]
  %v2619 = vld [vmem:[%s5 + $0x60] sm:$0xff]
  %v2620 = vld [vmem:[%s5 + $0x68] sm:$0xff]
  %v2622 = vsel %vm2574, %v2606, 0
  %2624 = vmatpush.msra.mxu0 0.0
  %2625 = vmatpush.msra.mxu0 0.0
  %2626 = vmatpush.msra.mxu0 %v2620
  %2627 = vmatpush.msra.mxu0 %v2619
  %2628 = vmatpush.msra.mxu0 %v2618
  %2629 = vmatpush.msra.mxu0 %v2617
  %2630 = vmatpush.msra.mxu0 %v2616
  %2631 = vmatpush.msra.mxu0 %v2615
  %2632 = vmatpush.msra.mxu0 %v2614
  %2633 = vmatpush.msra.mxu0 %v2613
  %2634 = vmatpush.msra.mxu0 %v2612
  %2635 = vmatpush.msra.mxu0 %v2611
  %2636 = vmatpush.msra.mxu0 %v2610
  %2637 = vmatpush.msra.mxu0 %v2609
  %2638 = vmatpush.msra.mxu0 %v2608
  %2639 = vmatpush.msra.mxu0 %v2607
  %2640 = vmatmul.f32.gmra.mxu0 %v2622
  %v2641 = vpop.f32.mrf.mxu0
  %v2642 = vadd.f32 0.0, %v2641
  %2643 = vdwg.mxu0
  %v2644 = vrcp.pop 196.0
  %v2645 = vmul.f32 196.0, %v2644
  %v2646 = vsub.f32 1.0, %v2645
  %v2647 = vmul.f32 %v2644, %v2646
  %v2648 = vadd.f32 %v2644, %v2647
  %vm2649 = vweird.f32 %v2644
  %v2650 = vsel %vm2649, %v2644, %v2648
  %v2651 = vmul.f32 %v2642, %v2650
  %v2652 = vmul.f32 %v2651, %v2651
  %v2654 = vrot.slane %v2652, 7
  %v2656 = vsub.f32 %v2651, %v2654
  %v2657 = vmax.f32 %v2656, 0.0
  %v2658 = vld [vmem:[%s7] sm:$0x1]
  %v2659 = vadd.f32 %v2657, 1e-05
  %v2660 = vrsqrt.pop %v2659
  %v2661 = vmul.f32 %v2660, %v2659
  %v2662 = vmul.f32 %v2661, %v2660
  %v2663 = vmul.f32 0.5, %v2662
  %v2664 = vsub.f32 1.5, %v2663
  %v2665 = vmul.f32 %v2660, %v2664
  %vm2666 = vweird.f32 %v2659
  %vm2667 = vweird.f32 %v2660
  %vm2668 = vmor %vm2666, %vm2667
  %v2669 = vsel %vm2668, %v2660, %v2665
  %2671 = vst [vmem:[#allocation1] sm:$0xff] %v2669
  %s2672 = scalar_lea.vmem [#allocation1], 1
  %v2673 = vld [vmem:[%s2672] ss:$9 sm:$0xff]
  %v2675 = vmul.f32 %v2658, %v2673
  %v2676 = vld [vmem:[%s8] sm:$0x1]
  %v2677 = vmul.f32 %v2651, %v2675
  %v2678 = vsub.f32 %v2676, %v2677
  %v2680 = vperm.slane %v2678, 0
  %v2682 = vsel %vm2605, %v2675, %v2680
  %v2683 = vld [vmem:[%s6] sm:$0xff]
  %v2684 = vld [vmem:[%s6 + $0x8] sm:$0xff]
  %vm2685 = vcmask 130048
  %v2687 = vsel %vm2685, %v2682, 0
  %2689 = vmatpush.msra.mxu0 0.0
  %2690 = vmatpush.msra.mxu0 0.0
  %2691 = vmatpush.msra.mxu0 0.0
  %2692 = vmatpush.msra.mxu0 0.0
  %2693 = vmatpush.msra.mxu0 0.0
  %2694 = vmatpush.msra.mxu0 0.0
  %2695 = vmatpush.msra.mxu0 0.0
  %2696 = vmatpush.msra.mxu0 0.0
  %2697 = vmatpush.msra.mxu0 0.0
  %2698 = vmatpush.msra.mxu0 0.0
  %2699 = vmatpush.msra.mxu0 0.0
  %2700 = vmatpush.msra.mxu0 0.0
  %2701 = vmatpush.msra.mxu0 0.0
  %2702 = vmatpush.msra.mxu0 0.0
  %2703 = vmatpush.msra.mxu0 %v2684
  %2704 = vmatpush.msra.mxu0 %v2683
  %2705 = vmatmul.f32.gmra.mxu0 %v2687
  %v2706 = vpop.f32.mrf.mxu0
  %v2707 = vadd.f32 0.0, %v2706
  %2708 = vdwg.mxu0
  %v2709 = vperm.slane %v2707, 0
  %v2710 = vmul.f32 %v2570, %v2709
  %v2711 = vmul.f32 %v2571, %v2709
  %v2712 = vmul.f32 %v2572, %v2709
  %v2713 = vmul.f32 %v2573, %v2709
  %v2714 = vperm.slane %v2707, 1
  %v2715 = vadd.f32 %v2710, %v2714
  %v2716 = vadd.f32 %v2711, %v2714
  %v2717 = vadd.f32 %v2712, %v2714
  %v2718 = vadd.f32 %v2713, %v2714
  %vm2719 = vcmp.ge.f32.partialorder %v2715, 0.0
  %vm2720 = vcmp.ge.f32.partialorder %v2716, 0.0
  %vm2721 = vcmp.ge.f32.partialorder %v2717, 0.0
  %vm2722 = vcmp.ge.f32.partialorder %v2718, 0.0
  %v2723 = vmul.f32 %v2715, 0.3
  %v2724 = vmul.f32 %v2716, 0.3
  %v2725 = vmul.f32 %v2717, 0.3
  %v2726 = vmul.f32 %v2718, 0.3
  %v2727 = vsel %vm2719, %v2715, %v2723
  %v2728 = vsel %vm2720, %v2716, %v2724
  %v2729 = vsel %vm2721, %v2717, %v2725
  %v2730 = vsel %vm2722, %v2718, %v2726
  %v2731 = vpack.c.bf16 %v2727, %v2727
  %vm2732 = vcmask 910336
  %2733 = vst.msk [vmem:[#allocation3 + $0x4] sm:$0x3] %vm2732, %v2731
  %v2735 = vrot.slane %v2731, 6
  %v2736 = vrot.slane %v2735, 4
  %2738 = vst.msk [vmem:[#allocation3 + $0x8] sm:$0x3] %vm2732, %v2736
  %v2739 = vpack.c.bf16 %v2728, %v2728
  %2740 = vst.msk [vmem:[#allocation3 + $0xc] sm:$0x3] %vm2732, %v2739
  %v2742 = vrot.slane %v2739, 6
  %v2743 = vrot.slane %v2742, 4
  %2745 = vst.msk [vmem:[#allocation3 + $0x10] sm:$0x3] %vm2732, %v2743
  %v2746 = vpack.c.bf16 %v2729, %v2729
  %2747 = vst.msk [vmem:[#allocation3 + $0x14] sm:$0x3] %vm2732, %v2746
  %v2749 = vrot.slane %v2746, 6
  %v2750 = vrot.slane %v2749, 4
  %2752 = vst.msk [vmem:[#allocation3 + $0x18] sm:$0x3] %vm2732, %v2750
  %v2753 = vpack.c.bf16 %v2730, %v2730
  %2754 = vst.msk [vmem:[#allocation3 + $0x1c] sm:$0x3] %vm2732, %v2753
  %s2755 = smul.u32 4, 5
  %s2756 = smul.u32 %s2755, 14
  %s2757 = smul.u32 %s2756, 1
  %s2758 = sshll.u32 %s2757, 4
  %2759 = dma.done [#allocation8], %s2758
  %v2760 = vld [vmem:[#allocation3] sm:$0xf]
  %v2761 = vld [vmem:[#allocation3 + $0x4] sm:$0xf]
  %v2762 = vld [vmem:[#allocation3 + $0x8] sm:$0xf]
  %v2763 = vld [vmem:[#allocation3 + $0xc] sm:$0xf]
  %v2764 = vld [vmem:[#allocation3 + $0x10] sm:$0xf]
  %v2765 = vld [vmem:[#allocation3 + $0x14] sm:$0xf]
  %v2766 = vld [vmem:[#allocation3 + $0x18] sm:$0xf]
  %v2767 = vld [vmem:[#allocation5] sm:$0xf]
  %v2768 = vld [vmem:[#allocation5 + $0x4] sm:$0xf]
  %v2769 = vld [vmem:[#allocation5 + $0x8] sm:$0xf]
  %v2770 = vld [vmem:[#allocation5 + $0xc] sm:$0xf]
  %v2771 = vld [vmem:[#allocation5 + $0x10] sm:$0xf]
  %v2772 = vld [vmem:[#allocation5 + $0x14] sm:$0xf]
  %v2773 = vld [vmem:[#allocation5 + $0x18] sm:$0xf]
  %v2774 = vld [vmem:[#allocation5 + $0x1c] sm:$0xf]
  %v2775 = vld [vmem:[#allocation5 + $0x20] sm:$0xf]
  %v2776 = vld [vmem:[#allocation5 + $0x24] sm:$0xf]
  %v2777 = vld [vmem:[#allocation5 + $0x28] sm:$0xf]
  %v2778 = vld [vmem:[#allocation5 + $0x2c] sm:$0xf]
  %v2779 = vld [vmem:[#allocation5 + $0x30] sm:$0xf]
  %v2780 = vld [vmem:[#allocation5 + $0x34] sm:$0xf]
  %v2781 = vld [vmem:[#allocation3] sm:$0xc]
  %v2782 = vld [vmem:[#allocation3 + $0x1c] sm:$0x3]
  %s2783 = scalar_lea.vmem [#allocation5], 56
  %v2784 = vld [vmem:[%s2783] sm:$0xf]
  %v2785 = vld [vmem:[%s2783 + $0x4] sm:$0xf]
  %v2786 = vld [vmem:[%s2783 + $0x8] sm:$0xf]
  %v2787 = vld [vmem:[%s2783 + $0xc] sm:$0xf]
  %v2788 = vld [vmem:[%s2783 + $0x10] sm:$0xf]
  %v2789 = vld [vmem:[%s2783 + $0x14] sm:$0xf]
  %v2790 = vld [vmem:[%s2783 + $0x18] sm:$0xf]
  %v2791 = vld [vmem:[%s2783 + $0x1c] sm:$0xf]
  %v2792 = vld [vmem:[%s2783 + $0x20] sm:$0xf]
  %v2793 = vld [vmem:[%s2783 + $0x24] sm:$0xf]
  %v2794 = vld [vmem:[%s2783 + $0x28] sm:$0xf]
  %v2795 = vld [vmem:[%s2783 + $0x2c] sm:$0xf]
  %v2796 = vld [vmem:[%s2783 + $0x30] sm:$0xf]
  %v2797 = vld [vmem:[%s2783 + $0x34] sm:$0xf]
  %v2806 = vunpack.c.l.b16 %v2781
  %v2807 = vunpack.c.l.b16 %v2761
  %v2808 = vunpack.c.l.b16 %v2762
  %v2809 = vunpack.c.l.b16 %v2763
  %v2810 = vunpack.c.l.b16 %v2764
  %v2811 = vunpack.c.l.b16 %v2765
  %v2812 = vunpack.c.l.b16 %v2766
  %v2813 = vunpack.c.l.b16 %v2782
  %v2814 = vpack.c.b16 %v2807, %v2806
  %v2815 = vpack.c.b16 %v2809, %v2808
  %v2816 = vpack.c.b16 %v2811, %v2810
  %v2817 = vpack.c.b16 %v2813, %v2812
  %v2818 = vrot.slane %v2814, 2
  %v2819 = vrot.slane %v2815, 2
  %v2820 = vsel %vm1698, %v2818, %v2819
  %v2821 = vrot.slane %v2816, 2
  %v2822 = vsel %vm1698, %v2819, %v2821
  %v2823 = vrot.slane %v2817, 2
  %v2824 = vsel %vm1698, %v2821, %v2823
  %v2839 = vunpack.c.l.b16 %v2784
  %v2840 = vunpack.c.l.b16 %v2785
  %v2841 = vunpack.c.l.b16 %v2786
  %v2842 = vunpack.c.l.b16 %v2787
  %v2843 = vunpack.c.l.b16 %v2788
  %v2844 = vunpack.c.l.b16 %v2789
  %v2845 = vunpack.c.l.b16 %v2790
  %v2846 = vunpack.c.l.b16 %v2791
  %v2847 = vunpack.c.l.b16 %v2792
  %v2848 = vunpack.c.l.b16 %v2793
  %v2849 = vunpack.c.l.b16 %v2794
  %v2850 = vunpack.c.l.b16 %v2795
  %v2851 = vunpack.c.l.b16 %v2796
  %v2852 = vunpack.c.l.b16 %v2797
  %v2853 = vpack.c.b16 %v2840, %v2839
  %v2854 = vpack.c.b16 %v2842, %v2841
  %v2855 = vpack.c.b16 %v2844, %v2843
  %v2856 = vpack.c.b16 %v2846, %v2845
  %v2857 = vpack.c.b16 %v2848, %v2847
  %v2858 = vpack.c.b16 %v2850, %v2849
  %v2859 = vpack.c.b16 %v2852, %v2851
  %v2868 = vsel %vm2574, %v2820, 0
  %v2871 = vsel %vm2574, %v2822, 0
  %v2874 = vsel %vm2574, %v2824, 0
  %v2877 = vsel %vm2574, %v2823, 0
  %2879 = vmatpush.bf16.msra.mxu0 0
  %2880 = vmatpush.bf16.msra.mxu0 %v2859
  %2881 = vmatpush.bf16.msra.mxu0 %v2858
  %2882 = vmatpush.bf16.msra.mxu0 %v2857
  %2883 = vmatpush.bf16.msra.mxu0 %v2856
  %2884 = vmatpush.bf16.msra.mxu0 %v2855
  %2885 = vmatpush.bf16.msra.mxu0 %v2854
  %2886 = vmatpush.bf16.msra.mxu0 %v2853
  %2887 = vmatmul.bf16.gmra.mxu0 %v2868
  %v2888 = vpop.f32.mrf.mxu0
  %v2889 = vadd.f32 0.0, %v2888
  %v2890 = vpop.f32.mrf.mxu0
  %v2891 = vadd.f32 0.0, %v2890
  %2892 = vmatmul.bf16.gmra.mxu0 %v2871
  %v2893 = vpop.f32.mrf.mxu0
  %v2894 = vadd.f32 0.0, %v2893
  %v2895 = vpop.f32.mrf.mxu0
  %v2896 = vadd.f32 0.0, %v2895
  %2897 = vmatmul.bf16.gmra.mxu0 %v2874
  %v2898 = vpop.f32.mrf.mxu0
  %v2899 = vadd.f32 0.0, %v2898
  %v2900 = vpop.f32.mrf.mxu0
  %v2901 = vadd.f32 0.0, %v2900
  %2902 = vmatmul.bf16.gmra.mxu0 %v2877
  %v2903 = vpop.f32.mrf.mxu0
  %v2904 = vadd.f32 0.0, %v2903
  %v2905 = vpop.f32.mrf.mxu0
  %2906 = vdwg.mxu0
  %v2908 = vunpack.c.l.b16 %v2760
  %v2909 = vpack.c.b16 %v2807, %v2908
  %v2910 = vpack.c.b16 %v2812, %v2812
  %v2925 = vunpack.c.l.b16 %v2767
  %v2926 = vunpack.c.l.b16 %v2768
  %v2927 = vunpack.c.l.b16 %v2769
  %v2928 = vunpack.c.l.b16 %v2770
  %v2929 = vunpack.c.l.b16 %v2771
  %v2930 = vunpack.c.l.b16 %v2772
  %v2931 = vunpack.c.l.b16 %v2773
  %v2932 = vunpack.c.l.b16 %v2774
  %v2933 = vunpack.c.l.b16 %v2775
  %v2934 = vunpack.c.l.b16 %v2776
  %v2935 = vunpack.c.l.b16 %v2777
  %v2936 = vunpack.c.l.b16 %v2778
  %v2937 = vunpack.c.l.b16 %v2779
  %v2938 = vunpack.c.l.b16 %v2780
  %v2939 = vpack.c.b16 %v2926, %v2925
  %v2940 = vpack.c.b16 %v2928, %v2927
  %v2941 = vpack.c.b16 %v2930, %v2929
  %v2942 = vpack.c.b16 %v2932, %v2931
  %v2943 = vpack.c.b16 %v2934, %v2933
  %v2944 = vpack.c.b16 %v2936, %v2935
  %v2945 = vpack.c.b16 %v2938, %v2937
  %v2954 = vsel %vm2574, %v2909, 0
  %v2957 = vsel %vm2574, %v2815, 0
  %v2960 = vsel %vm2574, %v2816, 0
  %v2963 = vsel %vm2574, %v2910, 0
  %2965 = vmatpush.bf16.msra.mxu0 0
  %2966 = vmatpush.bf16.msra.mxu0 %v2945
  %2967 = vmatpush.bf16.msra.mxu0 %v2944
  %2968 = vmatpush.bf16.msra.mxu0 %v2943
  %2969 = vmatpush.bf16.msra.mxu0 %v2942
  %2970 = vmatpush.bf16.msra.mxu0 %v2941
  %2971 = vmatpush.bf16.msra.mxu0 %v2940
  %2972 = vmatpush.bf16.msra.mxu0 %v2939
  %2973 = vmatmul.bf16.gmra.mxu0 %v2954
  %v2974 = vpop.f32.mrf.mxu0
  %v2975 = vadd.f32 %v2889, %v2974
  %v2976 = vpop.f32.mrf.mxu0
  %v2977 = vadd.f32 %v2891, %v2976
  %2978 = vmatmul.bf16.gmra.mxu0 %v2957
  %v2979 = vpop.f32.mrf.mxu0
  %v2980 = vadd.f32 %v2894, %v2979
  %v2981 = vpop.f32.mrf.mxu0
  %v2982 = vadd.f32 %v2896, %v2981
  %2983 = vmatmul.bf16.gmra.mxu0 %v2960
  %v2984 = vpop.f32.mrf.mxu0
  %v2985 = vadd.f32 %v2899, %v2984
  %v2986 = vpop.f32.mrf.mxu0
  %v2987 = vadd.f32 %v2901, %v2986
  %2988 = vmatmul.bf16.gmra.mxu0 %v2963
  %v2989 = vpop.f32.mrf.mxu0
  %v2990 = vadd.f32 %v2904, %v2989
  %v2991 = vpop.f32.mrf.mxu0
  %2992 = vdwg.mxu0
  %v2993 = vld [vmem:[#allocation3 + $0x1c] sm:$0xf]
  %s2994 = scalar_lea.vmem [#allocation5], 112
  %v2995 = vld [vmem:[%s2994] sm:$0xf]
  %v2996 = vld [vmem:[%s2994 + $0x4] sm:$0xf]
  %v2997 = vld [vmem:[%s2994 + $0x8] sm:$0xf]
  %v2998 = vld [vmem:[%s2994 + $0xc] sm:$0xf]
  %v2999 = vld [vmem:[%s2994 + $0x10] sm:$0xf]
  %v3000 = vld [vmem:[%s2994 + $0x14] sm:$0xf]
  %v3001 = vld [vmem:[%s2994 + $0x18] sm:$0xf]
  %v3002 = vld [vmem:[%s2994 + $0x1c] sm:$0xf]
  %v3003 = vld [vmem:[%s2994 + $0x20] sm:$0xf]
  %v3004 = vld [vmem:[%s2994 + $0x24] sm:$0xf]
  %v3005 = vld [vmem:[%s2994 + $0x28] sm:$0xf]
  %v3006 = vld [vmem:[%s2994 + $0x2c] sm:$0xf]
  %v3007 = vld [vmem:[%s2994 + $0x30] sm:$0xf]
  %v3008 = vld [vmem:[%s2994 + $0x34] sm:$0xf]
  %v3010 = vunpack.c.l.b16 %v2993
  %v3011 = vpack.c.b16 %v2808, %v2807
  %v3012 = vpack.c.b16 %v2810, %v2809
  %v3013 = vpack.c.b16 %v2812, %v2811
  %v3014 = vpack.c.b16 %v3010, %v3010
  %v3029 = vunpack.c.l.b16 %v2995
  %v3030 = vunpack.c.l.b16 %v2996
  %v3031 = vunpack.c.l.b16 %v2997
  %v3032 = vunpack.c.l.b16 %v2998
  %v3033 = vunpack.c.l.b16 %v2999
  %v3034 = vunpack.c.l.b16 %v3000
  %v3035 = vunpack.c.l.b16 %v3001
  %v3036 = vunpack.c.l.b16 %v3002
  %v3037 = vunpack.c.l.b16 %v3003
  %v3038 = vunpack.c.l.b16 %v3004
  %v3039 = vunpack.c.l.b16 %v3005
  %v3040 = vunpack.c.l.b16 %v3006
  %v3041 = vunpack.c.l.b16 %v3007
  %v3042 = vunpack.c.l.b16 %v3008
  %v3043 = vpack.c.b16 %v3030, %v3029
  %v3044 = vpack.c.b16 %v3032, %v3031
  %v3045 = vpack.c.b16 %v3034, %v3033
  %v3046 = vpack.c.b16 %v3036, %v3035
  %v3047 = vpack.c.b16 %v3038, %v3037
  %v3048 = vpack.c.b16 %v3040, %v3039
  %v3049 = vpack.c.b16 %v3042, %v3041
  %v3058 = vsel %vm2574, %v3011, 0
  %v3061 = vsel %vm2574, %v3012, 0
  %v3064 = vsel %vm2574, %v3013, 0
  %v3067 = vsel %vm2574, %v3014, 0
  %3069 = vmatpush.bf16.msra.mxu0 0
  %3070 = vmatpush.bf16.msra.mxu0 %v3049
  %3071 = vmatpush.bf16.msra.mxu0 %v3048
  %3072 = vmatpush.bf16.msra.mxu0 %v3047
  %3073 = vmatpush.bf16.msra.mxu0 %v3046
  %3074 = vmatpush.bf16.msra.mxu0 %v3045
  %3075 = vmatpush.bf16.msra.mxu0 %v3044
  %3076 = vmatpush.bf16.msra.mxu0 %v3043
  %3077 = vmatmul.bf16.gmra.mxu0 %v3058
  %v3078 = vpop.f32.mrf.mxu0
  %v3079 = vadd.f32 0.0, %v3078
  %v3080 = vpop.f32.mrf.mxu0
  %v3081 = vadd.f32 0.0, %v3080
  %3082 = vmatmul.bf16.gmra.mxu0 %v3061
  %v3083 = vpop.f32.mrf.mxu0
  %v3084 = vadd.f32 0.0, %v3083
  %v3085 = vpop.f32.mrf.mxu0
  %v3086 = vadd.f32 0.0, %v3085
  %3087 = vmatmul.bf16.gmra.mxu0 %v3064
  %v3088 = vpop.f32.mrf.mxu0
  %v3089 = vadd.f32 0.0, %v3088
  %v3090 = vpop.f32.mrf.mxu0
  %v3091 = vadd.f32 0.0, %v3090
  %3092 = vmatmul.bf16.gmra.mxu0 %v3067
  %v3093 = vpop.f32.mrf.mxu0
  %v3094 = vadd.f32 0.0, %v3093
  %v3095 = vpop.f32.mrf.mxu0
  %3096 = vdwg.mxu0
  %v3097 = vadd.f32 %v2975, %v3079
  %v3098 = vadd.f32 %v2977, %v3081
  %v3099 = vadd.f32 %v2980, %v3084
  %v3100 = vadd.f32 %v2982, %v3086
  %v3101 = vadd.f32 %v2985, %v3089
  %v3102 = vadd.f32 %v2987, %v3091
  %v3103 = vadd.f32 %v2990, %v3094
  %v3104 = vld [vmem:[#allocation3 + $0x4] sm:$0xc]
  %v3105 = vld [vmem:[#allocation3 + $0x8] sm:$0xf]
  %v3106 = vld [vmem:[#allocation3 + $0xc] sm:$0xf]
  %v3107 = vld [vmem:[#allocation3 + $0x10] sm:$0xf]
  %v3108 = vld [vmem:[#allocation3 + $0x14] sm:$0xf]
  %v3109 = vld [vmem:[#allocation3 + $0x18] sm:$0xf]
  %v3110 = vld [vmem:[#allocation3 + $0x1c] sm:$0xf]
  %v3111 = vld [vmem:[#allocation3 + $0x20] sm:$0x3]
  %s3112 = scalar_lea.vmem [#allocation5], 168
  %v3113 = vld [vmem:[%s3112] sm:$0xf]
  %v3114 = vld [vmem:[%s3112 + $0x4] sm:$0xf]
  %v3115 = vld [vmem:[%s3112 + $0x8] sm:$0xf]
  %v3116 = vld [vmem:[%s3112 + $0xc] sm:$0xf]
  %v3117 = vld [vmem:[%s3112 + $0x10] sm:$0xf]
  %v3118 = vld [vmem:[%s3112 + $0x14] sm:$0xf]
  %v3119 = vld [vmem:[%s3112 + $0x18] sm:$0xf]
  %v3120 = vld [vmem:[%s3112 + $0x1c] sm:$0xf]
  %v3121 = vld [vmem:[%s3112 + $0x20] sm:$0xf]
  %v3122 = vld [vmem:[%s3112 + $0x24] sm:$0xf]
  %v3123 = vld [vmem:[%s3112 + $0x28] sm:$0xf]
  %v3124 = vld [vmem:[%s3112 + $0x2c] sm:$0xf]
  %v3125 = vld [vmem:[%s3112 + $0x30] sm:$0xf]
  %v3126 = vld [vmem:[%s3112 + $0x34] sm:$0xf]
  %v3135 = vunpack.c.l.b16 %v3104
  %v3136 = vunpack.c.l.b16 %v3105
  %v3137 = vunpack.c.l.b16 %v3106
  %v3138 = vunpack.c.l.b16 %v3107
  %v3139 = vunpack.c.l.b16 %v3108
  %v3140 = vunpack.c.l.b16 %v3109
  %v3141 = vunpack.c.l.b16 %v3110
  %v3142 = vunpack.c.l.b16 %v3111
  %v3143 = vpack.c.b16 %v3136, %v3135
  %v3144 = vpack.c.b16 %v3138, %v3137
  %v3145 = vpack.c.b16 %v3140, %v3139
  %v3146 = vpack.c.b16 %v3142, %v3141
  %v3147 = vrot.slane %v3143, 2
  %v3148 = vrot.slane %v3144, 2
  %v3149 = vsel %vm1698, %v3147, %v3148
  %v3150 = vrot.slane %v3145, 2
  %v3151 = vsel %vm1698, %v3148, %v3150
  %v3152 = vrot.slane %v3146, 2
  %v3153 = vsel %vm1698, %v3150, %v3152
  %v3168 = vunpack.c.l.b16 %v3113
  %v3169 = vunpack.c.l.b16 %v3114
  %v3170 = vunpack.c.l.b16 %v3115
  %v3171 = vunpack.c.l.b16 %v3116
  %v3172 = vunpack.c.l.b16 %v3117
  %v3173 = vunpack.c.l.b16 %v3118
  %v3174 = vunpack.c.l.b16 %v3119
  %v3175 = vunpack.c.l.b16 %v3120
  %v3176 = vunpack.c.l.b16 %v3121
  %v3177 = vunpack.c.l.b16 %v3122
  %v3178 = vunpack.c.l.b16 %v3123
  %v3179 = vunpack.c.l.b16 %v3124
  %v3180 = vunpack.c.l.b16 %v3125
  %v3181 = vunpack.c.l.b16 %v3126
  %v3182 = vpack.c.b16 %v3169, %v3168
  %v3183 = vpack.c.b16 %v3171, %v3170
  %v3184 = vpack.c.b16 %v3173, %v3172
  %v3185 = vpack.c.b16 %v3175, %v3174
  %v3186 = vpack.c.b16 %v3177, %v3176
  %v3187 = vpack.c.b16 %v3179, %v3178
  %v3188 = vpack.c.b16 %v3181, %v3180
  %v3197 = vsel %vm2574, %v3149, 0
  %v3200 = vsel %vm2574, %v3151, 0
  %v3203 = vsel %vm2574, %v3153, 0
  %v3206 = vsel %vm2574, %v3152, 0
  %3208 = vmatpush.bf16.msra.mxu0 0
  %3209 = vmatpush.bf16.msra.mxu0 %v3188
  %3210 = vmatpush.bf16.msra.mxu0 %v3187
  %3211 = vmatpush.bf16.msra.mxu0 %v3186
  %3212 = vmatpush.bf16.msra.mxu0 %v3185
  %3213 = vmatpush.bf16.msra.mxu0 %v3184
  %3214 = vmatpush.bf16.msra.mxu0 %v3183
  %3215 = vmatpush.bf16.msra.mxu0 %v3182
  %3216 = vmatmul.bf16.gmra.mxu0 %v3197
  %v3217 = vpop.f32.mrf.mxu0
  %v3218 = vadd.f32 0.0, %v3217
  %v3219 = vpop.f32.mrf.mxu0
  %v3220 = vadd.f32 0.0, %v3219
  %3221 = vmatmul.bf16.gmra.mxu0 %v3200
  %v3222 = vpop.f32.mrf.mxu0
  %v3223 = vadd.f32 0.0, %v3222
  %v3224 = vpop.f32.mrf.mxu0
  %v3225 = vadd.f32 0.0, %v3224
  %3226 = vmatmul.bf16.gmra.mxu0 %v3203
  %v3227 = vpop.f32.mrf.mxu0
  %v3228 = vadd.f32 0.0, %v3227
  %v3229 = vpop.f32.mrf.mxu0
  %v3230 = vadd.f32 0.0, %v3229
  %3231 = vmatmul.bf16.gmra.mxu0 %v3206
  %v3232 = vpop.f32.mrf.mxu0
  %v3233 = vadd.f32 0.0, %v3232
  %v3234 = vpop.f32.mrf.mxu0
  %3235 = vdwg.mxu0
  %v3236 = vadd.f32 %v3097, %v3218
  %v3237 = vadd.f32 %v3098, %v3220
  %v3238 = vadd.f32 %v3099, %v3223
  %v3239 = vadd.f32 %v3100, %v3225
  %v3240 = vadd.f32 %v3101, %v3228
  %v3241 = vadd.f32 %v3102, %v3230
  %v3242 = vadd.f32 %v3103, %v3233
  %v3243 = vld [vmem:[#allocation3 + $0x20] sm:$0xf]
  %s3244 = scalar_lea.vmem [#allocation5], 224
  %v3245 = vld [vmem:[%s3244] sm:$0xf]
  %v3246 = vld [vmem:[%s3244 + $0x4] sm:$0xf]
  %v3247 = vld [vmem:[%s3244 + $0x8] sm:$0xf]
  %v3248 = vld [vmem:[%s3244 + $0xc] sm:$0xf]
  %v3249 = vld [vmem:[%s3244 + $0x10] sm:$0xf]
  %v3250 = vld [vmem:[%s3244 + $0x14] sm:$0xf]
  %v3251 = vld [vmem:[%s3244 + $0x18] sm:$0xf]
  %v3252 = vld [vmem:[%s3244 + $0x1c] sm:$0xf]
  %v3253 = vld [vmem:[%s3244 + $0x20] sm:$0xf]
  %v3254 = vld [vmem:[%s3244 + $0x24] sm:$0xf]
  %v3255 = vld [vmem:[%s3244 + $0x28] sm:$0xf]
  %v3256 = vld [vmem:[%s3244 + $0x2c] sm:$0xf]
  %v3257 = vld [vmem:[%s3244 + $0x30] sm:$0xf]
  %v3258 = vld [vmem:[%s3244 + $0x34] sm:$0xf]
  %v3260 = vunpack.c.l.b16 %v3243
  %v3261 = vpack.c.b16 %v3137, %v3136
  %v3262 = vpack.c.b16 %v3139, %v3138
  %v3263 = vpack.c.b16 %v3141, %v3140
  %v3264 = vpack.c.b16 %v3260, %v3260
  %v3279 = vunpack.c.l.b16 %v3245
  %v3280 = vunpack.c.l.b16 %v3246
  %v3281 = vunpack.c.l.b16 %v3247
  %v3282 = vunpack.c.l.b16 %v3248
  %v3283 = vunpack.c.l.b16 %v3249
  %v3284 = vunpack.c.l.b16 %v3250
  %v3285 = vunpack.c.l.b16 %v3251
  %v3286 = vunpack.c.l.b16 %v3252
  %v3287 = vunpack.c.l.b16 %v3253
  %v3288 = vunpack.c.l.b16 %v3254
  %v3289 = vunpack.c.l.b16 %v3255
  %v3290 = vunpack.c.l.b16 %v3256
  %v3291 = vunpack.c.l.b16 %v3257
  %v3292 = vunpack.c.l.b16 %v3258
  %v3293 = vpack.c.b16 %v3280, %v3279
  %v3294 = vpack.c.b16 %v3282, %v3281
  %v3295 = vpack.c.b16 %v3284, %v3283
  %v3296 = vpack.c.b16 %v3286, %v3285
  %v3297 = vpack.c.b16 %v3288, %v3287
  %v3298 = vpack.c.b16 %v3290, %v3289
  %v3299 = vpack.c.b16 %v3292, %v3291
  %v3308 = vsel %vm2574, %v3261, 0
  %v3311 = vsel %vm2574, %v3262, 0
  %v3314 = vsel %vm2574, %v3263, 0
  %v3317 = vsel %vm2574, %v3264, 0
  %3319 = vmatpush.bf16.msra.mxu0 0
  %3320 = vmatpush.bf16.msra.mxu0 %v3299
  %3321 = vmatpush.bf16.msra.mxu0 %v3298
  %3322 = vmatpush.bf16.msra.mxu0 %v3297
  %3323 = vmatpush.bf16.msra.mxu0 %v3296
  %3324 = vmatpush.bf16.msra.mxu0 %v3295
  %3325 = vmatpush.bf16.msra.mxu0 %v3294
  %3326 = vmatpush.bf16.msra.mxu0 %v3293
  %3327 = vmatmul.bf16.gmra.mxu0 %v3308
  %v3328 = vpop.f32.mrf.mxu0
  %v3329 = vadd.f32 0.0, %v3328
  %v3330 = vpop.f32.mrf.mxu0
  %v3331 = vadd.f32 0.0, %v3330
  %3332 = vmatmul.bf16.gmra.mxu0 %v3311
  %v3333 = vpop.f32.mrf.mxu0
  %v3334 = vadd.f32 0.0, %v3333
  %v3335 = vpop.f32.mrf.mxu0
  %v3336 = vadd.f32 0.0, %v3335
  %3337 = vmatmul.bf16.gmra.mxu0 %v3314
  %v3338 = vpop.f32.mrf.mxu0
  %v3339 = vadd.f32 0.0, %v3338
  %v3340 = vpop.f32.mrf.mxu0
  %v3341 = vadd.f32 0.0, %v3340
  %3342 = vmatmul.bf16.gmra.mxu0 %v3317
  %v3343 = vpop.f32.mrf.mxu0
  %v3344 = vadd.f32 0.0, %v3343
  %v3345 = vpop.f32.mrf.mxu0
  %3346 = vdwg.mxu0
  %v3347 = vadd.f32 %v3236, %v3329
  %v3348 = vadd.f32 %v3237, %v3331
  %v3349 = vadd.f32 %v3238, %v3334
  %v3350 = vadd.f32 %v3239, %v3336
  %v3351 = vadd.f32 %v3240, %v3339
  %v3352 = vadd.f32 %v3241, %v3341
  %v3353 = vadd.f32 %v3242, %v3344
  %v3354 = vsel %vm2574, %v3347, 0.0
  %v3355 = vsel %vm2574, %v3348, 0.0
  %v3356 = vadd.f32 %v3354, %v3355
  %v3357 = vsel %vm2574, %v3349, 0.0
  %v3358 = vadd.f32 %v3356, %v3357
  %v3359 = vsel %vm2574, %v3350, 0.0
  %v3360 = vadd.f32 %v3358, %v3359
  %v3361 = vsel %vm2574, %v3351, 0.0
  %v3362 = vadd.f32 %v3360, %v3361
  %v3363 = vsel %vm2574, %v3352, 0.0
  %v3364 = vadd.f32 %v3362, %v3363
  %v3365 = vsel %vm2574, %v3353, 0.0
  %v3366 = vadd.f32 %v3364, %v3365
  %v3367 = vrot.slane %v3366, 4
  %v3368 = vadd.f32 %v3366, %v3367
  %v3369 = vrot.slane %v3368, 2
  %v3370 = vadd.f32 %v3368, %v3369
  %v3371 = vrot.slane %v3370, 1
  %v3372 = vadd.f32 %v3370, %v3371
  %v3373 = vmul.f32 %v3347, %v3347
  %v3374 = vmul.f32 %v3348, %v3348
  %v3375 = vmul.f32 %v3349, %v3349
  %v3376 = vmul.f32 %v3350, %v3350
  %v3377 = vmul.f32 %v3351, %v3351
  %v3378 = vmul.f32 %v3352, %v3352
  %v3379 = vmul.f32 %v3353, %v3353
  %v3380 = vsel %vm2574, %v3373, 0.0
  %v3381 = vsel %vm2574, %v3374, 0.0
  %v3382 = vadd.f32 %v3380, %v3381
  %v3383 = vsel %vm2574, %v3375, 0.0
  %v3384 = vadd.f32 %v3382, %v3383
  %v3385 = vsel %vm2574, %v3376, 0.0
  %v3386 = vadd.f32 %v3384, %v3385
  %v3387 = vsel %vm2574, %v3377, 0.0
  %v3388 = vadd.f32 %v3386, %v3387
  %v3389 = vsel %vm2574, %v3378, 0.0
  %v3390 = vadd.f32 %v3388, %v3389
  %v3391 = vsel %vm2574, %v3379, 0.0
  %v3392 = vadd.f32 %v3390, %v3391
  %v3393 = vrot.slane %v3392, 4
  %v3394 = vadd.f32 %v3392, %v3393
  %v3395 = vrot.slane %v3394, 2
  %v3396 = vadd.f32 %v3394, %v3395
  %v3397 = vrot.slane %v3396, 1
  %v3398 = vadd.f32 %v3396, %v3397
  %v3399 = vsel %vm2605, %v3372, %v3398
  %v3400 = vld [vmem:[%s10] sm:$0xff]
  %v3401 = vld [vmem:[%s10 + $0x8] sm:$0xff]
  %v3402 = vld [vmem:[%s10 + $0x10] sm:$0xff]
  %v3403 = vld [vmem:[%s10 + $0x18] sm:$0xff]
  %v3404 = vld [vmem:[%s10 + $0x20] sm:$0xff]
  %v3405 = vld [vmem:[%s10 + $0x28] sm:$0xff]
  %v3406 = vld [vmem:[%s10 + $0x30] sm:$0xff]
  %v3407 = vld [vmem:[%s10 + $0x38] sm:$0xff]
  %v3408 = vld [vmem:[%s10 + $0x40] sm:$0xff]
  %v3409 = vld [vmem:[%s10 + $0x48] sm:$0xff]
  %v3410 = vld [vmem:[%s10 + $0x50] sm:$0xff]
  %v3411 = vld [vmem:[%s10 + $0x58] sm:$0xff]
  %v3412 = vld [vmem:[%s10 + $0x60] sm:$0xff]
  %v3413 = vld [vmem:[%s10 + $0x68] sm:$0xff]
  %v3415 = vsel %vm2574, %v3399, 0
  %3417 = vmatpush.msra.mxu0 0.0
  %3418 = vmatpush.msra.mxu0 0.0
  %3419 = vmatpush.msra.mxu0 %v3413
  %3420 = vmatpush.msra.mxu0 %v3412
  %3421 = vmatpush.msra.mxu0 %v3411
  %3422 = vmatpush.msra.mxu0 %v3410
  %3423 = vmatpush.msra.mxu0 %v3409
  %3424 = vmatpush.msra.mxu0 %v3408
  %3425 = vmatpush.msra.mxu0 %v3407
  %3426 = vmatpush.msra.mxu0 %v3406
  %3427 = vmatpush.msra.mxu0 %v3405
  %3428 = vmatpush.msra.mxu0 %v3404
  %3429 = vmatpush.msra.mxu0 %v3403
  %3430 = vmatpush.msra.mxu0 %v3402
  %3431 = vmatpush.msra.mxu0 %v3401
  %3432 = vmatpush.msra.mxu0 %v3400
  %3433 = vmatmul.f32.gmra.mxu0 %v3415
  %v3434 = vpop.f32.mrf.mxu0
  %v3435 = vadd.f32 0.0, %v3434
  %3436 = vdwg.mxu0
  %v3437 = vrcp.pop 784.0
  %v3438 = vmul.f32 784.0, %v3437
  %v3439 = vsub.f32 1.0, %v3438
  %v3440 = vmul.f32 %v3437, %v3439
  %v3441 = vadd.f32 %v3437, %v3440
  %vm3442 = vweird.f32 %v3437
  %v3443 = vsel %vm3442, %v3437, %v3441
  %v3444 = vmul.f32 %v3435, %v3443
  %v3445 = vmul.f32 %v3444, %v3444
  %v3447 = vrot.slane %v3445, 7
  %v3449 = vsub.f32 %v3444, %v3447
  %v3450 = vmax.f32 %v3449, 0.0
  %v3451 = vld [vmem:[%s12] sm:$0x1]
  %v3452 = vadd.f32 %v3450, 1e-05
  %v3453 = vrsqrt.pop %v3452
  %v3454 = vmul.f32 %v3453, %v3452
  %v3455 = vmul.f32 %v3454, %v3453
  %v3456 = vmul.f32 0.5, %v3455
  %v3457 = vsub.f32 1.5, %v3456
  %v3458 = vmul.f32 %v3453, %v3457
  %vm3459 = vweird.f32 %v3452
  %vm3460 = vweird.f32 %v3453
  %vm3461 = vmor %vm3459, %vm3460
  %v3462 = vsel %vm3461, %v3453, %v3458
  %3464 = vst [vmem:[#allocation1] sm:$0xff] %v3462
  %s3465 = scalar_lea.vmem [#allocation1], 1
  %v3466 = vld [vmem:[%s3465] ss:$9 sm:$0xff]
  %v3468 = vmul.f32 %v3451, %v3466
  %v3469 = vld [vmem:[%s13] sm:$0x1]
  %v3470 = vmul.f32 %v3444, %v3468
  %v3471 = vsub.f32 %v3469, %v3470
  %v3473 = vperm.slane %v3471, 0
  %v3475 = vsel %vm2605, %v3468, %v3473
  %v3476 = vld [vmem:[%s11] sm:$0xff]
  %vm3477 = vcmask 64512
  %v3479 = vsel %vm3477, %v3475, 0
  %3481 = vmatpush.msra.mxu0 0.0
  %3482 = vmatpush.msra.mxu0 0.0
  %3483 = vmatpush.msra.mxu0 0.0
  %3484 = vmatpush.msra.mxu0 0.0
  %3485 = vmatpush.msra.mxu0 0.0
  %3486 = vmatpush.msra.mxu0 0.0
  %3487 = vmatpush.msra.mxu0 0.0
  %3488 = vmatpush.msra.mxu0 0.0
  %3489 = vmatpush.msra.mxu0 0.0
  %3490 = vmatpush.msra.mxu0 0.0
  %3491 = vmatpush.msra.mxu0 0.0
  %3492 = vmatpush.msra.mxu0 0.0
  %3493 = vmatpush.msra.mxu0 0.0
  %3494 = vmatpush.msra.mxu0 0.0
  %3495 = vmatpush.msra.mxu0 0.0
  %3496 = vmatpush.msra.mxu0 %v3476
  %3497 = vmatmul.f32.gmra.mxu0 %v3479
  %v3498 = vpop.f32.mrf.mxu0
  %v3499 = vadd.f32 0.0, %v3498
  %3500 = vdwg.mxu0
  %v3501 = vperm.slane %v3499, 0
  %v3502 = vmul.f32 %v3347, %v3501
  %v3503 = vmul.f32 %v3348, %v3501
  %v3504 = vmul.f32 %v3349, %v3501
  %v3505 = vmul.f32 %v3350, %v3501
  %v3506 = vmul.f32 %v3351, %v3501
  %v3507 = vmul.f32 %v3352, %v3501
  %v3508 = vmul.f32 %v3353, %v3501
  %v3509 = vperm.slane %v3499, 1
  %v3510 = vadd.f32 %v3502, %v3509
  %v3511 = vadd.f32 %v3503, %v3509
  %v3512 = vadd.f32 %v3504, %v3509
  %v3513 = vadd.f32 %v3505, %v3509
  %v3514 = vadd.f32 %v3506, %v3509
  %v3515 = vadd.f32 %v3507, %v3509
  %v3516 = vadd.f32 %v3508, %v3509
  %vm3517 = vcmp.ge.f32.partialorder %v3510, 0.0
  %vm3518 = vcmp.ge.f32.partialorder %v3511, 0.0
  %vm3519 = vcmp.ge.f32.partialorder %v3512, 0.0
  %vm3520 = vcmp.ge.f32.partialorder %v3513, 0.0
  %vm3521 = vcmp.ge.f32.partialorder %v3514, 0.0
  %vm3522 = vcmp.ge.f32.partialorder %v3515, 0.0
  %vm3523 = vcmp.ge.f32.partialorder %v3516, 0.0
  %v3524 = vmul.f32 %v3510, 0.3
  %v3525 = vmul.f32 %v3511, 0.3
  %v3526 = vmul.f32 %v3512, 0.3
  %v3527 = vmul.f32 %v3513, 0.3
  %v3528 = vmul.f32 %v3514, 0.3
  %v3529 = vmul.f32 %v3515, 0.3
  %v3530 = vmul.f32 %v3516, 0.3
  %v3531 = vsel %vm3517, %v3510, %v3524
  %v3532 = vsel %vm3518, %v3511, %v3525
  %v3533 = vsel %vm3519, %v3512, %v3526
  %v3534 = vsel %vm3520, %v3513, %v3527
  %v3535 = vsel %vm3521, %v3514, %v3528
  %v3536 = vsel %vm3522, %v3515, %v3529
  %v3537 = vsel %vm3523, %v3516, %v3530
  %v3538 = vpack.c.bf16 %v3531, %v3531
  %3539 = vst.msk [vmem:[#allocation4 + $0x4] sm:$0x3] %vm2732, %v3538
  %v3541 = vrot.slane %v3538, 6
  %v3542 = vrot.slane %v3541, 4
  %3544 = vst.msk [vmem:[#allocation4 + $0x8] sm:$0x3] %vm2732, %v3542
  %v3545 = vpack.c.bf16 %v3532, %v3532
  %3546 = vst.msk [vmem:[#allocation4 + $0xc] sm:$0x3] %vm2732, %v3545
  %v3548 = vrot.slane %v3545, 6
  %v3549 = vrot.slane %v3548, 4
  %3551 = vst.msk [vmem:[#allocation4 + $0x10] sm:$0x3] %vm2732, %v3549
  %v3552 = vpack.c.bf16 %v3533, %v3533
  %3553 = vst.msk [vmem:[#allocation4 + $0x14] sm:$0x3] %vm2732, %v3552
  %v3555 = vrot.slane %v3552, 6
  %v3556 = vrot.slane %v3555, 4
  %3558 = vst.msk [vmem:[#allocation4 + $0x18] sm:$0x3] %vm2732, %v3556
  %v3559 = vpack.c.bf16 %v3534, %v3534
  %3560 = vst.msk [vmem:[#allocation4 + $0x1c] sm:$0x3] %vm2732, %v3559
  %v3562 = vrot.slane %v3559, 6
  %v3563 = vrot.slane %v3562, 4
  %3565 = vst.msk [vmem:[#allocation4 + $0x20] sm:$0x3] %vm2732, %v3563
  %v3566 = vpack.c.bf16 %v3535, %v3535
  %3567 = vst.msk [vmem:[#allocation4 + $0x24] sm:$0x3] %vm2732, %v3566
  %v3569 = vrot.slane %v3566, 6
  %v3570 = vrot.slane %v3569, 4
  %3572 = vst.msk [vmem:[#allocation4 + $0x28] sm:$0x3] %vm2732, %v3570
  %v3573 = vpack.c.bf16 %v3536, %v3536
  %3574 = vst.msk [vmem:[#allocation4 + $0x2c] sm:$0x3] %vm2732, %v3573
  %v3576 = vrot.slane %v3573, 6
  %v3577 = vrot.slane %v3576, 4
  %3579 = vst.msk [vmem:[#allocation4 + $0x30] sm:$0x3] %vm2732, %v3577
  %v3580 = vpack.c.bf16 %v3537, %v3537
  %3581 = vst.msk [vmem:[#allocation4 + $0x34] sm:$0x3] %vm2732, %v3580
  %v3583 = vrot.slane %v3580, 6
  %v3584 = vrot.slane %v3583, 4
  %3586 = vst.msk [vmem:[#allocation4 + $0x38] sm:$0x3] %vm2732, %v3584
  %s3587 = sshll.u32 %s2757, 4
  %3588 = dma.done %s133, %s3587
  %v3589 = vld [vmem:[#allocation4] sm:$0xf]
  %v3590 = vld [vmem:[#allocation4 + $0x4] sm:$0xf]
  %v3591 = vld [vmem:[#allocation4 + $0x8] sm:$0xf]
  %v3592 = vld [vmem:[#allocation4 + $0xc] sm:$0xf]
  %v3593 = vld [vmem:[#allocation4 + $0x10] sm:$0xf]
  %v3594 = vld [vmem:[#allocation4 + $0x14] sm:$0xf]
  %v3595 = vld [vmem:[#allocation4 + $0x18] sm:$0xf]
  %v3596 = vld [vmem:[#allocation4 + $0x1c] sm:$0xf]
  %v3597 = vld [vmem:[#allocation4 + $0x20] sm:$0xf]
  %v3598 = vld [vmem:[#allocation4 + $0x24] sm:$0xf]
  %v3599 = vld [vmem:[#allocation4 + $0x28] sm:$0xf]
  %v3600 = vld [vmem:[#allocation4 + $0x2c] sm:$0xf]
  %v3601 = vld [vmem:[#allocation4 + $0x30] sm:$0xf]
  %v3602 = vld [vmem:[#allocation4 + $0x34] sm:$0xf]
  %v3603 = vld [vmem:[#allocation6] sm:$0xf]
  %v3604 = vld [vmem:[#allocation6 + $0x4] sm:$0xf]
  %v3605 = vld [vmem:[#allocation6 + $0x8] sm:$0xf]
  %v3606 = vld [vmem:[#allocation6 + $0xc] sm:$0xf]
  %v3607 = vld [vmem:[#allocation6 + $0x10] sm:$0xf]
  %v3608 = vld [vmem:[#allocation6 + $0x14] sm:$0xf]
  %v3609 = vld [vmem:[#allocation6 + $0x18] sm:$0xf]
  %v3610 = vld [vmem:[#allocation6 + $0x1c] sm:$0xf]
  %v3611 = vld [vmem:[#allocation6 + $0x20] sm:$0xf]
  %v3612 = vld [vmem:[#allocation6 + $0x24] sm:$0xf]
  %v3613 = vld [vmem:[#allocation6 + $0x28] sm:$0xf]
  %v3614 = vld [vmem:[#allocation6 + $0x2c] sm:$0xf]
  %v3615 = vld [vmem:[#allocation6 + $0x30] sm:$0xf]
  %v3616 = vld [vmem:[#allocation6 + $0x34] sm:$0xf]
  %v3617 = vld [vmem:[#allocation4] sm:$0xc]
  %v3618 = vld [vmem:[#allocation4 + $0x38] sm:$0x3]
  %s3619 = scalar_lea.vmem [#allocation6], 56
  %v3620 = vld [vmem:[%s3619] sm:$0xf]
  %v3621 = vld [vmem:[%s3619 + $0x4] sm:$0xf]
  %v3622 = vld [vmem:[%s3619 + $0x8] sm:$0xf]
  %v3623 = vld [vmem:[%s3619 + $0xc] sm:$0xf]
  %v3624 = vld [vmem:[%s3619 + $0x10] sm:$0xf]
  %v3625 = vld [vmem:[%s3619 + $0x14] sm:$0xf]
  %v3626 = vld [vmem:[%s3619 + $0x18] sm:$0xf]
  %v3627 = vld [vmem:[%s3619 + $0x1c] sm:$0xf]
  %v3628 = vld [vmem:[%s3619 + $0x20] sm:$0xf]
  %v3629 = vld [vmem:[%s3619 + $0x24] sm:$0xf]
  %v3630 = vld [vmem:[%s3619 + $0x28] sm:$0xf]
  %v3631 = vld [vmem:[%s3619 + $0x2c] sm:$0xf]
  %v3632 = vld [vmem:[%s3619 + $0x30] sm:$0xf]
  %v3633 = vld [vmem:[%s3619 + $0x34] sm:$0xf]
  %v3649 = vunpack.c.l.b16 %v3617
  %v3650 = vunpack.c.l.b16 %v3590
  %v3651 = vunpack.c.l.b16 %v3591
  %v3652 = vunpack.c.l.b16 %v3592
  %v3653 = vunpack.c.l.b16 %v3593
  %v3654 = vunpack.c.l.b16 %v3594
  %v3655 = vunpack.c.l.b16 %v3595
  %v3656 = vunpack.c.l.b16 %v3596
  %v3657 = vunpack.c.l.b16 %v3597
  %v3658 = vunpack.c.l.b16 %v3598
  %v3659 = vunpack.c.l.b16 %v3599
  %v3660 = vunpack.c.l.b16 %v3600
  %v3661 = vunpack.c.l.b16 %v3601
  %v3662 = vunpack.c.l.b16 %v3602
  %v3663 = vunpack.c.l.b16 %v3618
  %v3664 = vpack.c.b16 %v3650, %v3649
  %v3665 = vpack.c.b16 %v3652, %v3651
  %v3666 = vpack.c.b16 %v3654, %v3653
  %v3667 = vpack.c.b16 %v3656, %v3655
  %v3668 = vpack.c.b16 %v3658, %v3657
  %v3669 = vpack.c.b16 %v3660, %v3659
  %v3670 = vpack.c.b16 %v3662, %v3661
  %v3671 = vpack.c.b16 %v3663, %v3663
  %v3672 = vrot.slane %v3664, 2
  %v3673 = vrot.slane %v3665, 2
  %v3674 = vsel %vm1698, %v3672, %v3673
  %v3675 = vrot.slane %v3666, 2
  %v3676 = vsel %vm1698, %v3673, %v3675
  %v3677 = vrot.slane %v3667, 2
  %v3678 = vsel %vm1698, %v3675, %v3677
  %v3679 = vrot.slane %v3668, 2
  %v3680 = vsel %vm1698, %v3677, %v3679
  %v3681 = vrot.slane %v3669, 2
  %v3682 = vsel %vm1698, %v3679, %v3681
  %v3683 = vrot.slane %v3670, 2
  %v3684 = vsel %vm1698, %v3681, %v3683
  %v3685 = vrot.slane %v3671, 2
  %v3686 = vsel %vm1698, %v3683, %v3685
  %v3701 = vunpack.c.l.b16 %v3620
  %v3702 = vunpack.c.l.b16 %v3621
  %v3703 = vunpack.c.l.b16 %v3622
  %v3704 = vunpack.c.l.b16 %v3623
  %v3705 = vunpack.c.l.b16 %v3624
  %v3706 = vunpack.c.l.b16 %v3625
  %v3707 = vunpack.c.l.b16 %v3626
  %v3708 = vunpack.c.l.b16 %v3627
  %v3709 = vunpack.c.l.b16 %v3628
  %v3710 = vunpack.c.l.b16 %v3629
  %v3711 = vunpack.c.l.b16 %v3630
  %v3712 = vunpack.c.l.b16 %v3631
  %v3713 = vunpack.c.l.b16 %v3632
  %v3714 = vunpack.c.l.b16 %v3633
  %v3715 = vpack.c.b16 %v3702, %v3701
  %v3716 = vpack.c.b16 %v3704, %v3703
  %v3717 = vpack.c.b16 %v3706, %v3705
  %v3718 = vpack.c.b16 %v3708, %v3707
  %v3719 = vpack.c.b16 %v3710, %v3709
  %v3720 = vpack.c.b16 %v3712, %v3711
  %v3721 = vpack.c.b16 %v3714, %v3713
  %v3730 = vsel %vm2574, %v3674, 0
  %v3733 = vsel %vm2574, %v3676, 0
  %v3736 = vsel %vm2574, %v3678, 0
  %v3739 = vsel %vm2574, %v3680, 0
  %v3742 = vsel %vm2574, %v3682, 0
  %v3745 = vsel %vm2574, %v3684, 0
  %v3748 = vsel %vm2574, %v3686, 0
  %3750 = vmatpush.bf16.msra.mxu0 0
  %3751 = vmatpush.bf16.msra.mxu0 %v3721
  %3752 = vmatpush.bf16.msra.mxu0 %v3720
  %3753 = vmatpush.bf16.msra.mxu0 %v3719
  %3754 = vmatpush.bf16.msra.mxu0 %v3718
  %3755 = vmatpush.bf16.msra.mxu0 %v3717
  %3756 = vmatpush.bf16.msra.mxu0 %v3716
  %3757 = vmatpush.bf16.msra.mxu0 %v3715
  %3758 = vmatmul.bf16.gmra.mxu0 %v3730
  %v3759 = vpop.f32.mrf.mxu0
  %v3760 = vadd.f32 0.0, %v3759
  %v3761 = vpop.f32.mrf.mxu0
  %v3762 = vadd.f32 0.0, %v3761
  %3763 = vmatmul.bf16.gmra.mxu0 %v3733
  %v3764 = vpop.f32.mrf.mxu0
  %v3765 = vadd.f32 0.0, %v3764
  %v3766 = vpop.f32.mrf.mxu0
  %v3767 = vadd.f32 0.0, %v3766
  %3768 = vmatmul.bf16.gmra.mxu0 %v3736
  %v3769 = vpop.f32.mrf.mxu0
  %v3770 = vadd.f32 0.0, %v3769
  %v3771 = vpop.f32.mrf.mxu0
  %v3772 = vadd.f32 0.0, %v3771
  %3773 = vmatmul.bf16.gmra.mxu0 %v3739
  %v3774 = vpop.f32.mrf.mxu0
  %v3775 = vadd.f32 0.0, %v3774
  %v3776 = vpop.f32.mrf.mxu0
  %v3777 = vadd.f32 0.0, %v3776
  %3778 = vmatmul.bf16.gmra.mxu0 %v3742
  %v3779 = vpop.f32.mrf.mxu0
  %v3780 = vadd.f32 0.0, %v3779
  %v3781 = vpop.f32.mrf.mxu0
  %v3782 = vadd.f32 0.0, %v3781
  %3783 = vmatmul.bf16.gmra.mxu0 %v3745
  %v3784 = vpop.f32.mrf.mxu0
  %v3785 = vadd.f32 0.0, %v3784
  %v3786 = vpop.f32.mrf.mxu0
  %v3787 = vadd.f32 0.0, %v3786
  %3788 = vmatmul.bf16.gmra.mxu0 %v3748
  %v3789 = vpop.f32.mrf.mxu0
  %v3790 = vadd.f32 0.0, %v3789
  %v3791 = vpop.f32.mrf.mxu0
  %v3792 = vadd.f32 0.0, %v3791
  %3793 = vdwg.mxu0
  %v3795 = vunpack.c.l.b16 %v3589
  %v3796 = vpack.c.b16 %v3650, %v3795
  %v3811 = vunpack.c.l.b16 %v3603
  %v3812 = vunpack.c.l.b16 %v3604
  %v3813 = vunpack.c.l.b16 %v3605
  %v3814 = vunpack.c.l.b16 %v3606
  %v3815 = vunpack.c.l.b16 %v3607
  %v3816 = vunpack.c.l.b16 %v3608
  %v3817 = vunpack.c.l.b16 %v3609
  %v3818 = vunpack.c.l.b16 %v3610
  %v3819 = vunpack.c.l.b16 %v3611
  %v3820 = vunpack.c.l.b16 %v3612
  %v3821 = vunpack.c.l.b16 %v3613
  %v3822 = vunpack.c.l.b16 %v3614
  %v3823 = vunpack.c.l.b16 %v3615
  %v3824 = vunpack.c.l.b16 %v3616
  %v3825 = vpack.c.b16 %v3812, %v3811
  %v3826 = vpack.c.b16 %v3814, %v3813
  %v3827 = vpack.c.b16 %v3816, %v3815
  %v3828 = vpack.c.b16 %v3818, %v3817
  %v3829 = vpack.c.b16 %v3820, %v3819
  %v3830 = vpack.c.b16 %v3822, %v3821
  %v3831 = vpack.c.b16 %v3824, %v3823
  %v3840 = vsel %vm2574, %v3796, 0
  %v3843 = vsel %vm2574, %v3665, 0
  %v3846 = vsel %vm2574, %v3666, 0
  %v3849 = vsel %vm2574, %v3667, 0
  %v3852 = vsel %vm2574, %v3668, 0
  %v3855 = vsel %vm2574, %v3669, 0
  %v3858 = vsel %vm2574, %v3670, 0
  %3860 = vmatpush.bf16.msra.mxu0 0
  %3861 = vmatpush.bf16.msra.mxu0 %v3831
  %3862 = vmatpush.bf16.msra.mxu0 %v3830
  %3863 = vmatpush.bf16.msra.mxu0 %v3829
  %3864 = vmatpush.bf16.msra.mxu0 %v3828
  %3865 = vmatpush.bf16.msra.mxu0 %v3827
  %3866 = vmatpush.bf16.msra.mxu0 %v3826
  %3867 = vmatpush.bf16.msra.mxu0 %v3825
  %3868 = vmatmul.bf16.gmra.mxu0 %v3840
  %v3869 = vpop.f32.mrf.mxu0
  %v3870 = vadd.f32 %v3760, %v3869
  %v3871 = vpop.f32.mrf.mxu0
  %v3872 = vadd.f32 %v3762, %v3871
  %3873 = vmatmul.bf16.gmra.mxu0 %v3843
  %v3874 = vpop.f32.mrf.mxu0
  %v3875 = vadd.f32 %v3765, %v3874
  %v3876 = vpop.f32.mrf.mxu0
  %v3877 = vadd.f32 %v3767, %v3876
  %3878 = vmatmul.bf16.gmra.mxu0 %v3846
  %v3879 = vpop.f32.mrf.mxu0
  %v3880 = vadd.f32 %v3770, %v3879
  %v3881 = vpop.f32.mrf.mxu0
  %v3882 = vadd.f32 %v3772, %v3881
  %3883 = vmatmul.bf16.gmra.mxu0 %v3849
  %v3884 = vpop.f32.mrf.mxu0
  %v3885 = vadd.f32 %v3775, %v3884
  %v3886 = vpop.f32.mrf.mxu0
  %v3887 = vadd.f32 %v3777, %v3886
  %3888 = vmatmul.bf16.gmra.mxu0 %v3852
  %v3889 = vpop.f32.mrf.mxu0
  %v3890 = vadd.f32 %v3780, %v3889
  %v3891 = vpop.f32.mrf.mxu0
  %v3892 = vadd.f32 %v3782, %v3891
  %3893 = vmatmul.bf16.gmra.mxu0 %v3855
  %v3894 = vpop.f32.mrf.mxu0
  %v3895 = vadd.f32 %v3785, %v3894
  %v3896 = vpop.f32.mrf.mxu0
  %v3897 = vadd.f32 %v3787, %v3896
  %3898 = vmatmul.bf16.gmra.mxu0 %v3858
  %v3899 = vpop.f32.mrf.mxu0
  %v3900 = vadd.f32 %v3790, %v3899
  %v3901 = vpop.f32.mrf.mxu0
  %v3902 = vadd.f32 %v3792, %v3901
  %3903 = vdwg.mxu0
  %v3904 = vld [vmem:[#allocation4 + $0x38] sm:$0xf]
  %s3905 = scalar_lea.vmem [#allocation6], 112
  %v3906 = vld [vmem:[%s3905] sm:$0xf]
  %v3907 = vld [vmem:[%s3905 + $0x4] sm:$0xf]
  %v3908 = vld [vmem:[%s3905 + $0x8] sm:$0xf]
  %v3909 = vld [vmem:[%s3905 + $0xc] sm:$0xf]
  %v3910 = vld [vmem:[%s3905 + $0x10] sm:$0xf]
  %v3911 = vld [vmem:[%s3905 + $0x14] sm:$0xf]
  %v3912 = vld [vmem:[%s3905 + $0x18] sm:$0xf]
  %v3913 = vld [vmem:[%s3905 + $0x1c] sm:$0xf]
  %v3914 = vld [vmem:[%s3905 + $0x20] sm:$0xf]
  %v3915 = vld [vmem:[%s3905 + $0x24] sm:$0xf]
  %v3916 = vld [vmem:[%s3905 + $0x28] sm:$0xf]
  %v3917 = vld [vmem:[%s3905 + $0x2c] sm:$0xf]
  %v3918 = vld [vmem:[%s3905 + $0x30] sm:$0xf]
  %v3919 = vld [vmem:[%s3905 + $0x34] sm:$0xf]
  %v3921 = vunpack.c.l.b16 %v3904
  %v3922 = vpack.c.b16 %v3651, %v3650
  %v3923 = vpack.c.b16 %v3653, %v3652
  %v3924 = vpack.c.b16 %v3655, %v3654
  %v3925 = vpack.c.b16 %v3657, %v3656
  %v3926 = vpack.c.b16 %v3659, %v3658
  %v3927 = vpack.c.b16 %v3661, %v3660
  %v3928 = vpack.c.b16 %v3921, %v3662
  %v3943 = vunpack.c.l.b16 %v3906
  %v3944 = vunpack.c.l.b16 %v3907
  %v3945 = vunpack.c.l.b16 %v3908
  %v3946 = vunpack.c.l.b16 %v3909
  %v3947 = vunpack.c.l.b16 %v3910
  %v3948 = vunpack.c.l.b16 %v3911
  %v3949 = vunpack.c.l.b16 %v3912
  %v3950 = vunpack.c.l.b16 %v3913
  %v3951 = vunpack.c.l.b16 %v3914
  %v3952 = vunpack.c.l.b16 %v3915
  %v3953 = vunpack.c.l.b16 %v3916
  %v3954 = vunpack.c.l.b16 %v3917
  %v3955 = vunpack.c.l.b16 %v3918
  %v3956 = vunpack.c.l.b16 %v3919
  %v3957 = vpack.c.b16 %v3944, %v3943
  %v3958 = vpack.c.b16 %v3946, %v3945
  %v3959 = vpack.c.b16 %v3948, %v3947
  %v3960 = vpack.c.b16 %v3950, %v3949
  %v3961 = vpack.c.b16 %v3952, %v3951
  %v3962 = vpack.c.b16 %v3954, %v3953
  %v3963 = vpack.c.b16 %v3956, %v3955
  %v3972 = vsel %vm2574, %v3922, 0
  %v3975 = vsel %vm2574, %v3923, 0
  %v3978 = vsel %vm2574, %v3924, 0
  %v3981 = vsel %vm2574, %v3925, 0
  %v3984 = vsel %vm2574, %v3926, 0
  %v3987 = vsel %vm2574, %v3927, 0
  %v3990 = vsel %vm2574, %v3928, 0
  %3992 = vmatpush.bf16.msra.mxu0 0
  %3993 = vmatpush.bf16.msra.mxu0 %v3963
  %3994 = vmatpush.bf16.msra.mxu0 %v3962
  %3995 = vmatpush.bf16.msra.mxu0 %v3961
  %3996 = vmatpush.bf16.msra.mxu0 %v3960
  %3997 = vmatpush.bf16.msra.mxu0 %v3959
  %3998 = vmatpush.bf16.msra.mxu0 %v3958
  %3999 = vmatpush.bf16.msra.mxu0 %v3957
  %4000 = vmatmul.bf16.gmra.mxu0 %v3972
  %v4001 = vpop.f32.mrf.mxu0
  %v4002 = vadd.f32 0.0, %v4001
  %v4003 = vpop.f32.mrf.mxu0
  %v4004 = vadd.f32 0.0, %v4003
  %4005 = vmatmul.bf16.gmra.mxu0 %v3975
  %v4006 = vpop.f32.mrf.mxu0
  %v4007 = vadd.f32 0.0, %v4006
  %v4008 = vpop.f32.mrf.mxu0
  %v4009 = vadd.f32 0.0, %v4008
  %4010 = vmatmul.bf16.gmra.mxu0 %v3978
  %v4011 = vpop.f32.mrf.mxu0
  %v4012 = vadd.f32 0.0, %v4011
  %v4013 = vpop.f32.mrf.mxu0
  %v4014 = vadd.f32 0.0, %v4013
  %4015 = vmatmul.bf16.gmra.mxu0 %v3981
  %v4016 = vpop.f32.mrf.mxu0
  %v4017 = vadd.f32 0.0, %v4016
  %v4018 = vpop.f32.mrf.mxu0
  %v4019 = vadd.f32 0.0, %v4018
  %4020 = vmatmul.bf16.gmra.mxu0 %v3984
  %v4021 = vpop.f32.mrf.mxu0
  %v4022 = vadd.f32 0.0, %v4021
  %v4023 = vpop.f32.mrf.mxu0
  %v4024 = vadd.f32 0.0, %v4023
  %4025 = vmatmul.bf16.gmra.mxu0 %v3987
  %v4026 = vpop.f32.mrf.mxu0
  %v4027 = vadd.f32 0.0, %v4026
  %v4028 = vpop.f32.mrf.mxu0
  %v4029 = vadd.f32 0.0, %v4028
  %4030 = vmatmul.bf16.gmra.mxu0 %v3990
  %v4031 = vpop.f32.mrf.mxu0
  %v4032 = vadd.f32 0.0, %v4031
  %v4033 = vpop.f32.mrf.mxu0
  %v4034 = vadd.f32 0.0, %v4033
  %4035 = vdwg.mxu0
  %v4036 = vadd.f32 %v3870, %v4002
  %v4037 = vadd.f32 %v3872, %v4004
  %v4038 = vadd.f32 %v3875, %v4007
  %v4039 = vadd.f32 %v3877, %v4009
  %v4040 = vadd.f32 %v3880, %v4012
  %v4041 = vadd.f32 %v3882, %v4014
  %v4042 = vadd.f32 %v3885, %v4017
  %v4043 = vadd.f32 %v3887, %v4019
  %v4044 = vadd.f32 %v3890, %v4022
  %v4045 = vadd.f32 %v3892, %v4024
  %v4046 = vadd.f32 %v3895, %v4027
  %v4047 = vadd.f32 %v3897, %v4029
  %v4048 = vadd.f32 %v3900, %v4032
  %v4049 = vadd.f32 %v3902, %v4034
  %v4050 = vld [vmem:[#allocation4 + $0x4] sm:$0xc]
  %v4051 = vld [vmem:[#allocation4 + $0x8] sm:$0xf]
  %v4052 = vld [vmem:[#allocation4 + $0xc] sm:$0xf]
  %v4053 = vld [vmem:[#allocation4 + $0x10] sm:$0xf]
  %v4054 = vld [vmem:[#allocation4 + $0x14] sm:$0xf]
  %v4055 = vld [vmem:[#allocation4 + $0x18] sm:$0xf]
  %v4056 = vld [vmem:[#allocation4 + $0x1c] sm:$0xf]
  %v4057 = vld [vmem:[#allocation4 + $0x20] sm:$0xf]
  %v4058 = vld [vmem:[#allocation4 + $0x24] sm:$0xf]
  %v4059 = vld [vmem:[#allocation4 + $0x28] sm:$0xf]
  %v4060 = vld [vmem:[#allocation4 + $0x2c] sm:$0xf]
  %v4061 = vld [vmem:[#allocation4 + $0x30] sm:$0xf]
  %v4062 = vld [vmem:[#allocation4 + $0x34] sm:$0xf]
  %v4063 = vld [vmem:[#allocation4 + $0x38] sm:$0xf]
  %v4064 = vld [vmem:[#allocation4 + $0x3c] sm:$0x3]
  %s4065 = scalar_lea.vmem [#allocation6], 168
  %v4066 = vld [vmem:[%s4065] sm:$0xf]
  %v4067 = vld [vmem:[%s4065 + $0x4] sm:$0xf]
  %v4068 = vld [vmem:[%s4065 + $0x8] sm:$0xf]
  %v4069 = vld [vmem:[%s4065 + $0xc] sm:$0xf]
  %v4070 = vld [vmem:[%s4065 + $0x10] sm:$0xf]
  %v4071 = vld [vmem:[%s4065 + $0x14] sm:$0xf]
  %v4072 = vld [vmem:[%s4065 + $0x18] sm:$0xf]
  %v4073 = vld [vmem:[%s4065 + $0x1c] sm:$0xf]
  %v4074 = vld [vmem:[%s4065 + $0x20] sm:$0xf]
  %v4075 = vld [vmem:[%s4065 + $0x24] sm:$0xf]
  %v4076 = vld [vmem:[%s4065 + $0x28] sm:$0xf]
  %v4077 = vld [vmem:[%s4065 + $0x2c] sm:$0xf]
  %v4078 = vld [vmem:[%s4065 + $0x30] sm:$0xf]
  %v4079 = vld [vmem:[%s4065 + $0x34] sm:$0xf]
  %v4095 = vunpack.c.l.b16 %v4050
  %v4096 = vunpack.c.l.b16 %v4051
  %v4097 = vunpack.c.l.b16 %v4052
  %v4098 = vunpack.c.l.b16 %v4053
  %v4099 = vunpack.c.l.b16 %v4054
  %v4100 = vunpack.c.l.b16 %v4055
  %v4101 = vunpack.c.l.b16 %v4056
  %v4102 = vunpack.c.l.b16 %v4057
  %v4103 = vunpack.c.l.b16 %v4058
  %v4104 = vunpack.c.l.b16 %v4059
  %v4105 = vunpack.c.l.b16 %v4060
  %v4106 = vunpack.c.l.b16 %v4061
  %v4107 = vunpack.c.l.b16 %v4062
  %v4108 = vunpack.c.l.b16 %v4063
  %v4109 = vunpack.c.l.b16 %v4064
  %v4110 = vpack.c.b16 %v4096, %v4095
  %v4111 = vpack.c.b16 %v4098, %v4097
  %v4112 = vpack.c.b16 %v4100, %v4099
  %v4113 = vpack.c.b16 %v4102, %v4101
  %v4114 = vpack.c.b16 %v4104, %v4103
  %v4115 = vpack.c.b16 %v4106, %v4105
  %v4116 = vpack.c.b16 %v4108, %v4107
  %v4117 = vpack.c.b16 %v4109, %v4109
  %v4118 = vrot.slane %v4110, 2
  %v4119 = vrot.slane %v4111, 2
  %v4120 = vsel %vm1698, %v4118, %v4119
  %v4121 = vrot.slane %v4112, 2
  %v4122 = vsel %vm1698, %v4119, %v4121
  %v4123 = vrot.slane %v4113, 2
  %v4124 = vsel %vm1698, %v4121, %v4123
  %v4125 = vrot.slane %v4114, 2
  %v4126 = vsel %vm1698, %v4123, %v4125
  %v4127 = vrot.slane %v4115, 2
  %v4128 = vsel %vm1698, %v4125, %v4127
  %v4129 = vrot.slane %v4116, 2
  %v4130 = vsel %vm1698, %v4127, %v4129
  %v4131 = vrot.slane %v4117, 2
  %v4132 = vsel %vm1698, %v4129, %v4131
  %v4147 = vunpack.c.l.b16 %v4066
  %v4148 = vunpack.c.l.b16 %v4067
  %v4149 = vunpack.c.l.b16 %v4068
  %v4150 = vunpack.c.l.b16 %v4069
  %v4151 = vunpack.c.l.b16 %v4070
  %v4152 = vunpack.c.l.b16 %v4071
  %v4153 = vunpack.c.l.b16 %v4072
  %v4154 = vunpack.c.l.b16 %v4073
  %v4155 = vunpack.c.l.b16 %v4074
  %v4156 = vunpack.c.l.b16 %v4075
  %v4157 = vunpack.c.l.b16 %v4076
  %v4158 = vunpack.c.l.b16 %v4077
  %v4159 = vunpack.c.l.b16 %v4078
  %v4160 = vunpack.c.l.b16 %v4079
  %v4161 = vpack.c.b16 %v4148, %v4147
  %v4162 = vpack.c.b16 %v4150, %v4149
  %v4163 = vpack.c.b16 %v4152, %v4151
  %v4164 = vpack.c.b16 %v4154, %v4153
  %v4165 = vpack.c.b16 %v4156, %v4155
  %v4166 = vpack.c.b16 %v4158, %v4157
  %v4167 = vpack.c.b16 %v4160, %v4159
  %v4176 = vsel %vm2574, %v4120, 0
  %v4179 = vsel %vm2574, %v4122, 0
  %v4182 = vsel %vm2574, %v4124, 0
  %v4185 = vsel %vm2574, %v4126, 0
  %v4188 = vsel %vm2574, %v4128, 0
  %v4191 = vsel %vm2574, %v4130, 0
  %v4194 = vsel %vm2574, %v4132, 0
  %4196 = vmatpush.bf16.msra.mxu0 0
  %4197 = vmatpush.bf16.msra.mxu0 %v4167
  %4198 = vmatpush.bf16.msra.mxu0 %v4166
  %4199 = vmatpush.bf16.msra.mxu0 %v4165
  %4200 = vmatpush.bf16.msra.mxu0 %v4164
  %4201 = vmatpush.bf16.msra.mxu0 %v4163
  %4202 = vmatpush.bf16.msra.mxu0 %v4162
  %4203 = vmatpush.bf16.msra.mxu0 %v4161
  %4204 = vmatmul.bf16.gmra.mxu0 %v4176
  %v4205 = vpop.f32.mrf.mxu0
  %v4206 = vadd.f32 0.0, %v4205
  %v4207 = vpop.f32.mrf.mxu0
  %v4208 = vadd.f32 0.0, %v4207
  %4209 = vmatmul.bf16.gmra.mxu0 %v4179
  %v4210 = vpop.f32.mrf.mxu0
  %v4211 = vadd.f32 0.0, %v4210
  %v4212 = vpop.f32.mrf.mxu0
  %v4213 = vadd.f32 0.0, %v4212
  %4214 = vmatmul.bf16.gmra.mxu0 %v4182
  %v4215 = vpop.f32.mrf.mxu0
  %v4216 = vadd.f32 0.0, %v4215
  %v4217 = vpop.f32.mrf.mxu0
  %v4218 = vadd.f32 0.0, %v4217
  %4219 = vmatmul.bf16.gmra.mxu0 %v4185
  %v4220 = vpop.f32.mrf.mxu0
  %v4221 = vadd.f32 0.0, %v4220
  %v4222 = vpop.f32.mrf.mxu0
  %v4223 = vadd.f32 0.0, %v4222
  %4224 = vmatmul.bf16.gmra.mxu0 %v4188
  %v4225 = vpop.f32.mrf.mxu0
  %v4226 = vadd.f32 0.0, %v4225
  %v4227 = vpop.f32.mrf.mxu0
  %v4228 = vadd.f32 0.0, %v4227
  %4229 = vmatmul.bf16.gmra.mxu0 %v4191
  %v4230 = vpop.f32.mrf.mxu0
  %v4231 = vadd.f32 0.0, %v4230
  %v4232 = vpop.f32.mrf.mxu0
  %v4233 = vadd.f32 0.0, %v4232
  %4234 = vmatmul.bf16.gmra.mxu0 %v4194
  %v4235 = vpop.f32.mrf.mxu0
  %v4236 = vadd.f32 0.0, %v4235
  %v4237 = vpop.f32.mrf.mxu0
  %v4238 = vadd.f32 0.0, %v4237
  %4239 = vdwg.mxu0
  %v4240 = vadd.f32 %v4036, %v4206
  %v4241 = vadd.f32 %v4037, %v4208
  %v4242 = vadd.f32 %v4038, %v4211
  %v4243 = vadd.f32 %v4039, %v4213
  %v4244 = vadd.f32 %v4040, %v4216
  %v4245 = vadd.f32 %v4041, %v4218
  %v4246 = vadd.f32 %v4042, %v4221
  %v4247 = vadd.f32 %v4043, %v4223
  %v4248 = vadd.f32 %v4044, %v4226
  %v4249 = vadd.f32 %v4045, %v4228
  %v4250 = vadd.f32 %v4046, %v4231
  %v4251 = vadd.f32 %v4047, %v4233
  %v4252 = vadd.f32 %v4048, %v4236
  %v4253 = vadd.f32 %v4049, %v4238
  %v4254 = vld [vmem:[#allocation4 + $0x3c] sm:$0xf]
  %s4255 = scalar_lea.vmem [#allocation6], 224
  %v4256 = vld [vmem:[%s4255] sm:$0xf]
  %v4257 = vld [vmem:[%s4255 + $0x4] sm:$0xf]
  %v4258 = vld [vmem:[%s4255 + $0x8] sm:$0xf]
  %v4259 = vld [vmem:[%s4255 + $0xc] sm:$0xf]
  %v4260 = vld [vmem:[%s4255 + $0x10] sm:$0xf]
  %v4261 = vld [vmem:[%s4255 + $0x14] sm:$0xf]
  %v4262 = vld [vmem:[%s4255 + $0x18] sm:$0xf]
  %v4263 = vld [vmem:[%s4255 + $0x1c] sm:$0xf]
  %v4264 = vld [vmem:[%s4255 + $0x20] sm:$0xf]
  %v4265 = vld [vmem:[%s4255 + $0x24] sm:$0xf]
  %v4266 = vld [vmem:[%s4255 + $0x28] sm:$0xf]
  %v4267 = vld [vmem:[%s4255 + $0x2c] sm:$0xf]
  %v4268 = vld [vmem:[%s4255 + $0x30] sm:$0xf]
  %v4269 = vld [vmem:[%s4255 + $0x34] sm:$0xf]
  %v4271 = vunpack.c.l.b16 %v4254
  %v4272 = vpack.c.b16 %v4097, %v4096
  %v4273 = vpack.c.b16 %v4099, %v4098
  %v4274 = vpack.c.b16 %v4101, %v4100
  %v4275 = vpack.c.b16 %v4103, %v4102
  %v4276 = vpack.c.b16 %v4105, %v4104
  %v4277 = vpack.c.b16 %v4107, %v4106
  %v4278 = vpack.c.b16 %v4271, %v4108
  %v4293 = vunpack.c.l.b16 %v4256
  %v4294 = vunpack.c.l.b16 %v4257
  %v4295 = vunpack.c.l.b16 %v4258
  %v4296 = vunpack.c.l.b16 %v4259
  %v4297 = vunpack.c.l.b16 %v4260
  %v4298 = vunpack.c.l.b16 %v4261
  %v4299 = vunpack.c.l.b16 %v4262
  %v4300 = vunpack.c.l.b16 %v4263
  %v4301 = vunpack.c.l.b16 %v4264
  %v4302 = vunpack.c.l.b16 %v4265
  %v4303 = vunpack.c.l.b16 %v4266
  %v4304 = vunpack.c.l.b16 %v4267
  %v4305 = vunpack.c.l.b16 %v4268
  %v4306 = vunpack.c.l.b16 %v4269
  %v4307 = vpack.c.b16 %v4294, %v4293
  %v4308 = vpack.c.b16 %v4296, %v4295
  %v4309 = vpack.c.b16 %v4298, %v4297
  %v4310 = vpack.c.b16 %v4300, %v4299
  %v4311 = vpack.c.b16 %v4302, %v4301
  %v4312 = vpack.c.b16 %v4304, %v4303
  %v4313 = vpack.c.b16 %v4306, %v4305
  %v4322 = vsel %vm2574, %v4272, 0
  %v4325 = vsel %vm2574, %v4273, 0
  %v4328 = vsel %vm2574, %v4274, 0
  %v4331 = vsel %vm2574, %v4275, 0
  %v4334 = vsel %vm2574, %v4276, 0
  %v4337 = vsel %vm2574, %v4277, 0
  %v4340 = vsel %vm2574, %v4278, 0
  %4342 = vmatpush.bf16.msra.mxu0 0
  %4343 = vmatpush.bf16.msra.mxu0 %v4313
  %4344 = vmatpush.bf16.msra.mxu0 %v4312
  %4345 = vmatpush.bf16.msra.mxu0 %v4311
  %4346 = vmatpush.bf16.msra.mxu0 %v4310
  %4347 = vmatpush.bf16.msra.mxu0 %v4309
  %4348 = vmatpush.bf16.msra.mxu0 %v4308
  %4349 = vmatpush.bf16.msra.mxu0 %v4307
  %4350 = vmatmul.bf16.gmra.mxu0 %v4322
  %v4351 = vpop.f32.mrf.mxu0
  %v4352 = vadd.f32 0.0, %v4351
  %v4353 = vpop.f32.mrf.mxu0
  %v4354 = vadd.f32 0.0, %v4353
  %4355 = vmatmul.bf16.gmra.mxu0 %v4325
  %v4356 = vpop.f32.mrf.mxu0
  %v4357 = vadd.f32 0.0, %v4356
  %v4358 = vpop.f32.mrf.mxu0
  %v4359 = vadd.f32 0.0, %v4358
  %4360 = vmatmul.bf16.gmra.mxu0 %v4328
  %v4361 = vpop.f32.mrf.mxu0
  %v4362 = vadd.f32 0.0, %v4361
  %v4363 = vpop.f32.mrf.mxu0
  %v4364 = vadd.f32 0.0, %v4363
  %4365 = vmatmul.bf16.gmra.mxu0 %v4331
  %v4366 = vpop.f32.mrf.mxu0
  %v4367 = vadd.f32 0.0, %v4366
  %v4368 = vpop.f32.mrf.mxu0
  %v4369 = vadd.f32 0.0, %v4368
  %4370 = vmatmul.bf16.gmra.mxu0 %v4334
  %v4371 = vpop.f32.mrf.mxu0
  %v4372 = vadd.f32 0.0, %v4371
  %v4373 = vpop.f32.mrf.mxu0
  %v4374 = vadd.f32 0.0, %v4373
  %4375 = vmatmul.bf16.gmra.mxu0 %v4337
  %v4376 = vpop.f32.mrf.mxu0
  %v4377 = vadd.f32 0.0, %v4376
  %v4378 = vpop.f32.mrf.mxu0
  %v4379 = vadd.f32 0.0, %v4378
  %4380 = vmatmul.bf16.gmra.mxu0 %v4340
  %v4381 = vpop.f32.mrf.mxu0
  %v4382 = vadd.f32 0.0, %v4381
  %v4383 = vpop.f32.mrf.mxu0
  %v4384 = vadd.f32 0.0, %v4383
  %4385 = vdwg.mxu0
  %v4386 = vadd.f32 %v4240, %v4352
  %v4387 = vadd.f32 %v4241, %v4354
  %v4388 = vadd.f32 %v4242, %v4357
  %v4389 = vadd.f32 %v4243, %v4359
  %v4390 = vadd.f32 %v4244, %v4362
  %v4391 = vadd.f32 %v4245, %v4364
  %v4392 = vadd.f32 %v4246, %v4367
  %v4393 = vadd.f32 %v4247, %v4369
  %v4394 = vadd.f32 %v4248, %v4372
  %v4395 = vadd.f32 %v4249, %v4374
  %v4396 = vadd.f32 %v4250, %v4377
  %v4397 = vadd.f32 %v4251, %v4379
  %v4398 = vadd.f32 %v4252, %v4382
  %v4399 = vadd.f32 %v4253, %v4384
  %v4400 = vtanh.pop %v4386
  %v4401 = vtanh.pop %v4387
  %v4402 = vtanh.pop %v4388
  %v4403 = vtanh.pop %v4389
  %v4404 = vtanh.pop %v4390
  %v4405 = vtanh.pop %v4391
  %v4406 = vtanh.pop %v4392
  %v4407 = vtanh.pop %v4393
  %v4408 = vtanh.pop %v4394
  %v4409 = vtanh.pop %v4395
  %v4410 = vtanh.pop %v4396
  %v4411 = vtanh.pop %v4397
  %v4412 = vtanh.pop %v4398
  %v4413 = vtanh.pop %v4399
  %vm4414 = vcmask 228352
  %4415 = vst.msk [vmem:[#allocation7] sm:$0xff] %vm4414, %v4400
  %4416 = vst.msk [vmem:[#allocation7 + $0x8] sm:$0xff] %vm4414, %v4401
  %4417 = vst.msk [vmem:[#allocation7 + $0x10] sm:$0xff] %vm4414, %v4402
  %4418 = vst.msk [vmem:[#allocation7 + $0x18] sm:$0xff] %vm4414, %v4403
  %4419 = vst.msk [vmem:[#allocation7 + $0x20] sm:$0xff] %vm4414, %v4404
  %4420 = vst.msk [vmem:[#allocation7 + $0x28] sm:$0xff] %vm4414, %v4405
  %4421 = vst.msk [vmem:[#allocation7 + $0x30] sm:$0xff] %vm4414, %v4406
  %4422 = vst.msk [vmem:[#allocation7 + $0x38] sm:$0xff] %vm4414, %v4407
  %4423 = vst.msk [vmem:[#allocation7 + $0x40] sm:$0xff] %vm4414, %v4408
  %4424 = vst.msk [vmem:[#allocation7 + $0x48] sm:$0xff] %vm4414, %v4409
  %4425 = vst.msk [vmem:[#allocation7 + $0x50] sm:$0xff] %vm4414, %v4410
  %4426 = vst.msk [vmem:[#allocation7 + $0x58] sm:$0xff] %vm4414, %v4411
  %4427 = vst.msk [vmem:[#allocation7 + $0x60] sm:$0xff] %vm4414, %v4412
  %4428 = vst.msk [vmem:[#allocation7 + $0x68] sm:$0xff] %vm4414, %v4413
  %v4429 = vld [vmem:[#allocation7] ss:$4 sm:$0xff]
  %s4430 = scalar_lea.vmem [#allocation7], 32
  %v4431 = vld [vmem:[%s4430] ss:$4 sm:$0xff]
  %s4432 = scalar_lea.vmem [#allocation7], 64
  %v4433 = vld [vmem:[%s4432] ss:$4 sm:$0xff]
  %s4434 = scalar_lea.vmem [#allocation7], 96
  %v4435 = vld [vmem:[%s4434] ss:$4 sm:$0xf]
  %4436 = vst.msk [vmem:[%s15] sm:$0xff] %vm4414, %v4429
  %4437 = vst.msk [vmem:[%s15 + $0x8] sm:$0xff] %vm4414, %v4431
  %4438 = vst.msk [vmem:[%s15 + $0x10] sm:$0xff] %vm4414, %v4433
  %vm4439 = vcmask 224256
  %4440 = vst.msk [vmem:[%s15 + $0x18] sm:$0xf] %vm4439, %v4435
  %s4441 = scalar_lea.vmem [#allocation7], 1
  %v4442 = vld [vmem:[%s4441] ss:$4 sm:$0xff]
  %s4443 = scalar_lea.vmem [#allocation7], 33
  %v4444 = vld [vmem:[%s4443] ss:$4 sm:$0xff]
  %s4445 = scalar_lea.vmem [#allocation7], 65
  %v4446 = vld [vmem:[%s4445] ss:$4 sm:$0xff]
  %s4447 = scalar_lea.vmem [#allocation7], 97
  %v4448 = vld [vmem:[%s4447] ss:$4 sm:$0xf]
  %s4449 = scalar_lea.vmem %s15, 32
  %4450 = vst.msk [vmem:[%s4449] sm:$0xff] %vm4414, %v4442
  %4451 = vst.msk [vmem:[%s4449 + $0x8] sm:$0xff] %vm4414, %v4444
  %4452 = vst.msk [vmem:[%s4449 + $0x10] sm:$0xff] %vm4414, %v4446
  %4453 = vst.msk [vmem:[%s4449 + $0x18] sm:$0xf] %vm4439, %v4448
  %s4454 = scalar_lea.vmem [#allocation7], 2
  %v4455 = vld [vmem:[%s4454] ss:$4 sm:$0xff]
  %s4456 = scalar_lea.vmem [#allocation7], 34
  %v4457 = vld [vmem:[%s4456] ss:$4 sm:$0xff]
  %s4458 = scalar_lea.vmem [#allocation7], 66
  %v4459 = vld [vmem:[%s4458] ss:$4 sm:$0xff]
  %s4460 = scalar_lea.vmem [#allocation7], 98
  %v4461 = vld [vmem:[%s4460] ss:$4 sm:$0xf]
  %s4462 = scalar_lea.vmem %s15, 64
  %4463 = vst.msk [vmem:[%s4462] sm:$0xff] %vm4414, %v4455
  %4464 = vst.msk [vmem:[%s4462 + $0x8] sm:$0xff] %vm4414, %v4457
  %4465 = vst.msk [vmem:[%s4462 + $0x10] sm:$0xff] %vm4414, %v4459
  %4466 = vst.msk [vmem:[%s4462 + $0x18] sm:$0xf] %vm4439, %v4461
  %s4467 = scalar_lea.vmem [#allocation7], 3
  %v4468 = vld [vmem:[%s4467] ss:$4 sm:$0xff]
  %s4469 = scalar_lea.vmem [#allocation7], 35
  %v4470 = vld [vmem:[%s4469] ss:$4 sm:$0xff]
  %s4471 = scalar_lea.vmem [#allocation7], 67
  %v4472 = vld [vmem:[%s4471] ss:$4 sm:$0xff]
  %s4473 = scalar_lea.vmem [#allocation7], 99
  %v4474 = vld [vmem:[%s4473] ss:$4 sm:$0xf]
  %s4475 = scalar_lea.vmem %s15, 96
  %4476 = vst.msk [vmem:[%s4475] sm:$0xff] %vm4414, %v4468
  %4477 = vst.msk [vmem:[%s4475 + $0x8] sm:$0xff] %vm4414, %v4470
  %4478 = vst.msk [vmem:[%s4475 + $0x10] sm:$0xff] %vm4414, %v4472
  %4479 = vst.msk [vmem:[%s4475 + $0x18] sm:$0xf] %vm4439, %v4474
  // Predicated region
  $region92: #{generator_forward.1} parent=0 // pred_check
    _
  $region93: #{generator_forward.1} parent=0 // pred_check_branch
    %4481 = sbr.rel (0) target = $region95
  $region94: #{generator_forward.1} parent=0 // pred_region
    _
  $region95: #{generator_forward.1} parent=0 // pred_fallthru
    _
  // Predicated region
  $region96: #{generator_forward.1} parent=0 // pred_check
    _
  $region97: #{generator_forward.1} parent=0 // pred_check_branch
    %4483 = sbr.rel (0) target = $region99
  $region98: #{generator_forward.1} parent=0 // pred_region
    _
  $region99: #{generator_forward.1} parent=0 // pred_fallthru
    _
  %4484 = vsyncmov [#allocation8]
  %s4485 = vpop.sfrf %4484
  %p4486 = scmp.eq.s32.totalorder %s4485, 0
  %p4487 = pneg %p4486
  %4489 = shalt.err (%p4487)
  %s4490 = scalar_lea.sflag [#allocation8], 1
  %4491 = vsyncmov %s4490
  %s4492 = vpop.sfrf %4491
  %p4493 = scmp.eq.s32.totalorder %s4492, 0
  %p4494 = pneg %p4493
  %4496 = shalt.err (%p4494)

</llo_original>
